<compile_context>
chip_gen: v7x
topology: tpu7x:2x2x1
jax: 0.10.0
libtpu: 0.0.40
codegen_flags: <defaults>
</compile_context>

<pallas_src>
import jax
import jax.numpy as jnp
from jax import lax
from jax.experimental import pallas as pl
from jax.experimental.pallas import tpu as pltpu

LEAKY_SLOPE = 0.2
BN_EPS = 1e-5


# --------------------------------------------------------------------------- #
# Kernel A: per-user-tile attention + aggregation + layer1/layer2 (pre-BN)
#           + per-tile BatchNorm partial statistics
# --------------------------------------------------------------------------- #
def _agg_kernel(ue_ref, nfi_ref, nfl_ref, p_ref, pt_ref,
                aw1n_ref, aw1s_ref, ab1_ref, aw2_ref, ab2_ref,
                w1s_ref, w1n_ref, b1_ref, w2_ref, b2_ref,
                z_ref, stats_ref):
    ue = ue_ref[...]                                              # [TB, 2D] bf16 (id|loc)
    nf = jnp.concatenate([nfi_ref[...], nfl_ref[...]], axis=1)    # [TBN, 2D] bf16
    TB = ue.shape[0]
    TBN = nf.shape[0]
    D = nfi_ref.shape[1]
    N = TBN // TB

    # ---- attention MLP: att2(ReLU(att1(cat(nbr_id, nbr_loc, self)))) ----
    hn = jnp.dot(nf, aw1n_ref[...], preferred_element_type=jnp.float32)      # [TBN, D]
    hu = jnp.dot(ue, aw1s_ref[...], preferred_element_type=jnp.float32)      # [TB, D]
    hu_rep = jnp.dot(pt_ref[...], hu.astype(jnp.bfloat16),
                     preferred_element_type=jnp.float32)                     # group-broadcast
    h = jnp.maximum(hn + hu_rep + ab1_ref[...], 0.0)                         # ReLU
    # TODO(synk): attention dropout (droprate) omitted — eval-mode semantics.
    scores_flat = (jnp.dot(h.astype(jnp.bfloat16), aw2_ref[...],
                           preferred_element_type=jnp.float32)
                   + ab2_ref[0, 0])                                          # [TBN, 1]

    # ---- softmax over each user's N neighbors (only tiny score vectors reshaped) ----
    scores = scores_flat.reshape(TB, N)
    m = jnp.max(scores, axis=-1, keepdims=True)
    e = jnp.exp(scores - m)
    att = e * pl.reciprocal(jnp.sum(e, axis=-1, keepdims=True), approx=True)  # [TB, N]
    att_flat = att.reshape(TBN, 1)

    # ---- attention-weighted aggregation: one fused 2D-wide segment-sum on the MXU ----
    wn = (nf.astype(jnp.float32) * att_flat).astype(jnp.bfloat16)            # [TBN, 2D]
    nbr = jnp.dot(p_ref[...], wn, preferred_element_type=jnp.float32)        # [TB, 2D]

    # ---- layer1(cat(self, nbr)) and layer2(self), pre-BatchNorm ----
    z1 = (jnp.dot(ue, w1s_ref[...], preferred_element_type=jnp.float32)
          + jnp.dot(nbr.astype(jnp.bfloat16), w1n_ref[...],
                    preferred_element_type=jnp.float32)
          + b1_ref[...])                                                     # [TB, D]
    z2 = jnp.dot(ue, w2_ref[...], preferred_element_type=jnp.float32) + b2_ref[...]

    # Lane-dense fused output block: [z1 | z2]
    z_ref[...] = jnp.concatenate([z1, z2], axis=1)                           # [TB, 2D]

    # Per-tile partial BatchNorm statistics (finalized over the full batch outside).
    s1 = jnp.sum(z1, axis=0, keepdims=True)
    s1q = jnp.sum(z1 * z1, axis=0, keepdims=True)
    s2 = jnp.sum(z2, axis=0, keepdims=True)
    s2q = jnp.sum(z2 * z2, axis=0, keepdims=True)
    pad = jnp.zeros_like(s1)
    stats_ref[...] = jnp.concatenate([s1, s1q, s2, s2q, pad, pad, pad, pad],
                                     axis=0).reshape(1, 8, D)


# --------------------------------------------------------------------------- #
# Kernel B: tiled elementwise BN-affine (precomputed scale/shift) + LeakyReLU + add
# --------------------------------------------------------------------------- #
def _bn_apply_kernel(z_ref, ss_ref, out_ref):
    D = out_ref.shape[1]
    z = z_ref[...]                       # [TB, 2D] f32 = [z1 | z2]
    ss = ss_ref[...]                     # [4, D]: scale1, shift1, scale2, shift2
    y1 = z[:, 0:D] * ss[0:1, :] + ss[1:2, :]        # un_bn branch (layer1)
    y2 = z[:, D:2 * D] * ss[2:3, :] + ss[3:4, :]    # u_bn branch  (layer2)
    lrelu = lambda y: jnp.where(y > 0, y, LEAKY_SLOPE * y)
    out_ref[...] = lrelu(y1) + lrelu(y2)


# --------------------------------------------------------------------------- #
# Parameters / wrapper
# --------------------------------------------------------------------------- #
def init_params(key, embed_dim, num_user, num_user_location):
    D = embed_dim
    ks = jax.random.split(key, 10)
    s = 0.1
    return {
        "u_emb": jax.random.normal(ks[0], (num_user, D), jnp.float32) * s,
        "ul_emb": jax.random.normal(ks[1], (num_user_location, D), jnp.float32) * s,
        # attention MLP: Linear(4D->D), Linear(D->1); weights stored as W^T ([in, out]).
        # (attention submodule not defined in the spec — standard MLP-attention with
        #  softmax over the N neighbors assumed.)
        "att_w1": jax.random.normal(ks[2], (4 * D, D), jnp.float32) * s,
        "att_b1": jax.random.normal(ks[3], (1, D), jnp.float32) * s,
        "att_w2": jax.random.normal(ks[4], (D, 1), jnp.float32) * s,
        "att_b2": jax.random.normal(ks[5], (1, 1), jnp.float32) * s,
        # layer1: Linear(4D->D) + un_bn
        "w1": jax.random.normal(ks[6], (4 * D, D), jnp.float32) * s,
        "b1": jax.random.normal(ks[7], (1, D), jnp.float32) * s,
        "un_bn_g": jnp.ones((1, D), jnp.float32),
        "un_bn_b": jnp.zeros((1, D), jnp.float32),
        # layer2: Linear(2D->D) + u_bn
        "w2": jax.random.normal(ks[8], (2 * D, D), jnp.float32) * s,
        "b2": jax.random.normal(ks[9], (1, D), jnp.float32) * s,
        "u_bn_g": jnp.ones((1, D), jnp.float32),
        "u_bn_b": jnp.zeros((1, D), jnp.float32),
    }


def encoder_forward(nodes_u, params, un, u2l, *, tb=64):
    """is_user_part=True forward path."""
    D = params["u_emb"].shape[1]
    bf = jnp.bfloat16

    # --- glue: embedding-table gathers (nn.Embedding) stay in XLA; gathered halves
    #     are produced FLAT [B*N, D] and in bf16 (no [B, N, 2D] concat in HBM).
    uid = nodes_u[:, 0]                                             # nodes_u.t()[0]
    uloc = nodes_u[:, 1]                                            # nodes_u.t()[1]
    ue = jnp.concatenate([jnp.take(params["u_emb"], uid, axis=0),
                          jnp.take(params["ul_emb"], uloc, axis=0)],
                         axis=1).astype(bf)                         # [B, 2D]
    interactions = jnp.take(un, uid, axis=0)                        # [B, N]
    B, N = interactions.shape
    flat_idx = interactions.reshape(-1)                             # [B*N]
    nf_id = jnp.take(params["u_emb"], flat_idx, axis=0).astype(bf)  # [B*N, D]
    nf_loc = jnp.take(params["ul_emb"], jnp.take(u2l, flat_idx),
                      axis=0).astype(bf)                            # [B*N, D]

    tb = min(tb, B)
    assert B % tb == 0, "batch must be divisible by the user tile"
    num_tiles = B // tb

    # Static 0/1 segment matrices (group broadcast / group sum on the MXU), built
    # once here and passed as small resident inputs (constant index_map).
    row = jnp.arange(tb, dtype=jnp.int32)[:, None]
    col = jnp.arange(tb * N, dtype=jnp.int32)[None, :]
    P = ((col >= row * N) & (col < (row + 1) * N)).astype(bf)       # [tb, tb*N]
    PT = P.T                                                        # [tb*N, tb]

    # Pre-split, bf16-cast weight row-blocks (no in-kernel slicing of loaded weights).
    aw1n = params["att_w1"][:2 * D].astype(bf)    # attention rows for neighbor features
    aw1s = params["att_w1"][2 * D:].astype(bf)    # attention rows for self embedding
    aw2 = params["att_w2"].astype(bf)
    w1s = params["w1"][:2 * D].astype(bf)         # layer1 rows for self embedding
    w1n = params["w1"][2 * D:].astype(bf)         # layer1 rows for aggregated neighbors
    w2 = params["w2"].astype(bf)

    full2 = lambda shape: pl.BlockSpec(shape, lambda i: (0, 0))     # resident inputs

    z, stats = pl.pallas_call(
        _agg_kernel,
        grid=(num_tiles,),
        out_shape=(jax.ShapeDtypeStruct((B, 2 * D), jnp.float32),
                   jax.ShapeDtypeStruct((num_tiles, 8, D), jnp.float32)),
        in_specs=[
            pl.BlockSpec((tb, 2 * D), lambda i: (i, 0)),            # self embedding tile
            pl.BlockSpec((tb * N, D), lambda i: (i, 0)),            # neighbor id (flat)
            pl.BlockSpec((tb * N, D), lambda i: (i, 0)),            # neighbor loc (flat)
            full2((tb, tb * N)),                                    # P  (segment sum)
            full2((tb * N, tb)),                                    # PT (segment bcast)
            full2((2 * D, D)),                                      # att_w1 neighbor rows
            full2((2 * D, D)),                                      # att_w1 self rows
            full2((1, D)),                                          # att_b1
            full2((D, 1)),                                          # att_w2
            pl.BlockSpec(memory_space=pltpu.MemorySpace.SMEM),      # att_b2 scalar
            full2((2 * D, D)),                                      # w1 self rows
            full2((2 * D, D)),                                      # w1 neighbor rows
            full2((1, D)),                                          # b1
            full2((2 * D, D)),                                      # w2
            full2((1, D)),                                          # b2
        ],
        out_specs=(pl.BlockSpec((tb, 2 * D), lambda i: (i, 0)),
                   pl.BlockSpec((1, 8, D), lambda i: (i, 0, 0))),
        compiler_params=pltpu.CompilerParams(
            dimension_semantics=("parallel",),          # batch rows are independent
            vmem_limit_bytes=32 * 1024 * 1024),
    )(ue, nf_id, nf_loc, P, PT,
      aw1n, aw1s, params["att_b1"], aw2, params["att_b2"],
      w1s, w1n, params["b1"], w2, params["b2"])

    # --- finalize full-batch BatchNorm statistics (tiny XLA reduction over tiles). ---
    s = jnp.sum(stats, axis=0)                                      # [8, D]
    mean1 = s[0] / B
    var1 = s[1] / B - mean1 * mean1                                 # biased (train-mode BN)
    mean2 = s[2] / B
    var2 = s[3] / B - mean2 * mean2
    scale1 = params["un_bn_g"][0] * lax.rsqrt(var1 + BN_EPS)
    shift1 = params["un_bn_b"][0] - mean1 * scale1
    scale2 = params["u_bn_g"][0] * lax.rsqrt(var2 + BN_EPS)
    shift2 = params["u_bn_b"][0] - mean2 * scale2
    ss = jnp.stack([scale1, shift1, scale2, shift2], axis=0)        # [4, D]
    # TODO(synk): running_mean/running_var updates (momentum=0.5) are not produced.

    # --- second pass: tiled, grid-parallel BN-affine + LeakyReLU + residual add. ---
    out = pl.pallas_call(
        _bn_apply_kernel,
        grid=(num_tiles,),
        out_shape=jax.ShapeDtypeStruct((B, D), jnp.float32),
        in_specs=[pl.BlockSpec((tb, 2 * D), lambda i: (i, 0)),
                  pl.BlockSpec((4, D), lambda i: (0, 0))],
        out_specs=pl.BlockSpec((tb, D), lambda i: (i, 0)),
        compiler_params=pltpu.CompilerParams(
            dimension_semantics=("parallel",),
            vmem_limit_bytes=32 * 1024 * 1024),
    )(z, ss)
    return out


# --------------------------------------------------------------------------- #
# Pure-JAX reference (mirrors the torch forward) for a correctness check
# --------------------------------------------------------------------------- #
def encoder_reference(nodes_u, params, un, u2l):
    D = params["u_emb"].shape[1]
    uid = nodes_u[:, 0]
    uloc = nodes_u[:, 1]
    ue = jnp.concatenate([params["u_emb"][uid], params["ul_emb"][uloc]], axis=1)
    inter = un[uid]
    B, N = inter.shape
    nf_id = params["u_emb"][inter]
    nf_loc = params["ul_emb"][u2l[inter]]
    nf = jnp.concatenate([nf_id, nf_loc], axis=2)                    # [B, N, 2D]
    att_in = jnp.concatenate(
        [nf, jnp.broadcast_to(ue[:, None, :], (B, N, 2 * D))], axis=2)
    h = jnp.maximum(att_in @ params["att_w1"] + params["att_b1"], 0.0)
    scores = (h @ params["att_w2"])[..., 0] + params["att_b2"][0, 0]
    att = jax.nn.softmax(scores, axis=-1)
    nbr = jnp.sum(nf * att[:, :, None], axis=1)
    combined = jnp.concatenate([ue, nbr], axis=1)

    def bn(z, g, b):
        mu = z.mean(0, keepdims=True)
        var = ((z - mu) ** 2).mean(0, keepdims=True)
        return (z - mu) / jnp.sqrt(var + BN_EPS) * g + b

    lrelu = lambda y: jnp.where(y > 0, y, LEAKY_SLOPE * y)
    z1 = combined @ params["w1"] + params["b1"]
    z2 = ue @ params["w2"] + params["b2"]
    return (lrelu(bn(z2, params["u_bn_g"], params["u_bn_b"]))
            + lrelu(bn(z1, params["un_bn_g"], params["un_bn_b"])))


if __name__ == "__main__":
    embed_dim = 32
    num_neighbor = 8
    batch = 512           # 8 grid steps at tb=64 -> >=4 steps per TensorCore on v7x
    num_user = 339
    num_user_location = 137

    key = jax.random.PRNGKey(0)
    kp, k1, k2, k3, k4 = jax.random.split(key, 5)

    params = init_params(kp, embed_dim, num_user, num_user_location)

    # nodes_u: [B, 2] = (user_id, user_location_id)
    nodes_u = jnp.stack(
        [jax.random.randint(k1, (batch,), 0, num_user, dtype=jnp.int32),
         jax.random.randint(k2, (batch,), 0, num_user_location, dtype=jnp.int32)],
        axis=1)
    # un: per-user neighbor list [num_user, num_neighbor]
    un = jax.random.randint(k3, (num_user, num_neighbor), 0, num_user, dtype=jnp.int32)
    # u2l: user -> location map (get_neighbor_location equivalent)
    u2l = jax.random.randint(k4, (num_user,), 0, num_user_location, dtype=jnp.int32)

    out = jax.block_until_ready(encoder_forward(nodes_u, params, un, u2l, tb=64))
    ref = jax.block_until_ready(encoder_reference(nodes_u, params, un, u2l))

    assert out.shape == (batch, embed_dim) and out.dtype == jnp.float32
    assert bool(jnp.all(jnp.isfinite(out)))
    assert bool(jnp.allclose(out, ref, atol=5e-2, rtol=5e-2)), \
        float(jnp.max(jnp.abs(out - ref)))
    print("KERNEL_OK")
</pallas_src>

<mosaic_0001>
module attributes {stable_mosaic.version = 11 : i64} {
  func.func @_agg_kernel(%arg0: i32, %arg1: memref<64x64xbf16, #tpu.memory_space<vmem>>, %arg2: memref<512x32xbf16, #tpu.memory_space<vmem>>, %arg3: memref<512x32xbf16, #tpu.memory_space<vmem>>, %arg4: memref<64x512xbf16, #tpu.memory_space<vmem>>, %arg5: memref<512x64xbf16, #tpu.memory_space<vmem>>, %arg6: memref<64x32xbf16, #tpu.memory_space<vmem>>, %arg7: memref<64x32xbf16, #tpu.memory_space<vmem>>, %arg8: memref<1x32xf32, #tpu.memory_space<vmem>>, %arg9: memref<32x1xbf16, #tpu.memory_space<vmem>>, %arg10: memref<1x1xf32, #tpu.memory_space<smem>>, %arg11: memref<64x32xbf16, #tpu.memory_space<vmem>>, %arg12: memref<64x32xbf16, #tpu.memory_space<vmem>>, %arg13: memref<1x32xf32, #tpu.memory_space<vmem>>, %arg14: memref<64x32xbf16, #tpu.memory_space<vmem>>, %arg15: memref<1x32xf32, #tpu.memory_space<vmem>>, %arg16: memref<64x64xf32, #tpu.memory_space<vmem>>, %arg17: memref<1x8x32xf32, #tpu.memory_space<vmem>>) attributes {dimension_semantics = [#tpu.dimension_semantics<parallel>], iteration_bounds = array<i64: 8>, scalar_prefetch = 0 : i64, scratch_operands = 0 : i64, tpu.core_type = #tpu.core_type<tc>, window_params = [{transform_indices = @transform_0, window_bounds = array<i64: 64, 64>}, {transform_indices = @transform_1, window_bounds = array<i64: 512, 32>}, {transform_indices = @transform_2, window_bounds = array<i64: 512, 32>}, {pipeline_mode = #tpu.pipeline_mode<synchronous>, transform_indices = @transform_3, window_bounds = array<i64: 64, 512>}, {pipeline_mode = #tpu.pipeline_mode<synchronous>, transform_indices = @transform_4, window_bounds = array<i64: 512, 64>}, {pipeline_mode = #tpu.pipeline_mode<synchronous>, transform_indices = @transform_5, window_bounds = array<i64: 64, 32>}, {pipeline_mode = #tpu.pipeline_mode<synchronous>, transform_indices = @transform_6, window_bounds = array<i64: 64, 32>}, {pipeline_mode = #tpu.pipeline_mode<synchronous>, transform_indices = @transform_7, window_bounds = array<i64: 1, 32>}, {pipeline_mode = #tpu.pipeline_mode<synchronous>, transform_indices = @transform_8, window_bounds = array<i64: 32, 1>}, {transform_indices = @transform_9, window_bounds = array<i64: 1, 1>}, {pipeline_mode = #tpu.pipeline_mode<synchronous>, transform_indices = @transform_10, window_bounds = array<i64: 64, 32>}, {pipeline_mode = #tpu.pipeline_mode<synchronous>, transform_indices = @transform_11, window_bounds = array<i64: 64, 32>}, {pipeline_mode = #tpu.pipeline_mode<synchronous>, transform_indices = @transform_12, window_bounds = array<i64: 1, 32>}, {pipeline_mode = #tpu.pipeline_mode<synchronous>, transform_indices = @transform_13, window_bounds = array<i64: 64, 32>}, {pipeline_mode = #tpu.pipeline_mode<synchronous>, transform_indices = @transform_14, window_bounds = array<i64: 1, 32>}, {transform_indices = @transform_15, window_bounds = array<i64: 64, 64>}, {transform_indices = @transform_16, window_bounds = array<i64: 1, 8, 32>}]} {
    %c0 = arith.constant 0 : index
    %c0_0 = arith.constant 0 : index
    %0 = vector.load %arg1[%c0, %c0_0] : memref<64x64xbf16, #tpu.memory_space<vmem>>, vector<64x64xbf16>
    %c0_1 = arith.constant 0 : index
    %c0_2 = arith.constant 0 : index
    %1 = vector.load %arg2[%c0_1, %c0_2] : memref<512x32xbf16, #tpu.memory_space<vmem>>, vector<512x32xbf16>
    %c0_3 = arith.constant 0 : index
    %c0_4 = arith.constant 0 : index
    %2 = vector.load %arg3[%c0_3, %c0_4] : memref<512x32xbf16, #tpu.memory_space<vmem>>, vector<512x32xbf16>
    %3 = tpu.concatenate %1, %2 in 1 : vector<512x32xbf16>, vector<512x32xbf16> -> vector<512x64xbf16>
    %c0_5 = arith.constant 0 : index
    %c0_6 = arith.constant 0 : index
    %4 = vector.load %arg6[%c0_5, %c0_6] : memref<64x32xbf16, #tpu.memory_space<vmem>>, vector<64x32xbf16>
    %cst = arith.constant dense<0.000000e+00> : vector<512x32xf32>
    %5 = tpu.matmul %3, %4, %cst {dimension_numbers = #tpu.dot_dimension_numbers<[1], [0], [0], [1], [0, 0, 1, 1], [], []>} : vector<512x64xbf16>, vector<64x32xbf16>, vector<512x32xf32> -> vector<512x32xf32>
    %c0_7 = arith.constant 0 : index
    %c0_8 = arith.constant 0 : index
    %6 = vector.load %arg7[%c0_7, %c0_8] : memref<64x32xbf16, #tpu.memory_space<vmem>>, vector<64x32xbf16>
    %cst_9 = arith.constant dense<0.000000e+00> : vector<64x32xf32>
    %7 = tpu.matmul %0, %6, %cst_9 {dimension_numbers = #tpu.dot_dimension_numbers<[1], [0], [0], [1], [0, 0, 1, 1], [], []>} : vector<64x64xbf16>, vector<64x32xbf16>, vector<64x32xf32> -> vector<64x32xf32>
    %c0_10 = arith.constant 0 : index
    %c0_11 = arith.constant 0 : index
    %8 = vector.load %arg5[%c0_10, %c0_11] : memref<512x64xbf16, #tpu.memory_space<vmem>>, vector<512x64xbf16>
    %9 = arith.truncf %7 : vector<64x32xf32> to vector<64x32xbf16>
    %cst_12 = arith.constant dense<0.000000e+00> : vector<512x32xf32>
    %10 = tpu.matmul %8, %9, %cst_12 {dimension_numbers = #tpu.dot_dimension_numbers<[1], [0], [0], [1], [0, 0, 1, 1], [], []>} : vector<512x64xbf16>, vector<64x32xbf16>, vector<512x32xf32> -> vector<512x32xf32>
    %11 = arith.addf %5, %10 : vector<512x32xf32>
    %c0_13 = arith.constant 0 : index
    %c0_14 = arith.constant 0 : index
    %12 = vector.load %arg8[%c0_13, %c0_14] : memref<1x32xf32, #tpu.memory_space<vmem>>, vector<1x32xf32>
    %13 = vector.broadcast %12 : vector<1x32xf32> to vector<512x32xf32>
    %14 = arith.addf %11, %13 : vector<512x32xf32>
    %cst_15 = arith.constant 0.000000e+00 : f32
    %15 = vector.broadcast %cst_15 : f32 to vector<512x32xf32>
    %16 = arith.maximumf %14, %15 : vector<512x32xf32>
    %17 = arith.truncf %16 : vector<512x32xf32> to vector<512x32xbf16>
    %c0_16 = arith.constant 0 : index
    %c0_17 = arith.constant 0 : index
    %18 = vector.load %arg9[%c0_16, %c0_17] : memref<32x1xbf16, #tpu.memory_space<vmem>>, vector<32x1xbf16>
    %cst_18 = arith.constant dense<0.000000e+00> : vector<512x1xf32>
    %19 = tpu.matmul %17, %18, %cst_18 {dimension_numbers = #tpu.dot_dimension_numbers<[1], [0], [0], [1], [0, 0, 1, 1], [], []>} : vector<512x32xbf16>, vector<32x1xbf16>, vector<512x1xf32> -> vector<512x1xf32>
    %c0_19 = arith.constant 0 : index
    %c0_20 = arith.constant 0 : index
    %20 = memref.load %arg10[%c0_19, %c0_20] : memref<1x1xf32, #tpu.memory_space<smem>>
    %21 = vector.broadcast %20 : f32 to vector<512x1xf32>
    %22 = arith.addf %19, %21 : vector<512x1xf32>
    %23 = vector.shape_cast %22 : vector<512x1xf32> to vector<64x8xf32>
    %cst_21 = arith.constant dense<0xFF800000> : vector<64xf32>
    %24 = vector.multi_reduction <maximumf>, %23, %cst_21 [1] : vector<64x8xf32> to vector<64xf32>
    %25 = vector.shape_cast %24 : vector<64xf32> to vector<64x1xf32>
    %26 = vector.broadcast %25 : vector<64x1xf32> to vector<64x8xf32>
    %27 = arith.subf %23, %26 : vector<64x8xf32>
    %28 = math.exp %27 : vector<64x8xf32>
    %cst_22 = arith.constant dense<0.000000e+00> : vector<64xf32>
    %29 = vector.multi_reduction <add>, %28, %cst_22 [1] : vector<64x8xf32> to vector<64xf32>
    %30 = vector.shape_cast %29 : vector<64xf32> to vector<64x1xf32>
    %31 = tpu.reciprocal %30 {approx = true} : vector<64x1xf32> -> vector<64x1xf32>
    %32 = vector.broadcast %31 : vector<64x1xf32> to vector<64x8xf32>
    %33 = arith.mulf %28, %32 : vector<64x8xf32>
    %34 = vector.shape_cast %33 : vector<64x8xf32> to vector<512x1xf32>
    %35 = arith.extf %3 : vector<512x64xbf16> to vector<512x64xf32>
    %36 = vector.broadcast %34 : vector<512x1xf32> to vector<512x64xf32>
    %37 = arith.mulf %35, %36 : vector<512x64xf32>
    %38 = arith.truncf %37 : vector<512x64xf32> to vector<512x64xbf16>
    %c0_23 = arith.constant 0 : index
    %c0_24 = arith.constant 0 : index
    %39 = vector.load %arg4[%c0_23, %c0_24] : memref<64x512xbf16, #tpu.memory_space<vmem>>, vector<64x512xbf16>
    %cst_25 = arith.constant dense<0.000000e+00> : vector<64x64xf32>
    %40 = tpu.matmul %39, %38, %cst_25 {dimension_numbers = #tpu.dot_dimension_numbers<[1], [0], [0], [1], [0, 0, 1, 1], [], []>} : vector<64x512xbf16>, vector<512x64xbf16>, vector<64x64xf32> -> vector<64x64xf32>
    %c0_26 = arith.constant 0 : index
    %c0_27 = arith.constant 0 : index
    %41 = vector.load %arg11[%c0_26, %c0_27] : memref<64x32xbf16, #tpu.memory_space<vmem>>, vector<64x32xbf16>
    %cst_28 = arith.constant dense<0.000000e+00> : vector<64x32xf32>
    %42 = tpu.matmul %0, %41, %cst_28 {dimension_numbers = #tpu.dot_dimension_numbers<[1], [0], [0], [1], [0, 0, 1, 1], [], []>} : vector<64x64xbf16>, vector<64x32xbf16>, vector<64x32xf32> -> vector<64x32xf32>
    %43 = arith.truncf %40 : vector<64x64xf32> to vector<64x64xbf16>
    %c0_29 = arith.constant 0 : index
    %c0_30 = arith.constant 0 : index
    %44 = vector.load %arg12[%c0_29, %c0_30] : memref<64x32xbf16, #tpu.memory_space<vmem>>, vector<64x32xbf16>
    %cst_31 = arith.constant dense<0.000000e+00> : vector<64x32xf32>
    %45 = tpu.matmul %43, %44, %cst_31 {dimension_numbers = #tpu.dot_dimension_numbers<[1], [0], [0], [1], [0, 0, 1, 1], [], []>} : vector<64x64xbf16>, vector<64x32xbf16>, vector<64x32xf32> -> vector<64x32xf32>
    %46 = arith.addf %42, %45 : vector<64x32xf32>
    %c0_32 = arith.constant 0 : index
    %c0_33 = arith.constant 0 : index
    %47 = vector.load %arg13[%c0_32, %c0_33] : memref<1x32xf32, #tpu.memory_space<vmem>>, vector<1x32xf32>
    %48 = vector.broadcast %47 : vector<1x32xf32> to vector<64x32xf32>
    %49 = arith.addf %46, %48 : vector<64x32xf32>
    %c0_34 = arith.constant 0 : index
    %c0_35 = arith.constant 0 : index
    %50 = vector.load %arg14[%c0_34, %c0_35] : memref<64x32xbf16, #tpu.memory_space<vmem>>, vector<64x32xbf16>
    %cst_36 = arith.constant dense<0.000000e+00> : vector<64x32xf32>
    %51 = tpu.matmul %0, %50, %cst_36 {dimension_numbers = #tpu.dot_dimension_numbers<[1], [0], [0], [1], [0, 0, 1, 1], [], []>} : vector<64x64xbf16>, vector<64x32xbf16>, vector<64x32xf32> -> vector<64x32xf32>
    %c0_37 = arith.constant 0 : index
    %c0_38 = arith.constant 0 : index
    %52 = vector.load %arg15[%c0_37, %c0_38] : memref<1x32xf32, #tpu.memory_space<vmem>>, vector<1x32xf32>
    %53 = vector.broadcast %52 : vector<1x32xf32> to vector<64x32xf32>
    %54 = arith.addf %51, %53 : vector<64x32xf32>
    %55 = tpu.concatenate %49, %54 in 1 : vector<64x32xf32>, vector<64x32xf32> -> vector<64x64xf32>
    %c0_39 = arith.constant 0 : index
    %c0_40 = arith.constant 0 : index
    %56 = vector.load %arg16[%c0_39, %c0_40] : memref<64x64xf32, #tpu.memory_space<vmem>>, vector<64x64xf32>
    tpu.vector_store %arg16[%c0_39, %c0_40], %55 {strides = array<i32>} : memref<64x64xf32, #tpu.memory_space<vmem>>, vector<64x64xf32>,
    %cst_41 = arith.constant dense<0.000000e+00> : vector<32xf32>
    %57 = vector.multi_reduction <add>, %49, %cst_41 [0] : vector<64x32xf32> to vector<32xf32>
    %58 = vector.shape_cast %57 : vector<32xf32> to vector<1x32xf32>
    %59 = arith.mulf %49, %49 : vector<64x32xf32>
    %cst_42 = arith.constant dense<0.000000e+00> : vector<32xf32>
    %60 = vector.multi_reduction <add>, %59, %cst_42 [0] : vector<64x32xf32> to vector<32xf32>
    %61 = vector.shape_cast %60 : vector<32xf32> to vector<1x32xf32>
    %cst_43 = arith.constant dense<0.000000e+00> : vector<32xf32>
    %62 = vector.multi_reduction <add>, %54, %cst_43 [0] : vector<64x32xf32> to vector<32xf32>
    %63 = vector.shape_cast %62 : vector<32xf32> to vector<1x32xf32>
    %64 = arith.mulf %54, %54 : vector<64x32xf32>
    %cst_44 = arith.constant dense<0.000000e+00> : vector<32xf32>
    %65 = vector.multi_reduction <add>, %64, %cst_44 [0] : vector<64x32xf32> to vector<32xf32>
    %66 = vector.shape_cast %65 : vector<32xf32> to vector<1x32xf32>
    %cst_45 = arith.constant 0.000000e+00 : f32
    %67 = vector.broadcast %cst_45 : f32 to vector<1x32xf32>
    %68 = tpu.concatenate %58, %61, %63, %66, %67, %67, %67, %67 in 0 : vector<1x32xf32>, vector<1x32xf32>, vector<1x32xf32>, vector<1x32xf32>, vector<1x32xf32>, vector<1x32xf32>, vector<1x32xf32>, vector<1x32xf32> -> vector<8x32xf32>
    %69 = vector.shape_cast %68 : vector<8x32xf32> to vector<1x8x32xf32>
    %c0_46 = arith.constant 0 : index
    %c0_47 = arith.constant 0 : index
    %c0_48 = arith.constant 0 : index
    %70 = vector.load %arg17[%c0_46, %c0_47, %c0_48] : memref<1x8x32xf32, #tpu.memory_space<vmem>>, vector<1x8x32xf32>
    tpu.vector_store %arg17[%c0_46, %c0_47, %c0_48], %69 {strides = array<i32>} : memref<1x8x32xf32, #tpu.memory_space<vmem>>, vector<1x8x32xf32>,
    return
  }
  func.func @transform_0(%arg0: i32) -> (i32, i32) {
    %c0_i32 = arith.constant 0 : i32
    %c0_i32_0 = arith.constant 0 : i32
    return %arg0, %c0_i32 : i32, i32
  }
  func.func @transform_1(%arg0: i32) -> (i32, i32) {
    %c0_i32 = arith.constant 0 : i32
    %c0_i32_0 = arith.constant 0 : i32
    return %arg0, %c0_i32 : i32, i32
  }
  func.func @transform_2(%arg0: i32) -> (i32, i32) {
    %c0_i32 = arith.constant 0 : i32
    %c0_i32_0 = arith.constant 0 : i32
    return %arg0, %c0_i32 : i32, i32
  }
  func.func @transform_3(%arg0: i32) -> (i32, i32) {
    %c0_i32 = arith.constant 0 : i32
    %c0_i32_0 = arith.constant 0 : i32
    %c0_i32_1 = arith.constant 0 : i32
    return %c0_i32, %c0_i32_0 : i32, i32
  }
  func.func @transform_4(%arg0: i32) -> (i32, i32) {
    %c0_i32 = arith.constant 0 : i32
    %c0_i32_0 = arith.constant 0 : i32
    %c0_i32_1 = arith.constant 0 : i32
    return %c0_i32, %c0_i32_0 : i32, i32
  }
  func.func @transform_5(%arg0: i32) -> (i32, i32) {
    %c0_i32 = arith.constant 0 : i32
    %c0_i32_0 = arith.constant 0 : i32
    %c0_i32_1 = arith.constant 0 : i32
    return %c0_i32, %c0_i32_0 : i32, i32
  }
  func.func @transform_6(%arg0: i32) -> (i32, i32) {
    %c0_i32 = arith.constant 0 : i32
    %c0_i32_0 = arith.constant 0 : i32
    %c0_i32_1 = arith.constant 0 : i32
    return %c0_i32, %c0_i32_0 : i32, i32
  }
  func.func @transform_7(%arg0: i32) -> (i32, i32) {
    %c0_i32 = arith.constant 0 : i32
    %c0_i32_0 = arith.constant 0 : i32
    %c0_i32_1 = arith.constant 0 : i32
    return %c0_i32, %c0_i32_0 : i32, i32
  }
  func.func @transform_8(%arg0: i32) -> (i32, i32) {
    %c0_i32 = arith.constant 0 : i32
    %c0_i32_0 = arith.constant 0 : i32
    %c0_i32_1 = arith.constant 0 : i32
    return %c0_i32, %c0_i32_0 : i32, i32
  }
  func.func @transform_9(%arg0: i32) -> (i32, i32) {
    %c0_i32 = arith.constant 0 : i32
    %c0_i32_0 = arith.constant 0 : i32
    %c0_i32_1 = arith.constant 0 : i32
    return %c0_i32, %c0_i32_0 : i32, i32
  }
  func.func @transform_10(%arg0: i32) -> (i32, i32) {
    %c0_i32 = arith.constant 0 : i32
    %c0_i32_0 = arith.constant 0 : i32
    %c0_i32_1 = arith.constant 0 : i32
    return %c0_i32, %c0_i32_0 : i32, i32
  }
  func.func @transform_11(%arg0: i32) -> (i32, i32) {
    %c0_i32 = arith.constant 0 : i32
    %c0_i32_0 = arith.constant 0 : i32
    %c0_i32_1 = arith.constant 0 : i32
    return %c0_i32, %c0_i32_0 : i32, i32
  }
  func.func @transform_12(%arg0: i32) -> (i32, i32) {
    %c0_i32 = arith.constant 0 : i32
    %c0_i32_0 = arith.constant 0 : i32
    %c0_i32_1 = arith.constant 0 : i32
    return %c0_i32, %c0_i32_0 : i32, i32
  }
  func.func @transform_13(%arg0: i32) -> (i32, i32) {
    %c0_i32 = arith.constant 0 : i32
    %c0_i32_0 = arith.constant 0 : i32
    %c0_i32_1 = arith.constant 0 : i32
    return %c0_i32, %c0_i32_0 : i32, i32
  }
  func.func @transform_14(%arg0: i32) -> (i32, i32) {
    %c0_i32 = arith.constant 0 : i32
    %c0_i32_0 = arith.constant 0 : i32
    %c0_i32_1 = arith.constant 0 : i32
    return %c0_i32, %c0_i32_0 : i32, i32
  }
  func.func @transform_15(%arg0: i32) -> (i32, i32) {
    %c0_i32 = arith.constant 0 : i32
    %c0_i32_0 = arith.constant 0 : i32
    return %arg0, %c0_i32 : i32, i32
  }
  func.func @transform_16(%arg0: i32) -> (i32, i32, i32) {
    %c0_i32 = arith.constant 0 : i32
    %c0_i32_0 = arith.constant 0 : i32
    %c0_i32_1 = arith.constant 0 : i32
    return %arg0, %c0_i32, %c0_i32_0 : i32, i32, i32
  }
}

</mosaic_0001>

<llo_original>
// kernel: tpu_custom_call.1
$region0: #{tpu_custom_call.1}
  #allocation0 [shape = 'u32[]', space=smem, size = 0x4, offset = 0x4, fixed_abs, tag = 'smem constant byte address 0x4 - core index']
  #allocation1 [shape = 'u32[144,128]{1,0:T(1,128)}', space=vmem, size = 0x12000, scoped, tag = 'internal scratch']
  #allocation2 [shape = 'f32[1,1]{1,0:T(1,128)S(6)}', space=smem, size = 0x200, scoped, tag = 'scoped memory for tpu_custom_call.1']
  %s0 = inlined_call_operand.vmem [shape: bf16[512,64], index: 0, kind: input, shape index: {}]
  %s1 = inlined_call_operand.vmem [shape: bf16[4096,32], index: 1, kind: input, shape index: {}]
  %s2 = inlined_call_operand.vmem [shape: bf16[4096,32], index: 2, kind: input, shape index: {}]
  %s3 = inlined_call_operand.vmem [shape: bf16[64,512], index: 3, kind: input, shape index: {}]
  %s4 = inlined_call_operand.vmem [shape: bf16[512,64], index: 4, kind: input, shape index: {}]
  %s5 = inlined_call_operand.vmem [shape: bf16[64,32], index: 5, kind: input, shape index: {}]
  %s6 = inlined_call_operand.vmem [shape: bf16[64,32], index: 6, kind: input, shape index: {}]
  %s7 = inlined_call_operand.vmem [shape: f32[1,32], index: 7, kind: input, shape index: {}]
  %s8 = inlined_call_operand.vmem [shape: bf16[32,1], index: 8, kind: input, shape index: {}]
  %s9 = inlined_call_operand.<no memory space> [shape: f32[1,1], index: 9, kind: input, shape index: {}]
  %s10 = inlined_call_operand.vmem [shape: bf16[64,32], index: 10, kind: input, shape index: {}]
  %s11 = inlined_call_operand.vmem [shape: bf16[64,32], index: 11, kind: input, shape index: {}]
  %s12 = inlined_call_operand.vmem [shape: f32[1,32], index: 12, kind: input, shape index: {}]
  %s13 = inlined_call_operand.vmem [shape: bf16[64,32], index: 13, kind: input, shape index: {}]
  %s14 = inlined_call_operand.vmem [shape: f32[1,32], index: 14, kind: input, shape index: {}]
  %s15 = inlined_call_operand.vmem [shape: f32[512,64], index: 15, kind: output, shape index: {0}]
  %s16 = inlined_call_operand.hbm [shape: f32[8,8,32], index: 16, kind: output, shape index: {1}]
  %17 = xla_tuple %s15, %s16
  %s18 = sld [smem:[#allocation0]]
  $region101: #{tpu_custom_call.1} parent=0
    _
  %s20 = ssub.s32 1, %s18
  %s21 = scalar_select 0, %s20, %s18
  %22 = sst [smem:[#allocation2]] %s9
  $region1: #{tpu_custom_call.1} parent=0
    #allocation3 [shape = 'u8[8192]{0}', space=vmem, size = 0x2000, scoped, tag = 'output window, operand 1']
    #allocation4 [shape = 's32[2]{0}', space=sflag, size = 0x8, scoped, tag = 'scoped memory for tpu_custom_call.1']
    %23 = vsyncpa [#allocation4], 0
    %s24 = scalar_lea.sflag [#allocation4], 1
    %25 = vsyncpa %s24, 0
    loop: start=0, step=1, limit=10
    $region2: #{tpu_custom_call.1} parent=1 // loop_pre_header
      _
    $region3: #{tpu_custom_call.1} parent=1 // loop_header
      %s27 = sphi 0, %s31
      %p28 = scmp.ge.s32.totalorder %s27, 10
      %s37 = sphi 0, %s39
      %s40 = sphi 0, %s37
      %s41 = sphi 0, %s40
      %s57 = sphi 0, %s41
      %s63 = sphi 0, %s65
      %s66 = sphi 0, %s63
      %s67 = sphi 0, %s66
      %s83 = sphi 0, %s67
      %s89 = sphi 0, %s91
      %s92 = sphi 0, %s89
      %s93 = sphi 0, %s92
      %s109 = sphi 0, %s93
      %s113 = sphi 0, %s113
      %s115 = sphi 0, %s113
      %s116 = sphi 0, %s115
      %s130 = sphi 0, %s116
      %s134 = sphi 0, %s134
      %s136 = sphi 0, %s134
      %s137 = sphi 0, %s136
      %s151 = sphi 0, %s137
      %s155 = sphi 0, %s155
      %s157 = sphi 0, %s155
      %s158 = sphi 0, %s157
      %s172 = sphi 0, %s158
      %s176 = sphi 0, %s176
      %s178 = sphi 0, %s176
      %s179 = sphi 0, %s178
      %s193 = sphi 0, %s179
      %s197 = sphi 0, %s197
      %s199 = sphi 0, %s197
      %s200 = sphi 0, %s199
      %s214 = sphi 0, %s200
      %s218 = sphi 0, %s218
      %s220 = sphi 0, %s218
      %s221 = sphi 0, %s220
      %s235 = sphi 0, %s221
      %s239 = sphi 0, %s239
      %s241 = sphi 0, %s239
      %s242 = sphi 0, %s241
      %s256 = sphi 0, %s242
      %s260 = sphi 0, %s260
      %s262 = sphi 0, %s260
      %s263 = sphi 0, %s262
      %s277 = sphi 0, %s263
      %s281 = sphi 0, %s281
      %s283 = sphi 0, %s281
      %s284 = sphi 0, %s283
      %s298 = sphi 0, %s284
      %s302 = sphi 0, %s302
      %s304 = sphi 0, %s302
      %s305 = sphi 0, %s304
      %s319 = sphi 0, %s305
      %s323 = sphi 0, %s323
      %s325 = sphi 0, %s323
      %s326 = sphi 0, %s325
      %s340 = sphi 0, %s326
      %s344 = sphi 0, %s344
      %s346 = sphi 0, %s344
      %s347 = sphi 0, %s346
      %s361 = sphi 0, %s347
      %s367 = sphi 0, %s369
      %s370 = sphi 0, %s367
      %s371 = sphi 0, %s370
      %s387 = sphi 0, %s371
      %s393 = sphi 0, %s395
      %s396 = sphi 0, %s393
      %s397 = sphi 0, %s396
      %s413 = sphi 0, %s397
    $region4: #{tpu_custom_call.1} parent=1 // loop_header_branch
      %30 = sbr.rel (%p28) target = $region8
    $region5: #{tpu_custom_call.1} parent=1 // loop_body
      %s32 = ssub.s32 %s27, 1
      %s33 = ssub.s32 %s27, 2
      %s34 = sadd.s32 %s27, 1
      %s35 = ssub.s32 %s27, %s34
      %p36 = scmp.eq.s32.totalorder %s35, 0
      %s38 = sadd.s32 %s37, 1
      %s39 = scalar_select %p36, %s37, %s38
      %p42 = pneg %p36
      %p43 = scmp.eq.s32.totalorder %s27, 7
      %p44 = por %p42, %p43
      %p45 = scmp.ne.s32.totalorder %s37, %s40
      %p46 = scmp.eq.s32.totalorder %s27, 0
      %p47 = por %p45, %p46
      %p48 = scmp.ne.s32.totalorder %s37, %s40
      %p49 = scmp.eq.s32.totalorder %s32, 7
      %p50 = por %p48, %p49
      %p51 = scmp.ne.s32.totalorder %s40, %s41
      %p52 = scmp.eq.s32.totalorder %s32, 0
      %p53 = por %p51, %p52
      %p54 = scmp.ne.s32.totalorder %s40, %s41
      %p55 = scmp.eq.s32.totalorder %s33, 7
      %p56 = por %p54, %p55
      %p58 = scmp.ne.s32.totalorder %s41, %s57
      %p59 = scmp.eq.s32.totalorder %s33, 0
      %p60 = por %p58, %p59
      %s61 = ssub.s32 %s27, %s34
      %p62 = scmp.eq.s32.totalorder %s61, 0
      %s64 = sadd.s32 %s63, 1
      %s65 = scalar_select %p62, %s63, %s64
      %p68 = pneg %p62
      %p69 = scmp.eq.s32.totalorder %s27, 7
      %p70 = por %p68, %p69
      %p71 = scmp.ne.s32.totalorder %s63, %s66
      %p72 = scmp.eq.s32.totalorder %s27, 0
      %p73 = por %p71, %p72
      %p74 = scmp.ne.s32.totalorder %s63, %s66
      %p75 = scmp.eq.s32.totalorder %s32, 7
      %p76 = por %p74, %p75
      %p77 = scmp.ne.s32.totalorder %s66, %s67
      %p78 = scmp.eq.s32.totalorder %s32, 0
      %p79 = por %p77, %p78
      %p80 = scmp.ne.s32.totalorder %s66, %s67
      %p81 = scmp.eq.s32.totalorder %s33, 7
      %p82 = por %p80, %p81
      %p84 = scmp.ne.s32.totalorder %s67, %s83
      %p85 = scmp.eq.s32.totalorder %s33, 0
      %p86 = por %p84, %p85
      %s87 = ssub.s32 %s27, %s34
      %p88 = scmp.eq.s32.totalorder %s87, 0
      %s90 = sadd.s32 %s89, 1
      %s91 = scalar_select %p88, %s89, %s90
      %p94 = pneg %p88
      %p95 = scmp.eq.s32.totalorder %s27, 7
      %p96 = por %p94, %p95
      %p97 = scmp.ne.s32.totalorder %s89, %s92
      %p98 = scmp.eq.s32.totalorder %s27, 0
      %p99 = por %p97, %p98
      %p100 = scmp.ne.s32.totalorder %s89, %s92
      %p101 = scmp.eq.s32.totalorder %s32, 7
      %p102 = por %p100, %p101
      %p103 = scmp.ne.s32.totalorder %s92, %s93
      %p104 = scmp.eq.s32.totalorder %s32, 0
      %p105 = por %p103, %p104
      %p106 = scmp.ne.s32.totalorder %s92, %s93
      %p107 = scmp.eq.s32.totalorder %s33, 7
      %p108 = por %p106, %p107
      %p110 = scmp.ne.s32.totalorder %s93, %s109
      %p111 = scmp.eq.s32.totalorder %s33, 0
      %p112 = por %p110, %p111
      %s114 = sadd.s32 %s113, 1
      %p117 = scmp.eq.s32.totalorder %s27, 7
      %p118 = scmp.ne.s32.totalorder %s113, %s115
      %p119 = scmp.eq.s32.totalorder %s27, 0
      %p120 = por %p118, %p119
      %p121 = scmp.ne.s32.totalorder %s113, %s115
      %p122 = scmp.eq.s32.totalorder %s32, 7
      %p123 = por %p121, %p122
      %p124 = scmp.ne.s32.totalorder %s115, %s116
      %p125 = scmp.eq.s32.totalorder %s32, 0
      %p126 = por %p124, %p125
      %p127 = scmp.ne.s32.totalorder %s115, %s116
      %p128 = scmp.eq.s32.totalorder %s33, 7
      %p129 = por %p127, %p128
      %p131 = scmp.ne.s32.totalorder %s116, %s130
      %p132 = scmp.eq.s32.totalorder %s33, 0
      %p133 = por %p131, %p132
      %s135 = sadd.s32 %s134, 1
      %p138 = scmp.eq.s32.totalorder %s27, 7
      %p139 = scmp.ne.s32.totalorder %s134, %s136
      %p140 = scmp.eq.s32.totalorder %s27, 0
      %p141 = por %p139, %p140
      %p142 = scmp.ne.s32.totalorder %s134, %s136
      %p143 = scmp.eq.s32.totalorder %s32, 7
      %p144 = por %p142, %p143
      %p145 = scmp.ne.s32.totalorder %s136, %s137
      %p146 = scmp.eq.s32.totalorder %s32, 0
      %p147 = por %p145, %p146
      %p148 = scmp.ne.s32.totalorder %s136, %s137
      %p149 = scmp.eq.s32.totalorder %s33, 7
      %p150 = por %p148, %p149
      %p152 = scmp.ne.s32.totalorder %s137, %s151
      %p153 = scmp.eq.s32.totalorder %s33, 0
      %p154 = por %p152, %p153
      %s156 = sadd.s32 %s155, 1
      %p159 = scmp.eq.s32.totalorder %s27, 7
      %p160 = scmp.ne.s32.totalorder %s155, %s157
      %p161 = scmp.eq.s32.totalorder %s27, 0
      %p162 = por %p160, %p161
      %p163 = scmp.ne.s32.totalorder %s155, %s157
      %p164 = scmp.eq.s32.totalorder %s32, 7
      %p165 = por %p163, %p164
      %p166 = scmp.ne.s32.totalorder %s157, %s158
      %p167 = scmp.eq.s32.totalorder %s32, 0
      %p168 = por %p166, %p167
      %p169 = scmp.ne.s32.totalorder %s157, %s158
      %p170 = scmp.eq.s32.totalorder %s33, 7
      %p171 = por %p169, %p170
      %p173 = scmp.ne.s32.totalorder %s158, %s172
      %p174 = scmp.eq.s32.totalorder %s33, 0
      %p175 = por %p173, %p174
      %s177 = sadd.s32 %s176, 1
      %p180 = scmp.eq.s32.totalorder %s27, 7
      %p181 = scmp.ne.s32.totalorder %s176, %s178
      %p182 = scmp.eq.s32.totalorder %s27, 0
      %p183 = por %p181, %p182
      %p184 = scmp.ne.s32.totalorder %s176, %s178
      %p185 = scmp.eq.s32.totalorder %s32, 7
      %p186 = por %p184, %p185
      %p187 = scmp.ne.s32.totalorder %s178, %s179
      %p188 = scmp.eq.s32.totalorder %s32, 0
      %p189 = por %p187, %p188
      %p190 = scmp.ne.s32.totalorder %s178, %s179
      %p191 = scmp.eq.s32.totalorder %s33, 7
      %p192 = por %p190, %p191
      %p194 = scmp.ne.s32.totalorder %s179, %s193
      %p195 = scmp.eq.s32.totalorder %s33, 0
      %p196 = por %p194, %p195
      %s198 = sadd.s32 %s197, 1
      %p201 = scmp.eq.s32.totalorder %s27, 7
      %p202 = scmp.ne.s32.totalorder %s197, %s199
      %p203 = scmp.eq.s32.totalorder %s27, 0
      %p204 = por %p202, %p203
      %p205 = scmp.ne.s32.totalorder %s197, %s199
      %p206 = scmp.eq.s32.totalorder %s32, 7
      %p207 = por %p205, %p206
      %p208 = scmp.ne.s32.totalorder %s199, %s200
      %p209 = scmp.eq.s32.totalorder %s32, 0
      %p210 = por %p208, %p209
      %p211 = scmp.ne.s32.totalorder %s199, %s200
      %p212 = scmp.eq.s32.totalorder %s33, 7
      %p213 = por %p211, %p212
      %p215 = scmp.ne.s32.totalorder %s200, %s214
      %p216 = scmp.eq.s32.totalorder %s33, 0
      %p217 = por %p215, %p216
      %s219 = sadd.s32 %s218, 1
      %p222 = scmp.eq.s32.totalorder %s27, 7
      %p223 = scmp.ne.s32.totalorder %s218, %s220
      %p224 = scmp.eq.s32.totalorder %s27, 0
      %p225 = por %p223, %p224
      %p226 = scmp.ne.s32.totalorder %s218, %s220
      %p227 = scmp.eq.s32.totalorder %s32, 7
      %p228 = por %p226, %p227
      %p229 = scmp.ne.s32.totalorder %s220, %s221
      %p230 = scmp.eq.s32.totalorder %s32, 0
      %p231 = por %p229, %p230
      %p232 = scmp.ne.s32.totalorder %s220, %s221
      %p233 = scmp.eq.s32.totalorder %s33, 7
      %p234 = por %p232, %p233
      %p236 = scmp.ne.s32.totalorder %s221, %s235
      %p237 = scmp.eq.s32.totalorder %s33, 0
      %p238 = por %p236, %p237
      %s240 = sadd.s32 %s239, 1
      %p243 = scmp.eq.s32.totalorder %s27, 7
      %p244 = scmp.ne.s32.totalorder %s239, %s241
      %p245 = scmp.eq.s32.totalorder %s27, 0
      %p246 = por %p244, %p245
      %p247 = scmp.ne.s32.totalorder %s239, %s241
      %p248 = scmp.eq.s32.totalorder %s32, 7
      %p249 = por %p247, %p248
      %p250 = scmp.ne.s32.totalorder %s241, %s242
      %p251 = scmp.eq.s32.totalorder %s32, 0
      %p252 = por %p250, %p251
      %p253 = scmp.ne.s32.totalorder %s241, %s242
      %p254 = scmp.eq.s32.totalorder %s33, 7
      %p255 = por %p253, %p254
      %p257 = scmp.ne.s32.totalorder %s242, %s256
      %p258 = scmp.eq.s32.totalorder %s33, 0
      %p259 = por %p257, %p258
      %s261 = sadd.s32 %s260, 1
      %p264 = scmp.eq.s32.totalorder %s27, 7
      %p265 = scmp.ne.s32.totalorder %s260, %s262
      %p266 = scmp.eq.s32.totalorder %s27, 0
      %p267 = por %p265, %p266
      %p268 = scmp.ne.s32.totalorder %s260, %s262
      %p269 = scmp.eq.s32.totalorder %s32, 7
      %p270 = por %p268, %p269
      %p271 = scmp.ne.s32.totalorder %s262, %s263
      %p272 = scmp.eq.s32.totalorder %s32, 0
      %p273 = por %p271, %p272
      %p274 = scmp.ne.s32.totalorder %s262, %s263
      %p275 = scmp.eq.s32.totalorder %s33, 7
      %p276 = por %p274, %p275
      %p278 = scmp.ne.s32.totalorder %s263, %s277
      %p279 = scmp.eq.s32.totalorder %s33, 0
      %p280 = por %p278, %p279
      %s282 = sadd.s32 %s281, 1
      %p285 = scmp.eq.s32.totalorder %s27, 7
      %p286 = scmp.ne.s32.totalorder %s281, %s283
      %p287 = scmp.eq.s32.totalorder %s27, 0
      %p288 = por %p286, %p287
      %p289 = scmp.ne.s32.totalorder %s281, %s283
      %p290 = scmp.eq.s32.totalorder %s32, 7
      %p291 = por %p289, %p290
      %p292 = scmp.ne.s32.totalorder %s283, %s284
      %p293 = scmp.eq.s32.totalorder %s32, 0
      %p294 = por %p292, %p293
      %p295 = scmp.ne.s32.totalorder %s283, %s284
      %p296 = scmp.eq.s32.totalorder %s33, 7
      %p297 = por %p295, %p296
      %p299 = scmp.ne.s32.totalorder %s284, %s298
      %p300 = scmp.eq.s32.totalorder %s33, 0
      %p301 = por %p299, %p300
      %s303 = sadd.s32 %s302, 1
      %p306 = scmp.eq.s32.totalorder %s27, 7
      %p307 = scmp.ne.s32.totalorder %s302, %s304
      %p308 = scmp.eq.s32.totalorder %s27, 0
      %p309 = por %p307, %p308
      %p310 = scmp.ne.s32.totalorder %s302, %s304
      %p311 = scmp.eq.s32.totalorder %s32, 7
      %p312 = por %p310, %p311
      %p313 = scmp.ne.s32.totalorder %s304, %s305
      %p314 = scmp.eq.s32.totalorder %s32, 0
      %p315 = por %p313, %p314
      %p316 = scmp.ne.s32.totalorder %s304, %s305
      %p317 = scmp.eq.s32.totalorder %s33, 7
      %p318 = por %p316, %p317
      %p320 = scmp.ne.s32.totalorder %s305, %s319
      %p321 = scmp.eq.s32.totalorder %s33, 0
      %p322 = por %p320, %p321
      %s324 = sadd.s32 %s323, 1
      %p327 = scmp.eq.s32.totalorder %s27, 7
      %p328 = scmp.ne.s32.totalorder %s323, %s325
      %p329 = scmp.eq.s32.totalorder %s27, 0
      %p330 = por %p328, %p329
      %p331 = scmp.ne.s32.totalorder %s323, %s325
      %p332 = scmp.eq.s32.totalorder %s32, 7
      %p333 = por %p331, %p332
      %p334 = scmp.ne.s32.totalorder %s325, %s326
      %p335 = scmp.eq.s32.totalorder %s32, 0
      %p336 = por %p334, %p335
      %p337 = scmp.ne.s32.totalorder %s325, %s326
      %p338 = scmp.eq.s32.totalorder %s33, 7
      %p339 = por %p337, %p338
      %p341 = scmp.ne.s32.totalorder %s326, %s340
      %p342 = scmp.eq.s32.totalorder %s33, 0
      %p343 = por %p341, %p342
      %s345 = sadd.s32 %s344, 1
      %p348 = scmp.eq.s32.totalorder %s27, 7
      %p349 = scmp.ne.s32.totalorder %s344, %s346
      %p350 = scmp.eq.s32.totalorder %s27, 0
      %p351 = por %p349, %p350
      %p352 = scmp.ne.s32.totalorder %s344, %s346
      %p353 = scmp.eq.s32.totalorder %s32, 7
      %p354 = por %p352, %p353
      %p355 = scmp.ne.s32.totalorder %s346, %s347
      %p356 = scmp.eq.s32.totalorder %s32, 0
      %p357 = por %p355, %p356
      %p358 = scmp.ne.s32.totalorder %s346, %s347
      %p359 = scmp.eq.s32.totalorder %s33, 7
      %p360 = por %p358, %p359
      %p362 = scmp.ne.s32.totalorder %s347, %s361
      %p363 = scmp.eq.s32.totalorder %s33, 0
      %p364 = por %p362, %p363
      %s365 = ssub.s32 %s27, %s34
      %p366 = scmp.eq.s32.totalorder %s365, 0
      %s368 = sadd.s32 %s367, 1
      %s369 = scalar_select %p366, %s367, %s368
      %p372 = pneg %p366
      %p373 = scmp.eq.s32.totalorder %s27, 7
      %p374 = por %p372, %p373
      %p375 = scmp.ne.s32.totalorder %s367, %s370
      %p376 = scmp.eq.s32.totalorder %s27, 0
      %p377 = por %p375, %p376
      %p378 = scmp.ne.s32.totalorder %s367, %s370
      %p379 = scmp.eq.s32.totalorder %s32, 7
      %p380 = por %p378, %p379
      %p381 = scmp.ne.s32.totalorder %s370, %s371
      %p382 = scmp.eq.s32.totalorder %s32, 0
      %p383 = por %p381, %p382
      %p384 = scmp.ne.s32.totalorder %s370, %s371
      %p385 = scmp.eq.s32.totalorder %s33, 7
      %p386 = por %p384, %p385
      %p388 = scmp.ne.s32.totalorder %s371, %s387
      %p389 = scmp.eq.s32.totalorder %s33, 0
      %p390 = por %p388, %p389
      %s391 = ssub.s32 %s27, %s34
      %p392 = scmp.eq.s32.totalorder %s391, 0
      %s394 = sadd.s32 %s393, 1
      %s395 = scalar_select %p392, %s393, %s394
      %p398 = pneg %p392
      %p399 = scmp.eq.s32.totalorder %s27, 7
      %p400 = por %p398, %p399
      %p401 = scmp.ne.s32.totalorder %s393, %s396
      %p402 = scmp.eq.s32.totalorder %s27, 0
      %p403 = por %p401, %p402
      %p404 = scmp.ne.s32.totalorder %s393, %s396
      %p405 = scmp.eq.s32.totalorder %s32, 7
      %p406 = por %p404, %p405
      %p407 = scmp.ne.s32.totalorder %s396, %s397
      %p408 = scmp.eq.s32.totalorder %s32, 0
      %p409 = por %p407, %p408
      %p410 = scmp.ne.s32.totalorder %s396, %s397
      %p411 = scmp.eq.s32.totalorder %s33, 7
      %p412 = por %p410, %p411
      %p414 = scmp.ne.s32.totalorder %s397, %s413
      %p415 = scmp.eq.s32.totalorder %s33, 0
      %p416 = por %p414, %p415
      %p417 = scmp.le.s32.totalorder 1, %s27
      %p418 = scmp.lt.s32.totalorder %s27, 9
      %p419 = pnand %p417, %p418
      %p420 = pneg %p419
      // Predicated region
      $region9: #{tpu_custom_call.1} parent=5 // pred_check
        _
      $region10: #{tpu_custom_call.1} parent=5 // pred_check_branch
        %422 = sbr.rel (%p419) target = $region12
      $region11: #{tpu_custom_call.1} parent=5 // pred_region
        %s423 = ssub.s32 %s27, 1
        // Predicated region
        $region13: #{tpu_custom_call.1} parent=11 // pred_check
          %p424 = pneg %p126
        $region14: #{tpu_custom_call.1} parent=11 // pred_check_branch
          %426 = sbr.rel (%p424) target = $region16
        $region15: #{tpu_custom_call.1} parent=11 // pred_region
          _
        $region16: #{tpu_custom_call.1} parent=11 // pred_fallthru
          _
        // Predicated region
        $region17: #{tpu_custom_call.1} parent=11 // pred_check
          %p427 = pneg %p147
        $region18: #{tpu_custom_call.1} parent=11 // pred_check_branch
          %429 = sbr.rel (%p427) target = $region20
        $region19: #{tpu_custom_call.1} parent=11 // pred_region
          _
        $region20: #{tpu_custom_call.1} parent=11 // pred_fallthru
          _
        // Predicated region
        $region21: #{tpu_custom_call.1} parent=11 // pred_check
          %p430 = pneg %p168
        $region22: #{tpu_custom_call.1} parent=11 // pred_check_branch
          %432 = sbr.rel (%p430) target = $region24
        $region23: #{tpu_custom_call.1} parent=11 // pred_region
          _
        $region24: #{tpu_custom_call.1} parent=11 // pred_fallthru
          _
        // Predicated region
        $region25: #{tpu_custom_call.1} parent=11 // pred_check
          %p433 = pneg %p189
        $region26: #{tpu_custom_call.1} parent=11 // pred_check_branch
          %435 = sbr.rel (%p433) target = $region28
        $region27: #{tpu_custom_call.1} parent=11 // pred_region
          _
        $region28: #{tpu_custom_call.1} parent=11 // pred_fallthru
          _
        // Predicated region
        $region29: #{tpu_custom_call.1} parent=11 // pred_check
          %p436 = pneg %p210
        $region30: #{tpu_custom_call.1} parent=11 // pred_check_branch
          %438 = sbr.rel (%p436) target = $region32
        $region31: #{tpu_custom_call.1} parent=11 // pred_region
          _
        $region32: #{tpu_custom_call.1} parent=11 // pred_fallthru
          _
        // Predicated region
        $region33: #{tpu_custom_call.1} parent=11 // pred_check
          %p439 = pneg %p231
        $region34: #{tpu_custom_call.1} parent=11 // pred_check_branch
          %441 = sbr.rel (%p439) target = $region36
        $region35: #{tpu_custom_call.1} parent=11 // pred_region
          _
        $region36: #{tpu_custom_call.1} parent=11 // pred_fallthru
          _
        // Predicated region
        $region37: #{tpu_custom_call.1} parent=11 // pred_check
          %p442 = pneg %p252
        $region38: #{tpu_custom_call.1} parent=11 // pred_check_branch
          %444 = sbr.rel (%p442) target = $region40
        $region39: #{tpu_custom_call.1} parent=11 // pred_region
          _
        $region40: #{tpu_custom_call.1} parent=11 // pred_fallthru
          _
        // Predicated region
        $region41: #{tpu_custom_call.1} parent=11 // pred_check
          %p445 = pneg %p273
        $region42: #{tpu_custom_call.1} parent=11 // pred_check_branch
          %447 = sbr.rel (%p445) target = $region44
        $region43: #{tpu_custom_call.1} parent=11 // pred_region
          _
        $region44: #{tpu_custom_call.1} parent=11 // pred_fallthru
          _
        // Predicated region
        $region45: #{tpu_custom_call.1} parent=11 // pred_check
          %p448 = pneg %p294
        $region46: #{tpu_custom_call.1} parent=11 // pred_check_branch
          %450 = sbr.rel (%p448) target = $region48
        $region47: #{tpu_custom_call.1} parent=11 // pred_region
          _
        $region48: #{tpu_custom_call.1} parent=11 // pred_fallthru
          _
        // Predicated region
        $region49: #{tpu_custom_call.1} parent=11 // pred_check
          %p451 = pneg %p315
        $region50: #{tpu_custom_call.1} parent=11 // pred_check_branch
          %453 = sbr.rel (%p451) target = $region52
        $region51: #{tpu_custom_call.1} parent=11 // pred_region
          _
        $region52: #{tpu_custom_call.1} parent=11 // pred_fallthru
          _
        // Predicated region
        $region53: #{tpu_custom_call.1} parent=11 // pred_check
          %p454 = pneg %p336
        $region54: #{tpu_custom_call.1} parent=11 // pred_check_branch
          %456 = sbr.rel (%p454) target = $region56
        $region55: #{tpu_custom_call.1} parent=11 // pred_region
          _
        $region56: #{tpu_custom_call.1} parent=11 // pred_fallthru
          _
        // Predicated region
        $region57: #{tpu_custom_call.1} parent=11 // pred_check
          %p457 = pneg %p357
        $region58: #{tpu_custom_call.1} parent=11 // pred_check_branch
          %459 = sbr.rel (%p457) target = $region60
        $region59: #{tpu_custom_call.1} parent=11 // pred_region
          _
        $region60: #{tpu_custom_call.1} parent=11 // pred_fallthru
          _
      $region12: #{tpu_custom_call.1} parent=5 // pred_fallthru
        _
      %p460 = scmp.lt.s32.totalorder %s27, 8
      // Predicated region
      $region61: #{tpu_custom_call.1} parent=5 // pred_check
        %p461 = pneg %p460
      $region62: #{tpu_custom_call.1} parent=5 // pred_check_branch
        %463 = sbr.rel (%p461) target = $region64
      $region63: #{tpu_custom_call.1} parent=5 // pred_region
        // Predicated region
        $region65: #{tpu_custom_call.1} parent=63 // pred_check
          %p464 = pneg %p47
        $region66: #{tpu_custom_call.1} parent=63 // pred_check_branch
          %466 = sbr.rel (%p464) target = $region68
        $region67: #{tpu_custom_call.1} parent=63 // pred_region
          %s467 = smul.u32 8, %s27
          %p468 = scmp.lt.s32.totalorder %s467, 63
          %s469 = scalar_select %p468, %s467, 63
          %s470 = smul.addr %s469, 4
          %s471 = scalar_lea.vmem %s0, %s470
          %s472 = smul.u32 8, %s27
        $region68: #{tpu_custom_call.1} parent=63 // pred_fallthru
          _
        // Predicated region
        $region69: #{tpu_custom_call.1} parent=63 // pred_check
          %p473 = pneg %p73
        $region70: #{tpu_custom_call.1} parent=63 // pred_check_branch
          %475 = sbr.rel (%p473) target = $region72
        $region71: #{tpu_custom_call.1} parent=63 // pred_region
          %s476 = smul.u32 64, %s27
          %p477 = scmp.lt.s32.totalorder %s476, 511
          %s478 = scalar_select %p477, %s476, 511
          %s479 = smul.addr %s478, 4
          %s480 = scalar_lea.vmem %s1, %s479
          %s481 = smul.u32 64, %s27
        $region72: #{tpu_custom_call.1} parent=63 // pred_fallthru
          _
        // Predicated region
        $region73: #{tpu_custom_call.1} parent=63 // pred_check
          %p482 = pneg %p99
        $region74: #{tpu_custom_call.1} parent=63 // pred_check_branch
          %484 = sbr.rel (%p482) target = $region76
        $region75: #{tpu_custom_call.1} parent=63 // pred_region
          %s485 = smul.u32 64, %s27
          %p486 = scmp.lt.s32.totalorder %s485, 511
          %s487 = scalar_select %p486, %s485, 511
          %s488 = smul.addr %s487, 4
          %s489 = scalar_lea.vmem %s2, %s488
          %s490 = smul.u32 64, %s27
        $region76: #{tpu_custom_call.1} parent=63 // pred_fallthru
          _
      $region64: #{tpu_custom_call.1} parent=5 // pred_fallthru
        _
      %p491 = scmp.le.s32.totalorder 1, %s27
      %p492 = scmp.lt.s32.totalorder %s27, 9
      %p493 = pnand %p491, %p492
      %p494 = pneg %p493
      // Predicated region
      $region77: #{tpu_custom_call.1} parent=5 // pred_check
        _
      $region78: #{tpu_custom_call.1} parent=5 // pred_check_branch
        %496 = sbr.rel (%p493) target = $region80
      $region79: #{tpu_custom_call.1} parent=5 // pred_region
        %s497 = ssub.s32 %s27, 1
        %s498 = smul.u32 8, %s32
        %p499 = scmp.lt.s32.totalorder %s498, 63
        %s500 = scalar_select %p499, %s498, 63
        %s501 = smul.addr %s500, 4
        %s502 = scalar_lea.vmem %s0, %s501
        %p503 = pneg %p53
        %p504 = pneg %p50
        %s505 = smul.u32 64, %s32
        %p506 = scmp.lt.s32.totalorder %s505, 511
        %s507 = scalar_select %p506, %s505, 511
        %s508 = smul.addr %s507, 4
        %s509 = scalar_lea.vmem %s1, %s508
        %p510 = pneg %p79
        %p511 = pneg %p76
        %s512 = smul.u32 64, %s32
        %p513 = scmp.lt.s32.totalorder %s512, 511
        %s514 = scalar_select %p513, %s512, 511
        %s515 = smul.addr %s514, 4
        %s516 = scalar_lea.vmem %s2, %s515
        %p517 = pneg %p105
        %p518 = pneg %p102
        %p519 = pneg %p126
        %p520 = pneg %p123
        %p521 = pneg %p147
        %p522 = pneg %p144
        %p523 = pneg %p168
        %p524 = pneg %p165
        %p525 = pneg %p189
        %p526 = pneg %p186
        %p527 = pneg %p210
        %p528 = pneg %p207
        %p529 = pneg %p231
        %p530 = pneg %p228
        %p531 = pneg %p252
        %p532 = pneg %p249
        %p533 = pneg %p273
        %p534 = pneg %p270
        %p535 = pneg %p294
        %p536 = pneg %p291
        %p537 = pneg %p315
        %p538 = pneg %p312
        %p539 = pneg %p336
        %p540 = pneg %p333
        %p541 = pneg %p357
        %p542 = pneg %p354
        %p543 = pneg %p383
        %p544 = pneg %p380
        %s545 = smul.u32 8, %s32
        %p546 = scmp.lt.s32.totalorder %s545, 63
        %s547 = scalar_select %p546, %s545, 63
        %s548 = smul.addr %s547, 8
        %s549 = scalar_lea.vmem %s15, %s548
        %p550 = pneg %p409
        %p551 = pneg %p406
        %s552 = sand.u32 %s396, 1
        %s553 = scalar_lea.sflag [#allocation4], %s552
        %s554 = sand.u32 %s396, 1
        %s555 = smul.addr %s554, 8
        %s556 = scalar_lea.vmem [#allocation3], %s555
        %s557 = smul.u32 8, %s32
        %p558 = scmp.lt.s32.totalorder %s557, 63
        %s559 = scalar_select %p558, %s557, 63
        %s560 = smul.addr %s559, 4
        %s561 = scalar_lea.vmem %s0, %s560
        %s562 = smul.u32 8, %s32
        %s563 = smul.u32 64, %s32
        %p564 = scmp.lt.s32.totalorder %s563, 511
        %s565 = scalar_select %p564, %s563, 511
        %s566 = smul.addr %s565, 4
        %s567 = scalar_lea.vmem %s1, %s566
        %s568 = smul.u32 64, %s32
        %s569 = smul.u32 64, %s32
        %p570 = scmp.lt.s32.totalorder %s569, 511
        %s571 = scalar_select %p570, %s569, 511
        %s572 = smul.addr %s571, 4
        %s573 = scalar_lea.vmem %s2, %s572
        %s574 = smul.u32 64, %s32
        %s575 = smul.u32 8, %s32
        %p576 = scmp.lt.s32.totalorder %s575, 63
        %s577 = scalar_select %p576, %s575, 63
        %s578 = smul.addr %s577, 8
        %s579 = scalar_lea.vmem %s15, %s578
        %s580 = smul.u32 8, %s32
        %v582 = vld [vmem:[%s561] sm:$0xf]
        %v583 = vld [vmem:[%s561 + $0x4] sm:$0xf]
        %v584 = vld [vmem:[%s561 + $0x8] sm:$0xf]
        %v585 = vld [vmem:[%s561 + $0xc] sm:$0xf]
        %v586 = vld [vmem:[%s561 + $0x10] sm:$0xf]
        %v587 = vld [vmem:[%s561 + $0x14] sm:$0xf]
        %v588 = vld [vmem:[%s561 + $0x18] sm:$0xf]
        %v589 = vld [vmem:[%s561 + $0x1c] sm:$0xf]
        %v590 = vld [vmem:[%s567] sm:$0xf]
        %v591 = vld [vmem:[%s567 + $0x4] sm:$0xf]
        %v592 = vld [vmem:[%s567 + $0x8] sm:$0xf]
        %v593 = vld [vmem:[%s567 + $0xc] sm:$0xf]
        %v594 = vld [vmem:[%s567 + $0x10] sm:$0xf]
        %v595 = vld [vmem:[%s567 + $0x14] sm:$0xf]
        %v596 = vld [vmem:[%s567 + $0x18] sm:$0xf]
        %v597 = vld [vmem:[%s567 + $0x1c] sm:$0xf]
        %v598 = vld [vmem:[%s567 + $0x20] sm:$0xf]
        %v599 = vld [vmem:[%s567 + $0x24] sm:$0xf]
        %v600 = vld [vmem:[%s567 + $0x28] sm:$0xf]
        %v601 = vld [vmem:[%s567 + $0x2c] sm:$0xf]
        %v602 = vld [vmem:[%s567 + $0x30] sm:$0xf]
        %v603 = vld [vmem:[%s567 + $0x34] sm:$0xf]
        %v604 = vld [vmem:[%s567 + $0x38] sm:$0xf]
        %v605 = vld [vmem:[%s567 + $0x3c] sm:$0xf]
        %v606 = vld [vmem:[%s567 + $0x40] sm:$0xf]
        %v607 = vld [vmem:[%s567 + $0x44] sm:$0xf]
        %v608 = vld [vmem:[%s567 + $0x48] sm:$0xf]
        %v609 = vld [vmem:[%s567 + $0x4c] sm:$0xf]
        %v610 = vld [vmem:[%s567 + $0x50] sm:$0xf]
        %v611 = vld [vmem:[%s567 + $0x54] sm:$0xf]
        %v612 = vld [vmem:[%s567 + $0x58] sm:$0xf]
        %v613 = vld [vmem:[%s567 + $0x5c] sm:$0xf]
        %v614 = vld [vmem:[%s567 + $0x60] sm:$0xf]
        %v615 = vld [vmem:[%s567 + $0x64] sm:$0xf]
        %v616 = vld [vmem:[%s567 + $0x68] sm:$0xf]
        %v617 = vld [vmem:[%s567 + $0x6c] sm:$0xf]
        %v618 = vld [vmem:[%s567 + $0x70] sm:$0xf]
        %v619 = vld [vmem:[%s567 + $0x74] sm:$0xf]
        %v620 = vld [vmem:[%s567 + $0x78] sm:$0xf]
        %v621 = vld [vmem:[%s567 + $0x7c] sm:$0xf]
        %v622 = vld [vmem:[%s567 + $0x80] sm:$0xf]
        %v623 = vld [vmem:[%s567 + $0x84] sm:$0xf]
        %v624 = vld [vmem:[%s567 + $0x88] sm:$0xf]
        %v625 = vld [vmem:[%s567 + $0x8c] sm:$0xf]
        %v626 = vld [vmem:[%s567 + $0x90] sm:$0xf]
        %v627 = vld [vmem:[%s567 + $0x94] sm:$0xf]
        %v628 = vld [vmem:[%s567 + $0x98] sm:$0xf]
        %v629 = vld [vmem:[%s567 + $0x9c] sm:$0xf]
        %v630 = vld [vmem:[%s567 + $0xa0] sm:$0xf]
        %v631 = vld [vmem:[%s567 + $0xa4] sm:$0xf]
        %v632 = vld [vmem:[%s567 + $0xa8] sm:$0xf]
        %v633 = vld [vmem:[%s567 + $0xac] sm:$0xf]
        %v634 = vld [vmem:[%s567 + $0xb0] sm:$0xf]
        %v635 = vld [vmem:[%s567 + $0xb4] sm:$0xf]
        %v636 = vld [vmem:[%s567 + $0xb8] sm:$0xf]
        %v637 = vld [vmem:[%s567 + $0xbc] sm:$0xf]
        %v638 = vld [vmem:[%s567 + $0xc0] sm:$0xf]
        %v639 = vld [vmem:[%s567 + $0xc4] sm:$0xf]
        %v640 = vld [vmem:[%s567 + $0xc8] sm:$0xf]
        %v641 = vld [vmem:[%s567 + $0xcc] sm:$0xf]
        %v642 = vld [vmem:[%s567 + $0xd0] sm:$0xf]
        %v643 = vld [vmem:[%s567 + $0xd4] sm:$0xf]
        %v644 = vld [vmem:[%s567 + $0xd8] sm:$0xf]
        %v645 = vld [vmem:[%s567 + $0xdc] sm:$0xf]
        %v646 = vld [vmem:[%s567 + $0xe0] sm:$0xf]
        %v647 = vld [vmem:[%s567 + $0xe4] sm:$0xf]
        %v648 = vld [vmem:[%s567 + $0xe8] sm:$0xf]
        %v649 = vld [vmem:[%s567 + $0xec] sm:$0xf]
        %v650 = vld [vmem:[%s567 + $0xf0] sm:$0xf]
        %v651 = vld [vmem:[%s567 + $0xf4] sm:$0xf]
        %v652 = vld [vmem:[%s567 + $0xf8] sm:$0xf]
        %v653 = vld [vmem:[%s567 + $0xfc] sm:$0xf]
        %v654 = vld [vmem:[%s573] sm:$0xf]
        %v655 = vld [vmem:[%s573 + $0x4] sm:$0xf]
        %v656 = vld [vmem:[%s573 + $0x8] sm:$0xf]
        %v657 = vld [vmem:[%s573 + $0xc] sm:$0xf]
        %v658 = vld [vmem:[%s573 + $0x10] sm:$0xf]
        %v659 = vld [vmem:[%s573 + $0x14] sm:$0xf]
        %v660 = vld [vmem:[%s573 + $0x18] sm:$0xf]
        %v661 = vld [vmem:[%s573 + $0x1c] sm:$0xf]
        %v662 = vld [vmem:[%s573 + $0x20] sm:$0xf]
        %v663 = vld [vmem:[%s573 + $0x24] sm:$0xf]
        %v664 = vld [vmem:[%s573 + $0x28] sm:$0xf]
        %v665 = vld [vmem:[%s573 + $0x2c] sm:$0xf]
        %v666 = vld [vmem:[%s573 + $0x30] sm:$0xf]
        %v667 = vld [vmem:[%s573 + $0x34] sm:$0xf]
        %v668 = vld [vmem:[%s573 + $0x38] sm:$0xf]
        %v669 = vld [vmem:[%s573 + $0x3c] sm:$0xf]
        %v670 = vld [vmem:[%s573 + $0x40] sm:$0xf]
        %v671 = vld [vmem:[%s573 + $0x44] sm:$0xf]
        %v672 = vld [vmem:[%s573 + $0x48] sm:$0xf]
        %v673 = vld [vmem:[%s573 + $0x4c] sm:$0xf]
        %v674 = vld [vmem:[%s573 + $0x50] sm:$0xf]
        %v675 = vld [vmem:[%s573 + $0x54] sm:$0xf]
        %v676 = vld [vmem:[%s573 + $0x58] sm:$0xf]
        %v677 = vld [vmem:[%s573 + $0x5c] sm:$0xf]
        %v678 = vld [vmem:[%s573 + $0x60] sm:$0xf]
        %v679 = vld [vmem:[%s573 + $0x64] sm:$0xf]
        %v680 = vld [vmem:[%s573 + $0x68] sm:$0xf]
        %v681 = vld [vmem:[%s573 + $0x6c] sm:$0xf]
        %v682 = vld [vmem:[%s573 + $0x70] sm:$0xf]
        %v683 = vld [vmem:[%s573 + $0x74] sm:$0xf]
        %v684 = vld [vmem:[%s573 + $0x78] sm:$0xf]
        %v685 = vld [vmem:[%s573 + $0x7c] sm:$0xf]
        %v686 = vld [vmem:[%s573 + $0x80] sm:$0xf]
        %v687 = vld [vmem:[%s573 + $0x84] sm:$0xf]
        %v688 = vld [vmem:[%s573 + $0x88] sm:$0xf]
        %v689 = vld [vmem:[%s573 + $0x8c] sm:$0xf]
        %v690 = vld [vmem:[%s573 + $0x90] sm:$0xf]
        %v691 = vld [vmem:[%s573 + $0x94] sm:$0xf]
        %v692 = vld [vmem:[%s573 + $0x98] sm:$0xf]
        %v693 = vld [vmem:[%s573 + $0x9c] sm:$0xf]
        %v694 = vld [vmem:[%s573 + $0xa0] sm:$0xf]
        %v695 = vld [vmem:[%s573 + $0xa4] sm:$0xf]
        %v696 = vld [vmem:[%s573 + $0xa8] sm:$0xf]
        %v697 = vld [vmem:[%s573 + $0xac] sm:$0xf]
        %v698 = vld [vmem:[%s573 + $0xb0] sm:$0xf]
        %v699 = vld [vmem:[%s573 + $0xb4] sm:$0xf]
        %v700 = vld [vmem:[%s573 + $0xb8] sm:$0xf]
        %v701 = vld [vmem:[%s573 + $0xbc] sm:$0xf]
        %v702 = vld [vmem:[%s573 + $0xc0] sm:$0xf]
        %v703 = vld [vmem:[%s573 + $0xc4] sm:$0xf]
        %v704 = vld [vmem:[%s573 + $0xc8] sm:$0xf]
        %v705 = vld [vmem:[%s573 + $0xcc] sm:$0xf]
        %v706 = vld [vmem:[%s573 + $0xd0] sm:$0xf]
        %v707 = vld [vmem:[%s573 + $0xd4] sm:$0xf]
        %v708 = vld [vmem:[%s573 + $0xd8] sm:$0xf]
        %v709 = vld [vmem:[%s573 + $0xdc] sm:$0xf]
        %v710 = vld [vmem:[%s573 + $0xe0] sm:$0xf]
        %v711 = vld [vmem:[%s573 + $0xe4] sm:$0xf]
        %v712 = vld [vmem:[%s573 + $0xe8] sm:$0xf]
        %v713 = vld [vmem:[%s573 + $0xec] sm:$0xf]
        %v714 = vld [vmem:[%s573 + $0xf0] sm:$0xf]
        %v715 = vld [vmem:[%s573 + $0xf4] sm:$0xf]
        %v716 = vld [vmem:[%s573 + $0xf8] sm:$0xf]
        %v717 = vld [vmem:[%s573 + $0xfc] sm:$0xf]
        %v782 = vunpack.c.l.b16 %v590
        %v783 = vunpack.c.l.b16 %v591
        %v784 = vunpack.c.l.b16 %v592
        %v785 = vunpack.c.l.b16 %v593
        %v786 = vunpack.c.l.b16 %v594
        %v787 = vunpack.c.l.b16 %v595
        %v788 = vunpack.c.l.b16 %v596
        %v789 = vunpack.c.l.b16 %v597
        %v790 = vunpack.c.l.b16 %v598
        %v791 = vunpack.c.l.b16 %v599
        %v792 = vunpack.c.l.b16 %v600
        %v793 = vunpack.c.l.b16 %v601
        %v794 = vunpack.c.l.b16 %v602
        %v795 = vunpack.c.l.b16 %v603
        %v796 = vunpack.c.l.b16 %v604
        %v797 = vunpack.c.l.b16 %v605
        %v798 = vunpack.c.l.b16 %v606
        %v799 = vunpack.c.l.b16 %v607
        %v800 = vunpack.c.l.b16 %v608
        %v801 = vunpack.c.l.b16 %v609
        %v802 = vunpack.c.l.b16 %v610
        %v803 = vunpack.c.l.b16 %v611
        %v804 = vunpack.c.l.b16 %v612
        %v805 = vunpack.c.l.b16 %v613
        %v806 = vunpack.c.l.b16 %v614
        %v807 = vunpack.c.l.b16 %v615
        %v808 = vunpack.c.l.b16 %v616
        %v809 = vunpack.c.l.b16 %v617
        %v810 = vunpack.c.l.b16 %v618
        %v811 = vunpack.c.l.b16 %v619
        %v812 = vunpack.c.l.b16 %v620
        %v813 = vunpack.c.l.b16 %v621
        %v814 = vunpack.c.l.b16 %v622
        %v815 = vunpack.c.l.b16 %v623
        %v816 = vunpack.c.l.b16 %v624
        %v817 = vunpack.c.l.b16 %v625
        %v818 = vunpack.c.l.b16 %v626
        %v819 = vunpack.c.l.b16 %v627
        %v820 = vunpack.c.l.b16 %v628
        %v821 = vunpack.c.l.b16 %v629
        %v822 = vunpack.c.l.b16 %v630
        %v823 = vunpack.c.l.b16 %v631
        %v824 = vunpack.c.l.b16 %v632
        %v825 = vunpack.c.l.b16 %v633
        %v826 = vunpack.c.l.b16 %v634
        %v827 = vunpack.c.l.b16 %v635
        %v828 = vunpack.c.l.b16 %v636
        %v829 = vunpack.c.l.b16 %v637
        %v830 = vunpack.c.l.b16 %v638
        %v831 = vunpack.c.l.b16 %v639
        %v832 = vunpack.c.l.b16 %v640
        %v833 = vunpack.c.l.b16 %v641
        %v834 = vunpack.c.l.b16 %v642
        %v835 = vunpack.c.l.b16 %v643
        %v836 = vunpack.c.l.b16 %v644
        %v837 = vunpack.c.l.b16 %v645
        %v838 = vunpack.c.l.b16 %v646
        %v839 = vunpack.c.l.b16 %v647
        %v840 = vunpack.c.l.b16 %v648
        %v841 = vunpack.c.l.b16 %v649
        %v842 = vunpack.c.l.b16 %v650
        %v843 = vunpack.c.l.b16 %v651
        %v844 = vunpack.c.l.b16 %v652
        %v845 = vunpack.c.l.b16 %v653
        %v846 = vpack.c.b16 %v783, %v782
        %v847 = vpack.c.b16 %v785, %v784
        %v848 = vpack.c.b16 %v787, %v786
        %v849 = vpack.c.b16 %v789, %v788
        %v850 = vpack.c.b16 %v791, %v790
        %v851 = vpack.c.b16 %v793, %v792
        %v852 = vpack.c.b16 %v795, %v794
        %v853 = vpack.c.b16 %v797, %v796
        %v854 = vpack.c.b16 %v799, %v798
        %v855 = vpack.c.b16 %v801, %v800
        %v856 = vpack.c.b16 %v803, %v802
        %v857 = vpack.c.b16 %v805, %v804
        %v858 = vpack.c.b16 %v807, %v806
        %v859 = vpack.c.b16 %v809, %v808
        %v860 = vpack.c.b16 %v811, %v810
        %v861 = vpack.c.b16 %v813, %v812
        %v862 = vpack.c.b16 %v815, %v814
        %v863 = vpack.c.b16 %v817, %v816
        %v864 = vpack.c.b16 %v819, %v818
        %v865 = vpack.c.b16 %v821, %v820
        %v866 = vpack.c.b16 %v823, %v822
        %v867 = vpack.c.b16 %v825, %v824
        %v868 = vpack.c.b16 %v827, %v826
        %v869 = vpack.c.b16 %v829, %v828
        %v870 = vpack.c.b16 %v831, %v830
        %v871 = vpack.c.b16 %v833, %v832
        %v872 = vpack.c.b16 %v835, %v834
        %v873 = vpack.c.b16 %v837, %v836
        %v874 = vpack.c.b16 %v839, %v838
        %v875 = vpack.c.b16 %v841, %v840
        %v876 = vpack.c.b16 %v843, %v842
        %v877 = vpack.c.b16 %v845, %v844
        %v942 = vunpack.c.l.b16 %v654
        %v943 = vunpack.c.l.b16 %v655
        %v944 = vunpack.c.l.b16 %v656
        %v945 = vunpack.c.l.b16 %v657
        %v946 = vunpack.c.l.b16 %v658
        %v947 = vunpack.c.l.b16 %v659
        %v948 = vunpack.c.l.b16 %v660
        %v949 = vunpack.c.l.b16 %v661
        %v950 = vunpack.c.l.b16 %v662
        %v951 = vunpack.c.l.b16 %v663
        %v952 = vunpack.c.l.b16 %v664
        %v953 = vunpack.c.l.b16 %v665
        %v954 = vunpack.c.l.b16 %v666
        %v955 = vunpack.c.l.b16 %v667
        %v956 = vunpack.c.l.b16 %v668
        %v957 = vunpack.c.l.b16 %v669
        %v958 = vunpack.c.l.b16 %v670
        %v959 = vunpack.c.l.b16 %v671
        %v960 = vunpack.c.l.b16 %v672
        %v961 = vunpack.c.l.b16 %v673
        %v962 = vunpack.c.l.b16 %v674
        %v963 = vunpack.c.l.b16 %v675
        %v964 = vunpack.c.l.b16 %v676
        %v965 = vunpack.c.l.b16 %v677
        %v966 = vunpack.c.l.b16 %v678
        %v967 = vunpack.c.l.b16 %v679
        %v968 = vunpack.c.l.b16 %v680
        %v969 = vunpack.c.l.b16 %v681
        %v970 = vunpack.c.l.b16 %v682
        %v971 = vunpack.c.l.b16 %v683
        %v972 = vunpack.c.l.b16 %v684
        %v973 = vunpack.c.l.b16 %v685
        %v974 = vunpack.c.l.b16 %v686
        %v975 = vunpack.c.l.b16 %v687
        %v976 = vunpack.c.l.b16 %v688
        %v977 = vunpack.c.l.b16 %v689
        %v978 = vunpack.c.l.b16 %v690
        %v979 = vunpack.c.l.b16 %v691
        %v980 = vunpack.c.l.b16 %v692
        %v981 = vunpack.c.l.b16 %v693
        %v982 = vunpack.c.l.b16 %v694
        %v983 = vunpack.c.l.b16 %v695
        %v984 = vunpack.c.l.b16 %v696
        %v985 = vunpack.c.l.b16 %v697
        %v986 = vunpack.c.l.b16 %v698
        %v987 = vunpack.c.l.b16 %v699
        %v988 = vunpack.c.l.b16 %v700
        %v989 = vunpack.c.l.b16 %v701
        %v990 = vunpack.c.l.b16 %v702
        %v991 = vunpack.c.l.b16 %v703
        %v992 = vunpack.c.l.b16 %v704
        %v993 = vunpack.c.l.b16 %v705
        %v994 = vunpack.c.l.b16 %v706
        %v995 = vunpack.c.l.b16 %v707
        %v996 = vunpack.c.l.b16 %v708
        %v997 = vunpack.c.l.b16 %v709
        %v998 = vunpack.c.l.b16 %v710
        %v999 = vunpack.c.l.b16 %v711
        %v1000 = vunpack.c.l.b16 %v712
        %v1001 = vunpack.c.l.b16 %v713
        %v1002 = vunpack.c.l.b16 %v714
        %v1003 = vunpack.c.l.b16 %v715
        %v1004 = vunpack.c.l.b16 %v716
        %v1005 = vunpack.c.l.b16 %v717
        %v1006 = vpack.c.b16 %v943, %v942
        %v1007 = vpack.c.b16 %v945, %v944
        %v1008 = vpack.c.b16 %v947, %v946
        %v1009 = vpack.c.b16 %v949, %v948
        %v1010 = vpack.c.b16 %v951, %v950
        %v1011 = vpack.c.b16 %v953, %v952
        %v1012 = vpack.c.b16 %v955, %v954
        %v1013 = vpack.c.b16 %v957, %v956
        %v1014 = vpack.c.b16 %v959, %v958
        %v1015 = vpack.c.b16 %v961, %v960
        %v1016 = vpack.c.b16 %v963, %v962
        %v1017 = vpack.c.b16 %v965, %v964
        %v1018 = vpack.c.b16 %v967, %v966
        %v1019 = vpack.c.b16 %v969, %v968
        %v1020 = vpack.c.b16 %v971, %v970
        %v1021 = vpack.c.b16 %v973, %v972
        %v1022 = vpack.c.b16 %v975, %v974
        %v1023 = vpack.c.b16 %v977, %v976
        %v1024 = vpack.c.b16 %v979, %v978
        %v1025 = vpack.c.b16 %v981, %v980
        %v1026 = vpack.c.b16 %v983, %v982
        %v1027 = vpack.c.b16 %v985, %v984
        %v1028 = vpack.c.b16 %v987, %v986
        %v1029 = vpack.c.b16 %v989, %v988
        %v1030 = vpack.c.b16 %v991, %v990
        %v1031 = vpack.c.b16 %v993, %v992
        %v1032 = vpack.c.b16 %v995, %v994
        %v1033 = vpack.c.b16 %v997, %v996
        %v1034 = vpack.c.b16 %v999, %v998
        %v1035 = vpack.c.b16 %v1001, %v1000
        %v1036 = vpack.c.b16 %v1003, %v1002
        %v1037 = vpack.c.b16 %v1005, %v1004
        %1038 = vrot.lane.b32.xlu0 %v1006, 32
        %v1039 = vpop.permute.xlu0 %1038
        %1040 = vrot.lane.b32.xlu0 %v1007, 32
        %v1041 = vpop.permute.xlu0 %1040
        %1042 = vrot.lane.b32.xlu0 %v1008, 32
        %v1043 = vpop.permute.xlu0 %1042
        %1044 = vrot.lane.b32.xlu0 %v1009, 32
        %v1045 = vpop.permute.xlu0 %1044
        %1046 = vrot.lane.b32.xlu0 %v1010, 32
        %v1047 = vpop.permute.xlu0 %1046
        %1048 = vrot.lane.b32.xlu0 %v1011, 32
        %v1049 = vpop.permute.xlu0 %1048
        %1050 = vrot.lane.b32.xlu0 %v1012, 32
        %v1051 = vpop.permute.xlu0 %1050
        %1052 = vrot.lane.b32.xlu0 %v1013, 32
        %v1053 = vpop.permute.xlu0 %1052
        %1054 = vrot.lane.b32.xlu0 %v1014, 32
        %v1055 = vpop.permute.xlu0 %1054
        %1056 = vrot.lane.b32.xlu0 %v1015, 32
        %v1057 = vpop.permute.xlu0 %1056
        %1058 = vrot.lane.b32.xlu0 %v1016, 32
        %v1059 = vpop.permute.xlu0 %1058
        %1060 = vrot.lane.b32.xlu0 %v1017, 32
        %v1061 = vpop.permute.xlu0 %1060
        %1062 = vrot.lane.b32.xlu0 %v1018, 32
        %v1063 = vpop.permute.xlu0 %1062
        %1064 = vrot.lane.b32.xlu0 %v1019, 32
        %v1065 = vpop.permute.xlu0 %1064
        %1066 = vrot.lane.b32.xlu0 %v1020, 32
        %v1067 = vpop.permute.xlu0 %1066
        %1068 = vrot.lane.b32.xlu0 %v1021, 32
        %v1069 = vpop.permute.xlu0 %1068
        %1070 = vrot.lane.b32.xlu0 %v1022, 32
        %v1071 = vpop.permute.xlu0 %1070
        %1072 = vrot.lane.b32.xlu0 %v1023, 32
        %v1073 = vpop.permute.xlu0 %1072
        %1074 = vrot.lane.b32.xlu0 %v1024, 32
        %v1075 = vpop.permute.xlu0 %1074
        %1076 = vrot.lane.b32.xlu0 %v1025, 32
        %v1077 = vpop.permute.xlu0 %1076
        %1078 = vrot.lane.b32.xlu0 %v1026, 32
        %v1079 = vpop.permute.xlu0 %1078
        %1080 = vrot.lane.b32.xlu0 %v1027, 32
        %v1081 = vpop.permute.xlu0 %1080
        %1082 = vrot.lane.b32.xlu0 %v1028, 32
        %v1083 = vpop.permute.xlu0 %1082
        %1084 = vrot.lane.b32.xlu0 %v1029, 32
        %v1085 = vpop.permute.xlu0 %1084
        %1086 = vrot.lane.b32.xlu0 %v1030, 32
        %v1087 = vpop.permute.xlu0 %1086
        %1088 = vrot.lane.b32.xlu0 %v1031, 32
        %v1089 = vpop.permute.xlu0 %1088
        %1090 = vrot.lane.b32.xlu0 %v1032, 32
        %v1091 = vpop.permute.xlu0 %1090
        %1092 = vrot.lane.b32.xlu0 %v1033, 32
        %v1093 = vpop.permute.xlu0 %1092
        %1094 = vrot.lane.b32.xlu0 %v1034, 32
        %v1095 = vpop.permute.xlu0 %1094
        %1096 = vrot.lane.b32.xlu0 %v1035, 32
        %v1097 = vpop.permute.xlu0 %1096
        %1098 = vrot.lane.b32.xlu0 %v1036, 32
        %v1099 = vpop.permute.xlu0 %1098
        %1100 = vrot.lane.b32.xlu0 %v1037, 32
        %v1101 = vpop.permute.xlu0 %1100
        %vm1102 = vcmask 261120
        %v1105 = vsel %vm1102, %v846, %v1039
        %v1109 = vsel %vm1102, %v847, %v1041
        %v1113 = vsel %vm1102, %v848, %v1043
        %v1117 = vsel %vm1102, %v849, %v1045
        %v1121 = vsel %vm1102, %v850, %v1047
        %v1125 = vsel %vm1102, %v851, %v1049
        %v1129 = vsel %vm1102, %v852, %v1051
        %v1133 = vsel %vm1102, %v853, %v1053
        %v1137 = vsel %vm1102, %v854, %v1055
        %v1141 = vsel %vm1102, %v855, %v1057
        %v1145 = vsel %vm1102, %v856, %v1059
        %v1149 = vsel %vm1102, %v857, %v1061
        %v1153 = vsel %vm1102, %v858, %v1063
        %v1157 = vsel %vm1102, %v859, %v1065
        %v1161 = vsel %vm1102, %v860, %v1067
        %v1165 = vsel %vm1102, %v861, %v1069
        %v1169 = vsel %vm1102, %v862, %v1071
        %v1173 = vsel %vm1102, %v863, %v1073
        %v1177 = vsel %vm1102, %v864, %v1075
        %v1181 = vsel %vm1102, %v865, %v1077
        %v1185 = vsel %vm1102, %v866, %v1079
        %v1189 = vsel %vm1102, %v867, %v1081
        %v1193 = vsel %vm1102, %v868, %v1083
        %v1197 = vsel %vm1102, %v869, %v1085
        %v1201 = vsel %vm1102, %v870, %v1087
        %v1205 = vsel %vm1102, %v871, %v1089
        %v1209 = vsel %vm1102, %v872, %v1091
        %v1213 = vsel %vm1102, %v873, %v1093
        %v1217 = vsel %vm1102, %v874, %v1095
        %v1221 = vsel %vm1102, %v875, %v1097
        %v1225 = vsel %vm1102, %v876, %v1099
        %v1229 = vsel %vm1102, %v877, %v1101
        %v1231 = vld [vmem:[%s5] sm:$0xf]
        %v1232 = vld [vmem:[%s5 + $0x4] sm:$0xf]
        %v1233 = vld [vmem:[%s5 + $0x8] sm:$0xf]
        %v1234 = vld [vmem:[%s5 + $0xc] sm:$0xf]
        %v1235 = vld [vmem:[%s5 + $0x10] sm:$0xf]
        %v1236 = vld [vmem:[%s5 + $0x14] sm:$0xf]
        %v1237 = vld [vmem:[%s5 + $0x18] sm:$0xf]
        %v1238 = vld [vmem:[%s5 + $0x1c] sm:$0xf]
        %v1239 = vld [vmem:[%s6] sm:$0xf]
        %v1240 = vld [vmem:[%s6 + $0x4] sm:$0xf]
        %v1241 = vld [vmem:[%s6 + $0x8] sm:$0xf]
        %v1242 = vld [vmem:[%s6 + $0xc] sm:$0xf]
        %v1243 = vld [vmem:[%s6 + $0x10] sm:$0xf]
        %v1244 = vld [vmem:[%s6 + $0x14] sm:$0xf]
        %v1245 = vld [vmem:[%s6 + $0x18] sm:$0xf]
        %v1246 = vld [vmem:[%s6 + $0x1c] sm:$0xf]
        %v1255 = vunpack.c.l.b16 %v582
        %v1256 = vunpack.c.l.b16 %v583
        %v1257 = vunpack.c.l.b16 %v584
        %v1258 = vunpack.c.l.b16 %v585
        %v1259 = vunpack.c.l.b16 %v586
        %v1260 = vunpack.c.l.b16 %v587
        %v1261 = vunpack.c.l.b16 %v588
        %v1262 = vunpack.c.l.b16 %v589
        %v1263 = vpack.c.b16 %v1256, %v1255
        %v1264 = vpack.c.b16 %v1258, %v1257
        %v1265 = vpack.c.b16 %v1260, %v1259
        %v1266 = vpack.c.b16 %v1262, %v1261
        %v1275 = vunpack.c.l.b16 %v1239
        %v1276 = vunpack.c.l.b16 %v1240
        %v1277 = vunpack.c.l.b16 %v1241
        %v1278 = vunpack.c.l.b16 %v1242
        %v1279 = vunpack.c.l.b16 %v1243
        %v1280 = vunpack.c.l.b16 %v1244
        %v1281 = vunpack.c.l.b16 %v1245
        %v1282 = vunpack.c.l.b16 %v1246
        %v1283 = vpack.c.b16 %v1276, %v1275
        %v1284 = vpack.c.b16 %v1278, %v1277
        %v1285 = vpack.c.b16 %v1280, %v1279
        %v1286 = vpack.c.b16 %v1282, %v1281
        %vm1291 = vcmask 523264
        %v1293 = vsel %vm1291, %v1263, 0
        %v1296 = vsel %vm1291, %v1264, 0
        %v1299 = vsel %vm1291, %v1265, 0
        %v1302 = vsel %vm1291, %v1266, 0
        %1304 = vmatprep.subr.bf16.mxu0 0
        %1305 = vmatpush1.bf16.msra.mxu0 %v1283
        %1306 = vmatprep.subr.bf16.mxu0 0
        %1307 = vmatpush1.bf16.msra.mxu0 %v1284
        %1308 = vmatprep.subr.bf16.mxu0 0
        %1309 = vmatpush1.bf16.msra.mxu0 %v1285
        %1310 = vmatprep.subr.bf16.mxu0 0
        %1311 = vmatpush1.bf16.msra.mxu0 %v1286
        %1312 = vmatprep.subr.bf16.mxu0 0
        %1313 = vmatpush1.bf16.msra.mxu0 0
        %1314 = vmatprep.subr.bf16.mxu0 0
        %1315 = vmatpush1.bf16.msra.mxu0 0
        %1316 = vmatprep.subr.bf16.mxu0 0
        %1317 = vmatpush1.bf16.msra.mxu0 0
        %1318 = vmatprep.subr.bf16.mxu0 0
        %1319 = vmatpush1.bf16.msra.mxu0 0
        %1320 = vmatprep.subr.bf16.mxu0 0
        %1321 = vmatpush1.bf16.msra.mxu0 0
        %1322 = vmatprep.subr.bf16.mxu0 0
        %1323 = vmatpush1.bf16.msra.mxu0 0
        %1324 = vmatprep.subr.bf16.mxu0 0
        %1325 = vmatpush1.bf16.msra.mxu0 0
        %1326 = vmatprep.subr.bf16.mxu0 0
        %1327 = vmatpush1.bf16.msra.mxu0 0
        %1328 = vmatprep.subr.bf16.mxu0 0
        %1329 = vmatpush1.bf16.msra.mxu0 0
        %1330 = vmatprep.subr.bf16.mxu0 0
        %1331 = vmatpush1.bf16.msra.mxu0 0
        %1332 = vmatprep.subr.bf16.mxu0 0
        %1333 = vmatpush1.bf16.msra.mxu0 0
        %1334 = vmatprep.subr.bf16.mxu0 0
        %1335 = vmatpush1.bf16.msra.mxu0 0
        %1336 = vmatprep.mubr.bf16.mxu0 0
        %1337 = vmatmul.mubr.bf16.gmra.mrb[0].mxu0 %v1293
        %v1338 = vpop.f32.mrb[0].mxu0
        %v1339 = vadd.f32 0.0, %v1338
        %v1340 = vpop.f32.mrb[0].mxu0
        %v1341 = vpop.f32.mrb[0].mxu0
        %v1342 = vadd.f32 0.0, %v1341
        %v1343 = vpop.f32.mrb[0].mxu0
        %1344 = vmatprep.mubr.bf16.mxu0 0
        %1345 = vmatmul.mubr.bf16.gmra.mrb[0].mxu0 %v1296
        %v1346 = vpop.f32.mrb[0].mxu0
        %v1347 = vadd.f32 0.0, %v1346
        %v1348 = vpop.f32.mrb[0].mxu0
        %v1349 = vpop.f32.mrb[0].mxu0
        %v1350 = vadd.f32 0.0, %v1349
        %v1351 = vpop.f32.mrb[0].mxu0
        %1352 = vmatprep.mubr.bf16.mxu0 0
        %1353 = vmatmul.mubr.bf16.gmra.mrb[0].mxu0 %v1299
        %v1354 = vpop.f32.mrb[0].mxu0
        %v1355 = vadd.f32 0.0, %v1354
        %v1356 = vpop.f32.mrb[0].mxu0
        %v1357 = vpop.f32.mrb[0].mxu0
        %v1358 = vadd.f32 0.0, %v1357
        %v1359 = vpop.f32.mrb[0].mxu0
        %1360 = vmatprep.mubr.bf16.mxu0 0
        %1361 = vmatmul.mubr.bf16.gmra.mrb[0].mxu0 %v1302
        %v1362 = vpop.f32.mrb[0].mxu0
        %v1363 = vadd.f32 0.0, %v1362
        %v1364 = vpop.f32.mrb[0].mxu0
        %v1365 = vpop.f32.mrb[0].mxu0
        %v1366 = vadd.f32 0.0, %v1365
        %v1367 = vpop.f32.mrb[0].mxu0
        %1368 = vdwg.mxu0
        %v1369 = vld [vmem:[%s4] sm:$0xf]
        %v1370 = vld [vmem:[%s4 + $0x4] sm:$0xf]
        %v1371 = vld [vmem:[%s4 + $0x8] sm:$0xf]
        %v1372 = vld [vmem:[%s4 + $0xc] sm:$0xf]
        %v1373 = vld [vmem:[%s4 + $0x10] sm:$0xf]
        %v1374 = vld [vmem:[%s4 + $0x14] sm:$0xf]
        %v1375 = vld [vmem:[%s4 + $0x18] sm:$0xf]
        %v1376 = vld [vmem:[%s4 + $0x1c] sm:$0xf]
        %v1377 = vld [vmem:[%s4 + $0x20] sm:$0xf]
        %v1378 = vld [vmem:[%s4 + $0x24] sm:$0xf]
        %v1379 = vld [vmem:[%s4 + $0x28] sm:$0xf]
        %v1380 = vld [vmem:[%s4 + $0x2c] sm:$0xf]
        %v1381 = vld [vmem:[%s4 + $0x30] sm:$0xf]
        %v1382 = vld [vmem:[%s4 + $0x34] sm:$0xf]
        %v1383 = vld [vmem:[%s4 + $0x38] sm:$0xf]
        %v1384 = vld [vmem:[%s4 + $0x3c] sm:$0xf]
        %v1385 = vld [vmem:[%s4 + $0x40] sm:$0xf]
        %v1386 = vld [vmem:[%s4 + $0x44] sm:$0xf]
        %v1387 = vld [vmem:[%s4 + $0x48] sm:$0xf]
        %v1388 = vld [vmem:[%s4 + $0x4c] sm:$0xf]
        %v1389 = vld [vmem:[%s4 + $0x50] sm:$0xf]
        %v1390 = vld [vmem:[%s4 + $0x54] sm:$0xf]
        %v1391 = vld [vmem:[%s4 + $0x58] sm:$0xf]
        %v1392 = vld [vmem:[%s4 + $0x5c] sm:$0xf]
        %v1393 = vld [vmem:[%s4 + $0x60] sm:$0xf]
        %v1394 = vld [vmem:[%s4 + $0x64] sm:$0xf]
        %v1395 = vld [vmem:[%s4 + $0x68] sm:$0xf]
        %v1396 = vld [vmem:[%s4 + $0x6c] sm:$0xf]
        %v1397 = vld [vmem:[%s4 + $0x70] sm:$0xf]
        %v1398 = vld [vmem:[%s4 + $0x74] sm:$0xf]
        %v1399 = vld [vmem:[%s4 + $0x78] sm:$0xf]
        %v1400 = vld [vmem:[%s4 + $0x7c] sm:$0xf]
        %v1401 = vld [vmem:[%s4 + $0x80] sm:$0xf]
        %v1402 = vld [vmem:[%s4 + $0x84] sm:$0xf]
        %v1403 = vld [vmem:[%s4 + $0x88] sm:$0xf]
        %v1404 = vld [vmem:[%s4 + $0x8c] sm:$0xf]
        %v1405 = vld [vmem:[%s4 + $0x90] sm:$0xf]
        %v1406 = vld [vmem:[%s4 + $0x94] sm:$0xf]
        %v1407 = vld [vmem:[%s4 + $0x98] sm:$0xf]
        %v1408 = vld [vmem:[%s4 + $0x9c] sm:$0xf]
        %v1409 = vld [vmem:[%s4 + $0xa0] sm:$0xf]
        %v1410 = vld [vmem:[%s4 + $0xa4] sm:$0xf]
        %v1411 = vld [vmem:[%s4 + $0xa8] sm:$0xf]
        %v1412 = vld [vmem:[%s4 + $0xac] sm:$0xf]
        %v1413 = vld [vmem:[%s4 + $0xb0] sm:$0xf]
        %v1414 = vld [vmem:[%s4 + $0xb4] sm:$0xf]
        %v1415 = vld [vmem:[%s4 + $0xb8] sm:$0xf]
        %v1416 = vld [vmem:[%s4 + $0xbc] sm:$0xf]
        %v1417 = vld [vmem:[%s4 + $0xc0] sm:$0xf]
        %v1418 = vld [vmem:[%s4 + $0xc4] sm:$0xf]
        %v1419 = vld [vmem:[%s4 + $0xc8] sm:$0xf]
        %v1420 = vld [vmem:[%s4 + $0xcc] sm:$0xf]
        %v1421 = vld [vmem:[%s4 + $0xd0] sm:$0xf]
        %v1422 = vld [vmem:[%s4 + $0xd4] sm:$0xf]
        %v1423 = vld [vmem:[%s4 + $0xd8] sm:$0xf]
        %v1424 = vld [vmem:[%s4 + $0xdc] sm:$0xf]
        %v1425 = vld [vmem:[%s4 + $0xe0] sm:$0xf]
        %v1426 = vld [vmem:[%s4 + $0xe4] sm:$0xf]
        %v1427 = vld [vmem:[%s4 + $0xe8] sm:$0xf]
        %v1428 = vld [vmem:[%s4 + $0xec] sm:$0xf]
        %v1429 = vld [vmem:[%s4 + $0xf0] sm:$0xf]
        %v1430 = vld [vmem:[%s4 + $0xf4] sm:$0xf]
        %v1431 = vld [vmem:[%s4 + $0xf8] sm:$0xf]
        %v1432 = vld [vmem:[%s4 + $0xfc] sm:$0xf]
        %v1433 = vpack.c.bf16 %v1342, %v1339
        %v1434 = vpack.c.bf16 %v1350, %v1347
        %v1435 = vpack.c.bf16 %v1358, %v1355
        %v1436 = vpack.c.bf16 %v1366, %v1363
        %v1501 = vunpack.c.l.b16 %v1369
        %v1502 = vunpack.c.l.b16 %v1370
        %v1503 = vunpack.c.l.b16 %v1371
        %v1504 = vunpack.c.l.b16 %v1372
        %v1505 = vunpack.c.l.b16 %v1373
        %v1506 = vunpack.c.l.b16 %v1374
        %v1507 = vunpack.c.l.b16 %v1375
        %v1508 = vunpack.c.l.b16 %v1376
        %v1509 = vunpack.c.l.b16 %v1377
        %v1510 = vunpack.c.l.b16 %v1378
        %v1511 = vunpack.c.l.b16 %v1379
        %v1512 = vunpack.c.l.b16 %v1380
        %v1513 = vunpack.c.l.b16 %v1381
        %v1514 = vunpack.c.l.b16 %v1382
        %v1515 = vunpack.c.l.b16 %v1383
        %v1516 = vunpack.c.l.b16 %v1384
        %v1517 = vunpack.c.l.b16 %v1385
        %v1518 = vunpack.c.l.b16 %v1386
        %v1519 = vunpack.c.l.b16 %v1387
        %v1520 = vunpack.c.l.b16 %v1388
        %v1521 = vunpack.c.l.b16 %v1389
        %v1522 = vunpack.c.l.b16 %v1390
        %v1523 = vunpack.c.l.b16 %v1391
        %v1524 = vunpack.c.l.b16 %v1392
        %v1525 = vunpack.c.l.b16 %v1393
        %v1526 = vunpack.c.l.b16 %v1394
        %v1527 = vunpack.c.l.b16 %v1395
        %v1528 = vunpack.c.l.b16 %v1396
        %v1529 = vunpack.c.l.b16 %v1397
        %v1530 = vunpack.c.l.b16 %v1398
        %v1531 = vunpack.c.l.b16 %v1399
        %v1532 = vunpack.c.l.b16 %v1400
        %v1533 = vunpack.c.l.b16 %v1401
        %v1534 = vunpack.c.l.b16 %v1402
        %v1535 = vunpack.c.l.b16 %v1403
        %v1536 = vunpack.c.l.b16 %v1404
        %v1537 = vunpack.c.l.b16 %v1405
        %v1538 = vunpack.c.l.b16 %v1406
        %v1539 = vunpack.c.l.b16 %v1407
        %v1540 = vunpack.c.l.b16 %v1408
        %v1541 = vunpack.c.l.b16 %v1409
        %v1542 = vunpack.c.l.b16 %v1410
        %v1543 = vunpack.c.l.b16 %v1411
        %v1544 = vunpack.c.l.b16 %v1412
        %v1545 = vunpack.c.l.b16 %v1413
        %v1546 = vunpack.c.l.b16 %v1414
        %v1547 = vunpack.c.l.b16 %v1415
        %v1548 = vunpack.c.l.b16 %v1416
        %v1549 = vunpack.c.l.b16 %v1417
        %v1550 = vunpack.c.l.b16 %v1418
        %v1551 = vunpack.c.l.b16 %v1419
        %v1552 = vunpack.c.l.b16 %v1420
        %v1553 = vunpack.c.l.b16 %v1421
        %v1554 = vunpack.c.l.b16 %v1422
        %v1555 = vunpack.c.l.b16 %v1423
        %v1556 = vunpack.c.l.b16 %v1424
        %v1557 = vunpack.c.l.b16 %v1425
        %v1558 = vunpack.c.l.b16 %v1426
        %v1559 = vunpack.c.l.b16 %v1427
        %v1560 = vunpack.c.l.b16 %v1428
        %v1561 = vunpack.c.l.b16 %v1429
        %v1562 = vunpack.c.l.b16 %v1430
        %v1563 = vunpack.c.l.b16 %v1431
        %v1564 = vunpack.c.l.b16 %v1432
        %v1565 = vpack.c.b16 %v1502, %v1501
        %v1566 = vpack.c.b16 %v1504, %v1503
        %v1567 = vpack.c.b16 %v1506, %v1505
        %v1568 = vpack.c.b16 %v1508, %v1507
        %v1569 = vpack.c.b16 %v1510, %v1509
        %v1570 = vpack.c.b16 %v1512, %v1511
        %v1571 = vpack.c.b16 %v1514, %v1513
        %v1572 = vpack.c.b16 %v1516, %v1515
        %v1573 = vpack.c.b16 %v1518, %v1517
        %v1574 = vpack.c.b16 %v1520, %v1519
        %v1575 = vpack.c.b16 %v1522, %v1521
        %v1576 = vpack.c.b16 %v1524, %v1523
        %v1577 = vpack.c.b16 %v1526, %v1525
        %v1578 = vpack.c.b16 %v1528, %v1527
        %v1579 = vpack.c.b16 %v1530, %v1529
        %v1580 = vpack.c.b16 %v1532, %v1531
        %v1581 = vpack.c.b16 %v1534, %v1533
        %v1582 = vpack.c.b16 %v1536, %v1535
        %v1583 = vpack.c.b16 %v1538, %v1537
        %v1584 = vpack.c.b16 %v1540, %v1539
        %v1585 = vpack.c.b16 %v1542, %v1541
        %v1586 = vpack.c.b16 %v1544, %v1543
        %v1587 = vpack.c.b16 %v1546, %v1545
        %v1588 = vpack.c.b16 %v1548, %v1547
        %v1589 = vpack.c.b16 %v1550, %v1549
        %v1590 = vpack.c.b16 %v1552, %v1551
        %v1591 = vpack.c.b16 %v1554, %v1553
        %v1592 = vpack.c.b16 %v1556, %v1555
        %v1593 = vpack.c.b16 %v1558, %v1557
        %v1594 = vpack.c.b16 %v1560, %v1559
        %v1595 = vpack.c.b16 %v1562, %v1561
        %v1596 = vpack.c.b16 %v1564, %v1563
        %v1598 = vsel %vm1291, %v1565, 0
        %v1601 = vsel %vm1291, %v1566, 0
        %v1604 = vsel %vm1291, %v1567, 0
        %v1607 = vsel %vm1291, %v1568, 0
        %v1610 = vsel %vm1291, %v1569, 0
        %v1613 = vsel %vm1291, %v1570, 0
        %v1616 = vsel %vm1291, %v1571, 0
        %v1619 = vsel %vm1291, %v1572, 0
        %v1622 = vsel %vm1291, %v1573, 0
        %v1625 = vsel %vm1291, %v1574, 0
        %v1628 = vsel %vm1291, %v1575, 0
        %v1631 = vsel %vm1291, %v1576, 0
        %v1634 = vsel %vm1291, %v1577, 0
        %v1637 = vsel %vm1291, %v1578, 0
        %v1640 = vsel %vm1291, %v1579, 0
        %v1643 = vsel %vm1291, %v1580, 0
        %v1646 = vsel %vm1291, %v1581, 0
        %v1649 = vsel %vm1291, %v1582, 0
        %v1652 = vsel %vm1291, %v1583, 0
        %v1655 = vsel %vm1291, %v1584, 0
        %v1658 = vsel %vm1291, %v1585, 0
        %v1661 = vsel %vm1291, %v1586, 0
        %v1664 = vsel %vm1291, %v1587, 0
        %v1667 = vsel %vm1291, %v1588, 0
        %v1670 = vsel %vm1291, %v1589, 0
        %v1673 = vsel %vm1291, %v1590, 0
        %v1676 = vsel %vm1291, %v1591, 0
        %v1679 = vsel %vm1291, %v1592, 0
        %v1682 = vsel %vm1291, %v1593, 0
        %v1685 = vsel %vm1291, %v1594, 0
        %v1688 = vsel %vm1291, %v1595, 0
        %v1691 = vsel %vm1291, %v1596, 0
        %1693 = vmatprep.subr.bf16.mxu0 0
        %1694 = vmatpush1.bf16.msra.mxu0 %v1433
        %1695 = vmatprep.subr.bf16.mxu0 0
        %1696 = vmatpush1.bf16.msra.mxu0 %v1434
        %1697 = vmatprep.subr.bf16.mxu0 0
        %1698 = vmatpush1.bf16.msra.mxu0 %v1435
        %1699 = vmatprep.subr.bf16.mxu0 0
        %1700 = vmatpush1.bf16.msra.mxu0 %v1436
        %1701 = vmatprep.subr.bf16.mxu0 0
        %1702 = vmatpush1.bf16.msra.mxu0 0
        %1703 = vmatprep.subr.bf16.mxu0 0
        %1704 = vmatpush1.bf16.msra.mxu0 0
        %1705 = vmatprep.subr.bf16.mxu0 0
        %1706 = vmatpush1.bf16.msra.mxu0 0
        %1707 = vmatprep.subr.bf16.mxu0 0
        %1708 = vmatpush1.bf16.msra.mxu0 0
        %1709 = vmatprep.subr.bf16.mxu0 0
        %1710 = vmatpush1.bf16.msra.mxu0 0
        %1711 = vmatprep.subr.bf16.mxu0 0
        %1712 = vmatpush1.bf16.msra.mxu0 0
        %1713 = vmatprep.subr.bf16.mxu0 0
        %1714 = vmatpush1.bf16.msra.mxu0 0
        %1715 = vmatprep.subr.bf16.mxu0 0
        %1716 = vmatpush1.bf16.msra.mxu0 0
        %1717 = vmatprep.subr.bf16.mxu0 0
        %1718 = vmatpush1.bf16.msra.mxu0 0
        %1719 = vmatprep.subr.bf16.mxu0 0
        %1720 = vmatpush1.bf16.msra.mxu0 0
        %1721 = vmatprep.subr.bf16.mxu0 0
        %1722 = vmatpush1.bf16.msra.mxu0 0
        %1723 = vmatprep.subr.bf16.mxu0 0
        %1724 = vmatpush1.bf16.msra.mxu0 0
        %1725 = vmatprep.mubr.bf16.mxu0 0
        %1726 = vmatmul.mubr.bf16.gmra.mrb[0].mxu0 %v1598
        %v1727 = vpop.f32.mrb[0].mxu0
        %v1728 = vadd.f32 0.0, %v1727
        %v1729 = vpop.f32.mrb[0].mxu0
        %v1730 = vpop.f32.mrb[0].mxu0
        %v1731 = vadd.f32 0.0, %v1730
        %v1732 = vpop.f32.mrb[0].mxu0
        %1733 = vmatprep.mubr.bf16.mxu0 0
        %1734 = vmatmul.mubr.bf16.gmra.mrb[0].mxu0 %v1601
        %v1735 = vpop.f32.mrb[0].mxu0
        %v1736 = vadd.f32 0.0, %v1735
        %v1737 = vpop.f32.mrb[0].mxu0
        %v1738 = vpop.f32.mrb[0].mxu0
        %v1739 = vadd.f32 0.0, %v1738
        %v1740 = vpop.f32.mrb[0].mxu0
        %1741 = vmatprep.mubr.bf16.mxu0 0
        %1742 = vmatmul.mubr.bf16.gmra.mrb[0].mxu0 %v1604
        %v1743 = vpop.f32.mrb[0].mxu0
        %v1744 = vadd.f32 0.0, %v1743
        %v1745 = vpop.f32.mrb[0].mxu0
        %v1746 = vpop.f32.mrb[0].mxu0
        %v1747 = vadd.f32 0.0, %v1746
        %v1748 = vpop.f32.mrb[0].mxu0
        %1749 = vmatprep.mubr.bf16.mxu0 0
        %1750 = vmatmul.mubr.bf16.gmra.mrb[0].mxu0 %v1607
        %v1751 = vpop.f32.mrb[0].mxu0
        %v1752 = vadd.f32 0.0, %v1751
        %v1753 = vpop.f32.mrb[0].mxu0
        %v1754 = vpop.f32.mrb[0].mxu0
        %v1755 = vadd.f32 0.0, %v1754
        %v1756 = vpop.f32.mrb[0].mxu0
        %1757 = vmatprep.mubr.bf16.mxu0 0
        %1758 = vmatmul.mubr.bf16.gmra.mrb[0].mxu0 %v1610
        %v1759 = vpop.f32.mrb[0].mxu0
        %v1760 = vadd.f32 0.0, %v1759
        %v1761 = vpop.f32.mrb[0].mxu0
        %v1762 = vpop.f32.mrb[0].mxu0
        %v1763 = vadd.f32 0.0, %v1762
        %v1764 = vpop.f32.mrb[0].mxu0
        %1765 = vmatprep.mubr.bf16.mxu0 0
        %1766 = vmatmul.mubr.bf16.gmra.mrb[0].mxu0 %v1613
        %v1767 = vpop.f32.mrb[0].mxu0
        %v1768 = vadd.f32 0.0, %v1767
        %v1769 = vpop.f32.mrb[0].mxu0
        %v1770 = vpop.f32.mrb[0].mxu0
        %v1771 = vadd.f32 0.0, %v1770
        %v1772 = vpop.f32.mrb[0].mxu0
        %1773 = vmatprep.mubr.bf16.mxu0 0
        %1774 = vmatmul.mubr.bf16.gmra.mrb[0].mxu0 %v1616
        %v1775 = vpop.f32.mrb[0].mxu0
        %v1776 = vadd.f32 0.0, %v1775
        %v1777 = vpop.f32.mrb[0].mxu0
        %v1778 = vpop.f32.mrb[0].mxu0
        %v1779 = vadd.f32 0.0, %v1778
        %v1780 = vpop.f32.mrb[0].mxu0
        %1781 = vmatprep.mubr.bf16.mxu0 0
        %1782 = vmatmul.mubr.bf16.gmra.mrb[0].mxu0 %v1619
        %v1783 = vpop.f32.mrb[0].mxu0
        %v1784 = vadd.f32 0.0, %v1783
        %v1785 = vpop.f32.mrb[0].mxu0
        %v1786 = vpop.f32.mrb[0].mxu0
        %v1787 = vadd.f32 0.0, %v1786
        %v1788 = vpop.f32.mrb[0].mxu0
        %1789 = vmatprep.mubr.bf16.mxu0 0
        %1790 = vmatmul.mubr.bf16.gmra.mrb[0].mxu0 %v1622
        %v1791 = vpop.f32.mrb[0].mxu0
        %v1792 = vadd.f32 0.0, %v1791
        %v1793 = vpop.f32.mrb[0].mxu0
        %v1794 = vpop.f32.mrb[0].mxu0
        %v1795 = vadd.f32 0.0, %v1794
        %v1796 = vpop.f32.mrb[0].mxu0
        %1797 = vmatprep.mubr.bf16.mxu0 0
        %1798 = vmatmul.mubr.bf16.gmra.mrb[0].mxu0 %v1625
        %v1799 = vpop.f32.mrb[0].mxu0
        %v1800 = vadd.f32 0.0, %v1799
        %v1801 = vpop.f32.mrb[0].mxu0
        %v1802 = vpop.f32.mrb[0].mxu0
        %v1803 = vadd.f32 0.0, %v1802
        %v1804 = vpop.f32.mrb[0].mxu0
        %1805 = vmatprep.mubr.bf16.mxu0 0
        %1806 = vmatmul.mubr.bf16.gmra.mrb[0].mxu0 %v1628
        %v1807 = vpop.f32.mrb[0].mxu0
        %v1808 = vadd.f32 0.0, %v1807
        %v1809 = vpop.f32.mrb[0].mxu0
        %v1810 = vpop.f32.mrb[0].mxu0
        %v1811 = vadd.f32 0.0, %v1810
        %v1812 = vpop.f32.mrb[0].mxu0
        %1813 = vmatprep.mubr.bf16.mxu0 0
        %1814 = vmatmul.mubr.bf16.gmra.mrb[0].mxu0 %v1631
        %v1815 = vpop.f32.mrb[0].mxu0
        %v1816 = vadd.f32 0.0, %v1815
        %v1817 = vpop.f32.mrb[0].mxu0
        %v1818 = vpop.f32.mrb[0].mxu0
        %v1819 = vadd.f32 0.0, %v1818
        %v1820 = vpop.f32.mrb[0].mxu0
        %1821 = vmatprep.mubr.bf16.mxu0 0
        %1822 = vmatmul.mubr.bf16.gmra.mrb[0].mxu0 %v1634
        %v1823 = vpop.f32.mrb[0].mxu0
        %v1824 = vadd.f32 0.0, %v1823
        %v1825 = vpop.f32.mrb[0].mxu0
        %v1826 = vpop.f32.mrb[0].mxu0
        %v1827 = vadd.f32 0.0, %v1826
        %v1828 = vpop.f32.mrb[0].mxu0
        %1829 = vmatprep.mubr.bf16.mxu0 0
        %1830 = vmatmul.mubr.bf16.gmra.mrb[0].mxu0 %v1637
        %v1831 = vpop.f32.mrb[0].mxu0
        %v1832 = vadd.f32 0.0, %v1831
        %v1833 = vpop.f32.mrb[0].mxu0
        %v1834 = vpop.f32.mrb[0].mxu0
        %v1835 = vadd.f32 0.0, %v1834
        %v1836 = vpop.f32.mrb[0].mxu0
        %1837 = vmatprep.mubr.bf16.mxu0 0
        %1838 = vmatmul.mubr.bf16.gmra.mrb[0].mxu0 %v1640
        %v1839 = vpop.f32.mrb[0].mxu0
        %v1840 = vadd.f32 0.0, %v1839
        %v1841 = vpop.f32.mrb[0].mxu0
        %v1842 = vpop.f32.mrb[0].mxu0
        %v1843 = vadd.f32 0.0, %v1842
        %v1844 = vpop.f32.mrb[0].mxu0
        %1845 = vmatprep.mubr.bf16.mxu0 0
        %1846 = vmatmul.mubr.bf16.gmra.mrb[0].mxu0 %v1643
        %v1847 = vpop.f32.mrb[0].mxu0
        %v1848 = vadd.f32 0.0, %v1847
        %v1849 = vpop.f32.mrb[0].mxu0
        %v1850 = vpop.f32.mrb[0].mxu0
        %v1851 = vadd.f32 0.0, %v1850
        %v1852 = vpop.f32.mrb[0].mxu0
        %1853 = vmatprep.mubr.bf16.mxu0 0
        %1854 = vmatmul.mubr.bf16.gmra.mrb[0].mxu0 %v1646
        %v1855 = vpop.f32.mrb[0].mxu0
        %v1856 = vadd.f32 0.0, %v1855
        %v1857 = vpop.f32.mrb[0].mxu0
        %v1858 = vpop.f32.mrb[0].mxu0
        %v1859 = vadd.f32 0.0, %v1858
        %v1860 = vpop.f32.mrb[0].mxu0
        %1861 = vmatprep.mubr.bf16.mxu0 0
        %1862 = vmatmul.mubr.bf16.gmra.mrb[0].mxu0 %v1649
        %v1863 = vpop.f32.mrb[0].mxu0
        %v1864 = vadd.f32 0.0, %v1863
        %v1865 = vpop.f32.mrb[0].mxu0
        %v1866 = vpop.f32.mrb[0].mxu0
        %v1867 = vadd.f32 0.0, %v1866
        %v1868 = vpop.f32.mrb[0].mxu0
        %1869 = vmatprep.mubr.bf16.mxu0 0
        %1870 = vmatmul.mubr.bf16.gmra.mrb[0].mxu0 %v1652
        %v1871 = vpop.f32.mrb[0].mxu0
        %v1872 = vadd.f32 0.0, %v1871
        %v1873 = vpop.f32.mrb[0].mxu0
        %v1874 = vpop.f32.mrb[0].mxu0
        %v1875 = vadd.f32 0.0, %v1874
        %v1876 = vpop.f32.mrb[0].mxu0
        %1877 = vmatprep.mubr.bf16.mxu0 0
        %1878 = vmatmul.mubr.bf16.gmra.mrb[0].mxu0 %v1655
        %v1879 = vpop.f32.mrb[0].mxu0
        %v1880 = vadd.f32 0.0, %v1879
        %v1881 = vpop.f32.mrb[0].mxu0
        %v1882 = vpop.f32.mrb[0].mxu0
        %v1883 = vadd.f32 0.0, %v1882
        %v1884 = vpop.f32.mrb[0].mxu0
        %1885 = vmatprep.mubr.bf16.mxu0 0
        %1886 = vmatmul.mubr.bf16.gmra.mrb[0].mxu0 %v1658
        %v1887 = vpop.f32.mrb[0].mxu0
        %v1888 = vadd.f32 0.0, %v1887
        %v1889 = vpop.f32.mrb[0].mxu0
        %v1890 = vpop.f32.mrb[0].mxu0
        %v1891 = vadd.f32 0.0, %v1890
        %v1892 = vpop.f32.mrb[0].mxu0
        %1893 = vmatprep.mubr.bf16.mxu0 0
        %1894 = vmatmul.mubr.bf16.gmra.mrb[0].mxu0 %v1661
        %v1895 = vpop.f32.mrb[0].mxu0
        %v1896 = vadd.f32 0.0, %v1895
        %v1897 = vpop.f32.mrb[0].mxu0
        %v1898 = vpop.f32.mrb[0].mxu0
        %v1899 = vadd.f32 0.0, %v1898
        %v1900 = vpop.f32.mrb[0].mxu0
        %1901 = vmatprep.mubr.bf16.mxu0 0
        %1902 = vmatmul.mubr.bf16.gmra.mrb[0].mxu0 %v1664
        %v1903 = vpop.f32.mrb[0].mxu0
        %v1904 = vadd.f32 0.0, %v1903
        %v1905 = vpop.f32.mrb[0].mxu0
        %v1906 = vpop.f32.mrb[0].mxu0
        %v1907 = vadd.f32 0.0, %v1906
        %v1908 = vpop.f32.mrb[0].mxu0
        %1909 = vmatprep.mubr.bf16.mxu0 0
        %1910 = vmatmul.mubr.bf16.gmra.mrb[0].mxu0 %v1667
        %v1911 = vpop.f32.mrb[0].mxu0
        %v1912 = vadd.f32 0.0, %v1911
        %v1913 = vpop.f32.mrb[0].mxu0
        %v1914 = vpop.f32.mrb[0].mxu0
        %v1915 = vadd.f32 0.0, %v1914
        %v1916 = vpop.f32.mrb[0].mxu0
        %1917 = vmatprep.mubr.bf16.mxu0 0
        %1918 = vmatmul.mubr.bf16.gmra.mrb[0].mxu0 %v1670
        %v1919 = vpop.f32.mrb[0].mxu0
        %v1920 = vadd.f32 0.0, %v1919
        %v1921 = vpop.f32.mrb[0].mxu0
        %v1922 = vpop.f32.mrb[0].mxu0
        %v1923 = vadd.f32 0.0, %v1922
        %v1924 = vpop.f32.mrb[0].mxu0
        %1925 = vmatprep.mubr.bf16.mxu0 0
        %1926 = vmatmul.mubr.bf16.gmra.mrb[0].mxu0 %v1673
        %v1927 = vpop.f32.mrb[0].mxu0
        %v1928 = vadd.f32 0.0, %v1927
        %v1929 = vpop.f32.mrb[0].mxu0
        %v1930 = vpop.f32.mrb[0].mxu0
        %v1931 = vadd.f32 0.0, %v1930
        %v1932 = vpop.f32.mrb[0].mxu0
        %1933 = vmatprep.mubr.bf16.mxu0 0
        %1934 = vmatmul.mubr.bf16.gmra.mrb[0].mxu0 %v1676
        %v1935 = vpop.f32.mrb[0].mxu0
        %v1936 = vadd.f32 0.0, %v1935
        %v1937 = vpop.f32.mrb[0].mxu0
        %v1938 = vpop.f32.mrb[0].mxu0
        %v1939 = vadd.f32 0.0, %v1938
        %v1940 = vpop.f32.mrb[0].mxu0
        %1941 = vmatprep.mubr.bf16.mxu0 0
        %1942 = vmatmul.mubr.bf16.gmra.mrb[0].mxu0 %v1679
        %v1943 = vpop.f32.mrb[0].mxu0
        %v1944 = vadd.f32 0.0, %v1943
        %v1945 = vpop.f32.mrb[0].mxu0
        %v1946 = vpop.f32.mrb[0].mxu0
        %v1947 = vadd.f32 0.0, %v1946
        %v1948 = vpop.f32.mrb[0].mxu0
        %1949 = vmatprep.mubr.bf16.mxu0 0
        %1950 = vmatmul.mubr.bf16.gmra.mrb[0].mxu0 %v1682
        %v1951 = vpop.f32.mrb[0].mxu0
        %v1952 = vadd.f32 0.0, %v1951
        %v1953 = vpop.f32.mrb[0].mxu0
        %v1954 = vpop.f32.mrb[0].mxu0
        %v1955 = vadd.f32 0.0, %v1954
        %v1956 = vpop.f32.mrb[0].mxu0
        %1957 = vmatprep.mubr.bf16.mxu0 0
        %1958 = vmatmul.mubr.bf16.gmra.mrb[0].mxu0 %v1685
        %v1959 = vpop.f32.mrb[0].mxu0
        %v1960 = vadd.f32 0.0, %v1959
        %v1961 = vpop.f32.mrb[0].mxu0
        %v1962 = vpop.f32.mrb[0].mxu0
        %v1963 = vadd.f32 0.0, %v1962
        %v1964 = vpop.f32.mrb[0].mxu0
        %1965 = vmatprep.mubr.bf16.mxu0 0
        %1966 = vmatmul.mubr.bf16.gmra.mrb[0].mxu0 %v1688
        %v1967 = vpop.f32.mrb[0].mxu0
        %v1968 = vadd.f32 0.0, %v1967
        %v1969 = vpop.f32.mrb[0].mxu0
        %v1970 = vpop.f32.mrb[0].mxu0
        %v1971 = vadd.f32 0.0, %v1970
        %v1972 = vpop.f32.mrb[0].mxu0
        %1973 = vmatprep.mubr.bf16.mxu0 0
        %1974 = vmatmul.mubr.bf16.gmra.mrb[0].mxu0 %v1691
        %v1975 = vpop.f32.mrb[0].mxu0
        %v1976 = vadd.f32 0.0, %v1975
        %v1977 = vpop.f32.mrb[0].mxu0
        %v1978 = vpop.f32.mrb[0].mxu0
        %v1979 = vadd.f32 0.0, %v1978
        %v1980 = vpop.f32.mrb[0].mxu0
        %1981 = vdwg.mxu0
        %v1990 = vunpack.c.l.b16 %v1231
        %v1991 = vunpack.c.l.b16 %v1232
        %v1992 = vunpack.c.l.b16 %v1233
        %v1993 = vunpack.c.l.b16 %v1234
        %v1994 = vunpack.c.l.b16 %v1235
        %v1995 = vunpack.c.l.b16 %v1236
        %v1996 = vunpack.c.l.b16 %v1237
        %v1997 = vunpack.c.l.b16 %v1238
        %v1998 = vpack.c.b16 %v1991, %v1990
        %v1999 = vpack.c.b16 %v1993, %v1992
        %v2000 = vpack.c.b16 %v1995, %v1994
        %v2001 = vpack.c.b16 %v1997, %v1996
        %v2006 = vsel %vm1291, %v1105, 0
        %v2008 = vsel %vm1291, %v1109, 0
        %v2010 = vsel %vm1291, %v1113, 0
        %v2012 = vsel %vm1291, %v1117, 0
        %v2014 = vsel %vm1291, %v1121, 0
        %v2016 = vsel %vm1291, %v1125, 0
        %v2018 = vsel %vm1291, %v1129, 0
        %v2020 = vsel %vm1291, %v1133, 0
        %v2022 = vsel %vm1291, %v1137, 0
        %v2024 = vsel %vm1291, %v1141, 0
        %v2026 = vsel %vm1291, %v1145, 0
        %v2028 = vsel %vm1291, %v1149, 0
        %v2030 = vsel %vm1291, %v1153, 0
        %v2032 = vsel %vm1291, %v1157, 0
        %v2034 = vsel %vm1291, %v1161, 0
        %v2036 = vsel %vm1291, %v1165, 0
        %v2038 = vsel %vm1291, %v1169, 0
        %v2040 = vsel %vm1291, %v1173, 0
        %v2042 = vsel %vm1291, %v1177, 0
        %v2044 = vsel %vm1291, %v1181, 0
        %v2046 = vsel %vm1291, %v1185, 0
        %v2048 = vsel %vm1291, %v1189, 0
        %v2050 = vsel %vm1291, %v1193, 0
        %v2052 = vsel %vm1291, %v1197, 0
        %v2054 = vsel %vm1291, %v1201, 0
        %v2056 = vsel %vm1291, %v1205, 0
        %v2058 = vsel %vm1291, %v1209, 0
        %v2060 = vsel %vm1291, %v1213, 0
        %v2062 = vsel %vm1291, %v1217, 0
        %v2064 = vsel %vm1291, %v1221, 0
        %v2066 = vsel %vm1291, %v1225, 0
        %v2068 = vsel %vm1291, %v1229, 0
        %2070 = vmatprep.subr.bf16.mxu0 0
        %2071 = vmatpush1.bf16.msra.mxu0 %v1998
        %2072 = vmatprep.subr.bf16.mxu0 0
        %2073 = vmatpush1.bf16.msra.mxu0 %v1999
        %2074 = vmatprep.subr.bf16.mxu0 0
        %2075 = vmatpush1.bf16.msra.mxu0 %v2000
        %2076 = vmatprep.subr.bf16.mxu0 0
        %2077 = vmatpush1.bf16.msra.mxu0 %v2001
        %2078 = vmatprep.subr.bf16.mxu0 0
        %2079 = vmatpush1.bf16.msra.mxu0 0
        %2080 = vmatprep.subr.bf16.mxu0 0
        %2081 = vmatpush1.bf16.msra.mxu0 0
        %2082 = vmatprep.subr.bf16.mxu0 0
        %2083 = vmatpush1.bf16.msra.mxu0 0
        %2084 = vmatprep.subr.bf16.mxu0 0
        %2085 = vmatpush1.bf16.msra.mxu0 0
        %2086 = vmatprep.subr.bf16.mxu0 0
        %2087 = vmatpush1.bf16.msra.mxu0 0
        %2088 = vmatprep.subr.bf16.mxu0 0
        %2089 = vmatpush1.bf16.msra.mxu0 0
        %2090 = vmatprep.subr.bf16.mxu0 0
        %2091 = vmatpush1.bf16.msra.mxu0 0
        %2092 = vmatprep.subr.bf16.mxu0 0
        %2093 = vmatpush1.bf16.msra.mxu0 0
        %2094 = vmatprep.subr.bf16.mxu0 0
        %2095 = vmatpush1.bf16.msra.mxu0 0
        %2096 = vmatprep.subr.bf16.mxu0 0
        %2097 = vmatpush1.bf16.msra.mxu0 0
        %2098 = vmatprep.subr.bf16.mxu0 0
        %2099 = vmatpush1.bf16.msra.mxu0 0
        %2100 = vmatprep.subr.bf16.mxu0 0
        %2101 = vmatpush1.bf16.msra.mxu0 0
        %2102 = vmatprep.mubr.bf16.mxu0 0
        %2103 = vmatmul.mubr.bf16.gmra.mrb[0].mxu0 %v2006
        %v2104 = vpop.f32.mrb[0].mxu0
        %v2105 = vadd.f32 %v1728, %v2104
        %v2106 = vpop.f32.mrb[0].mxu0
        %v2107 = vpop.f32.mrb[0].mxu0
        %v2108 = vadd.f32 %v1731, %v2107
        %v2109 = vpop.f32.mrb[0].mxu0
        %2110 = vmatprep.mubr.bf16.mxu0 0
        %2111 = vmatmul.mubr.bf16.gmra.mrb[0].mxu0 %v2008
        %v2112 = vpop.f32.mrb[0].mxu0
        %v2113 = vadd.f32 %v1736, %v2112
        %v2114 = vpop.f32.mrb[0].mxu0
        %v2115 = vpop.f32.mrb[0].mxu0
        %v2116 = vadd.f32 %v1739, %v2115
        %v2117 = vpop.f32.mrb[0].mxu0
        %2118 = vmatprep.mubr.bf16.mxu0 0
        %2119 = vmatmul.mubr.bf16.gmra.mrb[0].mxu0 %v2010
        %v2120 = vpop.f32.mrb[0].mxu0
        %v2121 = vadd.f32 %v1744, %v2120
        %v2122 = vpop.f32.mrb[0].mxu0
        %v2123 = vpop.f32.mrb[0].mxu0
        %v2124 = vadd.f32 %v1747, %v2123
        %v2125 = vpop.f32.mrb[0].mxu0
        %2126 = vmatprep.mubr.bf16.mxu0 0
        %2127 = vmatmul.mubr.bf16.gmra.mrb[0].mxu0 %v2012
        %v2128 = vpop.f32.mrb[0].mxu0
        %v2129 = vadd.f32 %v1752, %v2128
        %v2130 = vpop.f32.mrb[0].mxu0
        %v2131 = vpop.f32.mrb[0].mxu0
        %v2132 = vadd.f32 %v1755, %v2131
        %v2133 = vpop.f32.mrb[0].mxu0
        %2134 = vmatprep.mubr.bf16.mxu0 0
        %2135 = vmatmul.mubr.bf16.gmra.mrb[0].mxu0 %v2014
        %v2136 = vpop.f32.mrb[0].mxu0
        %v2137 = vadd.f32 %v1760, %v2136
        %v2138 = vpop.f32.mrb[0].mxu0
        %v2139 = vpop.f32.mrb[0].mxu0
        %v2140 = vadd.f32 %v1763, %v2139
        %v2141 = vpop.f32.mrb[0].mxu0
        %2142 = vmatprep.mubr.bf16.mxu0 0
        %2143 = vmatmul.mubr.bf16.gmra.mrb[0].mxu0 %v2016
        %v2144 = vpop.f32.mrb[0].mxu0
        %v2145 = vadd.f32 %v1768, %v2144
        %v2146 = vpop.f32.mrb[0].mxu0
        %v2147 = vpop.f32.mrb[0].mxu0
        %v2148 = vadd.f32 %v1771, %v2147
        %v2149 = vpop.f32.mrb[0].mxu0
        %2150 = vmatprep.mubr.bf16.mxu0 0
        %2151 = vmatmul.mubr.bf16.gmra.mrb[0].mxu0 %v2018
        %v2152 = vpop.f32.mrb[0].mxu0
        %v2153 = vadd.f32 %v1776, %v2152
        %v2154 = vpop.f32.mrb[0].mxu0
        %v2155 = vpop.f32.mrb[0].mxu0
        %v2156 = vadd.f32 %v1779, %v2155
        %v2157 = vpop.f32.mrb[0].mxu0
        %2158 = vmatprep.mubr.bf16.mxu0 0
        %2159 = vmatmul.mubr.bf16.gmra.mrb[0].mxu0 %v2020
        %v2160 = vpop.f32.mrb[0].mxu0
        %v2161 = vadd.f32 %v1784, %v2160
        %v2162 = vpop.f32.mrb[0].mxu0
        %v2163 = vpop.f32.mrb[0].mxu0
        %v2164 = vadd.f32 %v1787, %v2163
        %v2165 = vpop.f32.mrb[0].mxu0
        %2166 = vmatprep.mubr.bf16.mxu0 0
        %2167 = vmatmul.mubr.bf16.gmra.mrb[0].mxu0 %v2022
        %v2168 = vpop.f32.mrb[0].mxu0
        %v2169 = vadd.f32 %v1792, %v2168
        %v2170 = vpop.f32.mrb[0].mxu0
        %v2171 = vpop.f32.mrb[0].mxu0
        %v2172 = vadd.f32 %v1795, %v2171
        %v2173 = vpop.f32.mrb[0].mxu0
        %2174 = vmatprep.mubr.bf16.mxu0 0
        %2175 = vmatmul.mubr.bf16.gmra.mrb[0].mxu0 %v2024
        %v2176 = vpop.f32.mrb[0].mxu0
        %v2177 = vadd.f32 %v1800, %v2176
        %v2178 = vpop.f32.mrb[0].mxu0
        %v2179 = vpop.f32.mrb[0].mxu0
        %v2180 = vadd.f32 %v1803, %v2179
        %v2181 = vpop.f32.mrb[0].mxu0
        %2182 = vmatprep.mubr.bf16.mxu0 0
        %2183 = vmatmul.mubr.bf16.gmra.mrb[0].mxu0 %v2026
        %v2184 = vpop.f32.mrb[0].mxu0
        %v2185 = vadd.f32 %v1808, %v2184
        %v2186 = vpop.f32.mrb[0].mxu0
        %v2187 = vpop.f32.mrb[0].mxu0
        %v2188 = vadd.f32 %v1811, %v2187
        %v2189 = vpop.f32.mrb[0].mxu0
        %2190 = vmatprep.mubr.bf16.mxu0 0
        %2191 = vmatmul.mubr.bf16.gmra.mrb[0].mxu0 %v2028
        %v2192 = vpop.f32.mrb[0].mxu0
        %v2193 = vadd.f32 %v1816, %v2192
        %v2194 = vpop.f32.mrb[0].mxu0
        %v2195 = vpop.f32.mrb[0].mxu0
        %v2196 = vadd.f32 %v1819, %v2195
        %v2197 = vpop.f32.mrb[0].mxu0
        %2198 = vmatprep.mubr.bf16.mxu0 0
        %2199 = vmatmul.mubr.bf16.gmra.mrb[0].mxu0 %v2030
        %v2200 = vpop.f32.mrb[0].mxu0
        %v2201 = vadd.f32 %v1824, %v2200
        %v2202 = vpop.f32.mrb[0].mxu0
        %v2203 = vpop.f32.mrb[0].mxu0
        %v2204 = vadd.f32 %v1827, %v2203
        %v2205 = vpop.f32.mrb[0].mxu0
        %2206 = vmatprep.mubr.bf16.mxu0 0
        %2207 = vmatmul.mubr.bf16.gmra.mrb[0].mxu0 %v2032
        %v2208 = vpop.f32.mrb[0].mxu0
        %v2209 = vadd.f32 %v1832, %v2208
        %v2210 = vpop.f32.mrb[0].mxu0
        %v2211 = vpop.f32.mrb[0].mxu0
        %v2212 = vadd.f32 %v1835, %v2211
        %v2213 = vpop.f32.mrb[0].mxu0
        %2214 = vmatprep.mubr.bf16.mxu0 0
        %2215 = vmatmul.mubr.bf16.gmra.mrb[0].mxu0 %v2034
        %v2216 = vpop.f32.mrb[0].mxu0
        %v2217 = vadd.f32 %v1840, %v2216
        %v2218 = vpop.f32.mrb[0].mxu0
        %v2219 = vpop.f32.mrb[0].mxu0
        %v2220 = vadd.f32 %v1843, %v2219
        %v2221 = vpop.f32.mrb[0].mxu0
        %2222 = vmatprep.mubr.bf16.mxu0 0
        %2223 = vmatmul.mubr.bf16.gmra.mrb[0].mxu0 %v2036
        %v2224 = vpop.f32.mrb[0].mxu0
        %v2225 = vadd.f32 %v1848, %v2224
        %v2226 = vpop.f32.mrb[0].mxu0
        %v2227 = vpop.f32.mrb[0].mxu0
        %v2228 = vadd.f32 %v1851, %v2227
        %v2229 = vpop.f32.mrb[0].mxu0
        %2230 = vmatprep.mubr.bf16.mxu0 0
        %2231 = vmatmul.mubr.bf16.gmra.mrb[0].mxu0 %v2038
        %v2232 = vpop.f32.mrb[0].mxu0
        %v2233 = vadd.f32 %v1856, %v2232
        %v2234 = vpop.f32.mrb[0].mxu0
        %v2235 = vpop.f32.mrb[0].mxu0
        %v2236 = vadd.f32 %v1859, %v2235
        %v2237 = vpop.f32.mrb[0].mxu0
        %2238 = vmatprep.mubr.bf16.mxu0 0
        %2239 = vmatmul.mubr.bf16.gmra.mrb[0].mxu0 %v2040
        %v2240 = vpop.f32.mrb[0].mxu0
        %v2241 = vadd.f32 %v1864, %v2240
        %v2242 = vpop.f32.mrb[0].mxu0
        %v2243 = vpop.f32.mrb[0].mxu0
        %v2244 = vadd.f32 %v1867, %v2243
        %v2245 = vpop.f32.mrb[0].mxu0
        %2246 = vmatprep.mubr.bf16.mxu0 0
        %2247 = vmatmul.mubr.bf16.gmra.mrb[0].mxu0 %v2042
        %v2248 = vpop.f32.mrb[0].mxu0
        %v2249 = vadd.f32 %v1872, %v2248
        %v2250 = vpop.f32.mrb[0].mxu0
        %v2251 = vpop.f32.mrb[0].mxu0
        %v2252 = vadd.f32 %v1875, %v2251
        %v2253 = vpop.f32.mrb[0].mxu0
        %2254 = vmatprep.mubr.bf16.mxu0 0
        %2255 = vmatmul.mubr.bf16.gmra.mrb[0].mxu0 %v2044
        %v2256 = vpop.f32.mrb[0].mxu0
        %v2257 = vadd.f32 %v1880, %v2256
        %v2258 = vpop.f32.mrb[0].mxu0
        %v2259 = vpop.f32.mrb[0].mxu0
        %v2260 = vadd.f32 %v1883, %v2259
        %v2261 = vpop.f32.mrb[0].mxu0
        %2262 = vmatprep.mubr.bf16.mxu0 0
        %2263 = vmatmul.mubr.bf16.gmra.mrb[0].mxu0 %v2046
        %v2264 = vpop.f32.mrb[0].mxu0
        %v2265 = vadd.f32 %v1888, %v2264
        %v2266 = vpop.f32.mrb[0].mxu0
        %v2267 = vpop.f32.mrb[0].mxu0
        %v2268 = vadd.f32 %v1891, %v2267
        %v2269 = vpop.f32.mrb[0].mxu0
        %2270 = vmatprep.mubr.bf16.mxu0 0
        %2271 = vmatmul.mubr.bf16.gmra.mrb[0].mxu0 %v2048
        %v2272 = vpop.f32.mrb[0].mxu0
        %v2273 = vadd.f32 %v1896, %v2272
        %v2274 = vpop.f32.mrb[0].mxu0
        %v2275 = vpop.f32.mrb[0].mxu0
        %v2276 = vadd.f32 %v1899, %v2275
        %v2277 = vpop.f32.mrb[0].mxu0
        %2278 = vmatprep.mubr.bf16.mxu0 0
        %2279 = vmatmul.mubr.bf16.gmra.mrb[0].mxu0 %v2050
        %v2280 = vpop.f32.mrb[0].mxu0
        %v2281 = vadd.f32 %v1904, %v2280
        %v2282 = vpop.f32.mrb[0].mxu0
        %v2283 = vpop.f32.mrb[0].mxu0
        %v2284 = vadd.f32 %v1907, %v2283
        %v2285 = vpop.f32.mrb[0].mxu0
        %2286 = vmatprep.mubr.bf16.mxu0 0
        %2287 = vmatmul.mubr.bf16.gmra.mrb[0].mxu0 %v2052
        %v2288 = vpop.f32.mrb[0].mxu0
        %v2289 = vadd.f32 %v1912, %v2288
        %v2290 = vpop.f32.mrb[0].mxu0
        %v2291 = vpop.f32.mrb[0].mxu0
        %v2292 = vadd.f32 %v1915, %v2291
        %v2293 = vpop.f32.mrb[0].mxu0
        %2294 = vmatprep.mubr.bf16.mxu0 0
        %2295 = vmatmul.mubr.bf16.gmra.mrb[0].mxu0 %v2054
        %v2296 = vpop.f32.mrb[0].mxu0
        %v2297 = vadd.f32 %v1920, %v2296
        %v2298 = vpop.f32.mrb[0].mxu0
        %v2299 = vpop.f32.mrb[0].mxu0
        %v2300 = vadd.f32 %v1923, %v2299
        %v2301 = vpop.f32.mrb[0].mxu0
        %2302 = vmatprep.mubr.bf16.mxu0 0
        %2303 = vmatmul.mubr.bf16.gmra.mrb[0].mxu0 %v2056
        %v2304 = vpop.f32.mrb[0].mxu0
        %v2305 = vadd.f32 %v1928, %v2304
        %v2306 = vpop.f32.mrb[0].mxu0
        %v2307 = vpop.f32.mrb[0].mxu0
        %v2308 = vadd.f32 %v1931, %v2307
        %v2309 = vpop.f32.mrb[0].mxu0
        %2310 = vmatprep.mubr.bf16.mxu0 0
        %2311 = vmatmul.mubr.bf16.gmra.mrb[0].mxu0 %v2058
        %v2312 = vpop.f32.mrb[0].mxu0
        %v2313 = vadd.f32 %v1936, %v2312
        %v2314 = vpop.f32.mrb[0].mxu0
        %v2315 = vpop.f32.mrb[0].mxu0
        %v2316 = vadd.f32 %v1939, %v2315
        %v2317 = vpop.f32.mrb[0].mxu0
        %2318 = vmatprep.mubr.bf16.mxu0 0
        %2319 = vmatmul.mubr.bf16.gmra.mrb[0].mxu0 %v2060
        %v2320 = vpop.f32.mrb[0].mxu0
        %v2321 = vadd.f32 %v1944, %v2320
        %v2322 = vpop.f32.mrb[0].mxu0
        %v2323 = vpop.f32.mrb[0].mxu0
        %v2324 = vadd.f32 %v1947, %v2323
        %v2325 = vpop.f32.mrb[0].mxu0
        %2326 = vmatprep.mubr.bf16.mxu0 0
        %2327 = vmatmul.mubr.bf16.gmra.mrb[0].mxu0 %v2062
        %v2328 = vpop.f32.mrb[0].mxu0
        %v2329 = vadd.f32 %v1952, %v2328
        %v2330 = vpop.f32.mrb[0].mxu0
        %v2331 = vpop.f32.mrb[0].mxu0
        %v2332 = vadd.f32 %v1955, %v2331
        %v2333 = vpop.f32.mrb[0].mxu0
        %2334 = vmatprep.mubr.bf16.mxu0 0
        %2335 = vmatmul.mubr.bf16.gmra.mrb[0].mxu0 %v2064
        %v2336 = vpop.f32.mrb[0].mxu0
        %v2337 = vadd.f32 %v1960, %v2336
        %v2338 = vpop.f32.mrb[0].mxu0
        %v2339 = vpop.f32.mrb[0].mxu0
        %v2340 = vadd.f32 %v1963, %v2339
        %v2341 = vpop.f32.mrb[0].mxu0
        %2342 = vmatprep.mubr.bf16.mxu0 0
        %2343 = vmatmul.mubr.bf16.gmra.mrb[0].mxu0 %v2066
        %v2344 = vpop.f32.mrb[0].mxu0
        %v2345 = vadd.f32 %v1968, %v2344
        %v2346 = vpop.f32.mrb[0].mxu0
        %v2347 = vpop.f32.mrb[0].mxu0
        %v2348 = vadd.f32 %v1971, %v2347
        %v2349 = vpop.f32.mrb[0].mxu0
        %2350 = vmatprep.mubr.bf16.mxu0 0
        %2351 = vmatmul.mubr.bf16.gmra.mrb[0].mxu0 %v2068
        %v2352 = vpop.f32.mrb[0].mxu0
        %v2353 = vadd.f32 %v1976, %v2352
        %v2354 = vpop.f32.mrb[0].mxu0
        %v2355 = vpop.f32.mrb[0].mxu0
        %v2356 = vadd.f32 %v1979, %v2355
        %v2357 = vpop.f32.mrb[0].mxu0
        %2358 = vdwg.mxu0
        %v2359 = vld [vmem:[%s7] sm:$0x1]
        %v2361 = vlaneseq
        %v2362 = vshrl.u32 %v2361, 7
        %v2363 = vsub.s32 0, %v2362
        %v2364 = vrot.slane %v2359, %v2363
        %v2366 = vadd.f32 %v2105, %v2364
        %v2367 = vadd.f32 %v2108, %v2364
        %v2368 = vadd.f32 %v2113, %v2364
        %v2369 = vadd.f32 %v2116, %v2364
        %v2370 = vadd.f32 %v2121, %v2364
        %v2371 = vadd.f32 %v2124, %v2364
        %v2372 = vadd.f32 %v2129, %v2364
        %v2373 = vadd.f32 %v2132, %v2364
        %v2374 = vadd.f32 %v2137, %v2364
        %v2375 = vadd.f32 %v2140, %v2364
        %v2376 = vadd.f32 %v2145, %v2364
        %v2377 = vadd.f32 %v2148, %v2364
        %v2378 = vadd.f32 %v2153, %v2364
        %v2379 = vadd.f32 %v2156, %v2364
        %v2380 = vadd.f32 %v2161, %v2364
        %v2381 = vadd.f32 %v2164, %v2364
        %v2382 = vadd.f32 %v2169, %v2364
        %v2383 = vadd.f32 %v2172, %v2364
        %v2384 = vadd.f32 %v2177, %v2364
        %v2385 = vadd.f32 %v2180, %v2364
        %v2386 = vadd.f32 %v2185, %v2364
        %v2387 = vadd.f32 %v2188, %v2364
        %v2388 = vadd.f32 %v2193, %v2364
        %v2389 = vadd.f32 %v2196, %v2364
        %v2390 = vadd.f32 %v2201, %v2364
        %v2391 = vadd.f32 %v2204, %v2364
        %v2392 = vadd.f32 %v2209, %v2364
        %v2393 = vadd.f32 %v2212, %v2364
        %v2394 = vadd.f32 %v2217, %v2364
        %v2395 = vadd.f32 %v2220, %v2364
        %v2396 = vadd.f32 %v2225, %v2364
        %v2397 = vadd.f32 %v2228, %v2364
        %v2398 = vadd.f32 %v2233, %v2364
        %v2399 = vadd.f32 %v2236, %v2364
        %v2400 = vadd.f32 %v2241, %v2364
        %v2401 = vadd.f32 %v2244, %v2364
        %v2402 = vadd.f32 %v2249, %v2364
        %v2403 = vadd.f32 %v2252, %v2364
        %v2404 = vadd.f32 %v2257, %v2364
        %v2405 = vadd.f32 %v2260, %v2364
        %v2406 = vadd.f32 %v2265, %v2364
        %v2407 = vadd.f32 %v2268, %v2364
        %v2408 = vadd.f32 %v2273, %v2364
        %v2409 = vadd.f32 %v2276, %v2364
        %v2410 = vadd.f32 %v2281, %v2364
        %v2411 = vadd.f32 %v2284, %v2364
        %v2412 = vadd.f32 %v2289, %v2364
        %v2413 = vadd.f32 %v2292, %v2364
        %v2414 = vadd.f32 %v2297, %v2364
        %v2415 = vadd.f32 %v2300, %v2364
        %v2416 = vadd.f32 %v2305, %v2364
        %v2417 = vadd.f32 %v2308, %v2364
        %v2418 = vadd.f32 %v2313, %v2364
        %v2419 = vadd.f32 %v2316, %v2364
        %v2420 = vadd.f32 %v2321, %v2364
        %v2421 = vadd.f32 %v2324, %v2364
        %v2422 = vadd.f32 %v2329, %v2364
        %v2423 = vadd.f32 %v2332, %v2364
        %v2424 = vadd.f32 %v2337, %v2364
        %v2425 = vadd.f32 %v2340, %v2364
        %v2426 = vadd.f32 %v2345, %v2364
        %v2427 = vadd.f32 %v2348, %v2364
        %v2428 = vadd.f32 %v2353, %v2364
        %v2429 = vadd.f32 %v2356, %v2364
        %v2430 = vmax.f32 %v2366, 0.0
        %v2431 = vmax.f32 %v2367, 0.0
        %v2432 = vmax.f32 %v2368, 0.0
        %v2433 = vmax.f32 %v2369, 0.0
        %v2434 = vmax.f32 %v2370, 0.0
        %v2435 = vmax.f32 %v2371, 0.0
        %v2436 = vmax.f32 %v2372, 0.0
        %v2437 = vmax.f32 %v2373, 0.0
        %v2438 = vmax.f32 %v2374, 0.0
        %v2439 = vmax.f32 %v2375, 0.0
        %v2440 = vmax.f32 %v2376, 0.0
        %v2441 = vmax.f32 %v2377, 0.0
        %v2442 = vmax.f32 %v2378, 0.0
        %v2443 = vmax.f32 %v2379, 0.0
        %v2444 = vmax.f32 %v2380, 0.0
        %v2445 = vmax.f32 %v2381, 0.0
        %v2446 = vmax.f32 %v2382, 0.0
        %v2447 = vmax.f32 %v2383, 0.0
        %v2448 = vmax.f32 %v2384, 0.0
        %v2449 = vmax.f32 %v2385, 0.0
        %v2450 = vmax.f32 %v2386, 0.0
        %v2451 = vmax.f32 %v2387, 0.0
        %v2452 = vmax.f32 %v2388, 0.0
        %v2453 = vmax.f32 %v2389, 0.0
        %v2454 = vmax.f32 %v2390, 0.0
        %v2455 = vmax.f32 %v2391, 0.0
        %v2456 = vmax.f32 %v2392, 0.0
        %v2457 = vmax.f32 %v2393, 0.0
        %v2458 = vmax.f32 %v2394, 0.0
        %v2459 = vmax.f32 %v2395, 0.0
        %v2460 = vmax.f32 %v2396, 0.0
        %v2461 = vmax.f32 %v2397, 0.0
        %v2462 = vmax.f32 %v2398, 0.0
        %v2463 = vmax.f32 %v2399, 0.0
        %v2464 = vmax.f32 %v2400, 0.0
        %v2465 = vmax.f32 %v2401, 0.0
        %v2466 = vmax.f32 %v2402, 0.0
        %v2467 = vmax.f32 %v2403, 0.0
        %v2468 = vmax.f32 %v2404, 0.0
        %v2469 = vmax.f32 %v2405, 0.0
        %v2470 = vmax.f32 %v2406, 0.0
        %v2471 = vmax.f32 %v2407, 0.0
        %v2472 = vmax.f32 %v2408, 0.0
        %v2473 = vmax.f32 %v2409, 0.0
        %v2474 = vmax.f32 %v2410, 0.0
        %v2475 = vmax.f32 %v2411, 0.0
        %v2476 = vmax.f32 %v2412, 0.0
        %v2477 = vmax.f32 %v2413, 0.0
        %v2478 = vmax.f32 %v2414, 0.0
        %v2479 = vmax.f32 %v2415, 0.0
        %v2480 = vmax.f32 %v2416, 0.0
        %v2481 = vmax.f32 %v2417, 0.0
        %v2482 = vmax.f32 %v2418, 0.0
        %v2483 = vmax.f32 %v2419, 0.0
        %v2484 = vmax.f32 %v2420, 0.0
        %v2485 = vmax.f32 %v2421, 0.0
        %v2486 = vmax.f32 %v2422, 0.0
        %v2487 = vmax.f32 %v2423, 0.0
        %v2488 = vmax.f32 %v2424, 0.0
        %v2489 = vmax.f32 %v2425, 0.0
        %v2490 = vmax.f32 %v2426, 0.0
        %v2491 = vmax.f32 %v2427, 0.0
        %v2492 = vmax.f32 %v2428, 0.0
        %v2493 = vmax.f32 %v2429, 0.0
        %v2494 = vpack.c.bf16 %v2431, %v2430
        %v2495 = vpack.c.bf16 %v2433, %v2432
        %v2496 = vpack.c.bf16 %v2435, %v2434
        %v2497 = vpack.c.bf16 %v2437, %v2436
        %v2498 = vpack.c.bf16 %v2439, %v2438
        %v2499 = vpack.c.bf16 %v2441, %v2440
        %v2500 = vpack.c.bf16 %v2443, %v2442
        %v2501 = vpack.c.bf16 %v2445, %v2444
        %v2502 = vpack.c.bf16 %v2447, %v2446
        %v2503 = vpack.c.bf16 %v2449, %v2448
        %v2504 = vpack.c.bf16 %v2451, %v2450
        %v2505 = vpack.c.bf16 %v2453, %v2452
        %v2506 = vpack.c.bf16 %v2455, %v2454
        %v2507 = vpack.c.bf16 %v2457, %v2456
        %v2508 = vpack.c.bf16 %v2459, %v2458
        %v2509 = vpack.c.bf16 %v2461, %v2460
        %v2510 = vpack.c.bf16 %v2463, %v2462
        %v2511 = vpack.c.bf16 %v2465, %v2464
        %v2512 = vpack.c.bf16 %v2467, %v2466
        %v2513 = vpack.c.bf16 %v2469, %v2468
        %v2514 = vpack.c.bf16 %v2471, %v2470
        %v2515 = vpack.c.bf16 %v2473, %v2472
        %v2516 = vpack.c.bf16 %v2475, %v2474
        %v2517 = vpack.c.bf16 %v2477, %v2476
        %v2518 = vpack.c.bf16 %v2479, %v2478
        %v2519 = vpack.c.bf16 %v2481, %v2480
        %v2520 = vpack.c.bf16 %v2483, %v2482
        %v2521 = vpack.c.bf16 %v2485, %v2484
        %v2522 = vpack.c.bf16 %v2487, %v2486
        %v2523 = vpack.c.bf16 %v2489, %v2488
        %v2524 = vpack.c.bf16 %v2491, %v2490
        %v2525 = vpack.c.bf16 %v2493, %v2492
        %v2526 = vld [vmem:[%s8] sm:$0xf]
        %v2527 = vld [vmem:[%s8 + $0x4] sm:$0xf]
        %v2528 = vld [vmem:[%s8 + $0x8] sm:$0xf]
        %v2529 = vld [vmem:[%s8 + $0xc] sm:$0xf]
        %s2530 = sld [smem:[#allocation2]]
        %v2531 = vstv %s2530
        %v2536 = vunpack.c.l.b16 %v2526
        %v2537 = vunpack.c.l.b16 %v2527
        %v2538 = vunpack.c.l.b16 %v2528
        %v2539 = vunpack.c.l.b16 %v2529
        %v2540 = vpack.c.b16 %v2537, %v2536
        %v2541 = vpack.c.b16 %v2539, %v2538
        %v2545 = vsel %vm1102, %v2494, 0
        %v2548 = vsel %vm1102, %v2495, 0
        %v2551 = vsel %vm1102, %v2496, 0
        %v2554 = vsel %vm1102, %v2497, 0
        %v2557 = vsel %vm1102, %v2498, 0
        %v2560 = vsel %vm1102, %v2499, 0
        %v2563 = vsel %vm1102, %v2500, 0
        %v2566 = vsel %vm1102, %v2501, 0
        %v2569 = vsel %vm1102, %v2502, 0
        %v2572 = vsel %vm1102, %v2503, 0
        %v2575 = vsel %vm1102, %v2504, 0
        %v2578 = vsel %vm1102, %v2505, 0
        %v2581 = vsel %vm1102, %v2506, 0
        %v2584 = vsel %vm1102, %v2507, 0
        %v2587 = vsel %vm1102, %v2508, 0
        %v2590 = vsel %vm1102, %v2509, 0
        %v2593 = vsel %vm1102, %v2510, 0
        %v2596 = vsel %vm1102, %v2511, 0
        %v2599 = vsel %vm1102, %v2512, 0
        %v2602 = vsel %vm1102, %v2513, 0
        %v2605 = vsel %vm1102, %v2514, 0
        %v2608 = vsel %vm1102, %v2515, 0
        %v2611 = vsel %vm1102, %v2516, 0
        %v2614 = vsel %vm1102, %v2517, 0
        %v2617 = vsel %vm1102, %v2518, 0
        %v2620 = vsel %vm1102, %v2519, 0
        %v2623 = vsel %vm1102, %v2520, 0
        %v2626 = vsel %vm1102, %v2521, 0
        %v2629 = vsel %vm1102, %v2522, 0
        %v2632 = vsel %vm1102, %v2523, 0
        %v2635 = vsel %vm1102, %v2524, 0
        %v2638 = vsel %vm1102, %v2525, 0
        %2640 = vmatprep.subr.bf16.mxu0 0
        %2641 = vmatpush1.bf16.msra.mxu0 %v2540
        %2642 = vmatprep.subr.bf16.mxu0 0
        %2643 = vmatpush1.bf16.msra.mxu0 %v2541
        %2644 = vmatprep.subr.bf16.mxu0 0
        %2645 = vmatpush1.bf16.msra.mxu0 0
        %2646 = vmatprep.subr.bf16.mxu0 0
        %2647 = vmatpush1.bf16.msra.mxu0 0
        %2648 = vmatprep.subr.bf16.mxu0 0
        %2649 = vmatpush1.bf16.msra.mxu0 0
        %2650 = vmatprep.subr.bf16.mxu0 0
        %2651 = vmatpush1.bf16.msra.mxu0 0
        %2652 = vmatprep.subr.bf16.mxu0 0
        %2653 = vmatpush1.bf16.msra.mxu0 0
        %2654 = vmatprep.subr.bf16.mxu0 0
        %2655 = vmatpush1.bf16.msra.mxu0 0
        %2656 = vmatprep.subr.bf16.mxu0 0
        %2657 = vmatpush1.bf16.msra.mxu0 0
        %2658 = vmatprep.subr.bf16.mxu0 0
        %2659 = vmatpush1.bf16.msra.mxu0 0
        %2660 = vmatprep.subr.bf16.mxu0 0
        %2661 = vmatpush1.bf16.msra.mxu0 0
        %2662 = vmatprep.subr.bf16.mxu0 0
        %2663 = vmatpush1.bf16.msra.mxu0 0
        %2664 = vmatprep.subr.bf16.mxu0 0
        %2665 = vmatpush1.bf16.msra.mxu0 0
        %2666 = vmatprep.subr.bf16.mxu0 0
        %2667 = vmatpush1.bf16.msra.mxu0 0
        %2668 = vmatprep.subr.bf16.mxu0 0
        %2669 = vmatpush1.bf16.msra.mxu0 0
        %2670 = vmatprep.subr.bf16.mxu0 0
        %2671 = vmatpush1.bf16.msra.mxu0 0
        %2672 = vmatprep.mubr.bf16.mxu0 0
        %2673 = vmatmul.mubr.bf16.gmra.mrb[0].mxu0 %v2545
        %v2674 = vpop.f32.mrb[0].mxu0
        %v2675 = vadd.f32 %v2531, %v2674
        %v2676 = vpop.f32.mrb[0].mxu0
        %v2677 = vpop.f32.mrb[0].mxu0
        %v2678 = vadd.f32 %v2531, %v2677
        %v2679 = vpop.f32.mrb[0].mxu0
        %2680 = vmatprep.mubr.bf16.mxu0 0
        %2681 = vmatmul.mubr.bf16.gmra.mrb[0].mxu0 %v2548
        %v2682 = vpop.f32.mrb[0].mxu0
        %v2683 = vadd.f32 %v2531, %v2682
        %v2684 = vpop.f32.mrb[0].mxu0
        %v2685 = vpop.f32.mrb[0].mxu0
        %v2686 = vadd.f32 %v2531, %v2685
        %v2687 = vpop.f32.mrb[0].mxu0
        %2688 = vmatprep.mubr.bf16.mxu0 0
        %2689 = vmatmul.mubr.bf16.gmra.mrb[0].mxu0 %v2551
        %v2690 = vpop.f32.mrb[0].mxu0
        %v2691 = vadd.f32 %v2531, %v2690
        %v2692 = vpop.f32.mrb[0].mxu0
        %v2693 = vpop.f32.mrb[0].mxu0
        %v2694 = vadd.f32 %v2531, %v2693
        %v2695 = vpop.f32.mrb[0].mxu0
        %2696 = vmatprep.mubr.bf16.mxu0 0
        %2697 = vmatmul.mubr.bf16.gmra.mrb[0].mxu0 %v2554
        %v2698 = vpop.f32.mrb[0].mxu0
        %v2699 = vadd.f32 %v2531, %v2698
        %v2700 = vpop.f32.mrb[0].mxu0
        %v2701 = vpop.f32.mrb[0].mxu0
        %v2702 = vadd.f32 %v2531, %v2701
        %v2703 = vpop.f32.mrb[0].mxu0
        %2704 = vmatprep.mubr.bf16.mxu0 0
        %2705 = vmatmul.mubr.bf16.gmra.mrb[0].mxu0 %v2557
        %v2706 = vpop.f32.mrb[0].mxu0
        %v2707 = vadd.f32 %v2531, %v2706
        %v2708 = vpop.f32.mrb[0].mxu0
        %v2709 = vpop.f32.mrb[0].mxu0
        %v2710 = vadd.f32 %v2531, %v2709
        %v2711 = vpop.f32.mrb[0].mxu0
        %2712 = vmatprep.mubr.bf16.mxu0 0
        %2713 = vmatmul.mubr.bf16.gmra.mrb[0].mxu0 %v2560
        %v2714 = vpop.f32.mrb[0].mxu0
        %v2715 = vadd.f32 %v2531, %v2714
        %v2716 = vpop.f32.mrb[0].mxu0
        %v2717 = vpop.f32.mrb[0].mxu0
        %v2718 = vadd.f32 %v2531, %v2717
        %v2719 = vpop.f32.mrb[0].mxu0
        %2720 = vmatprep.mubr.bf16.mxu0 0
        %2721 = vmatmul.mubr.bf16.gmra.mrb[0].mxu0 %v2563
        %v2722 = vpop.f32.mrb[0].mxu0
        %v2723 = vadd.f32 %v2531, %v2722
        %v2724 = vpop.f32.mrb[0].mxu0
        %v2725 = vpop.f32.mrb[0].mxu0
        %v2726 = vadd.f32 %v2531, %v2725
        %v2727 = vpop.f32.mrb[0].mxu0
        %2728 = vmatprep.mubr.bf16.mxu0 0
        %2729 = vmatmul.mubr.bf16.gmra.mrb[0].mxu0 %v2566
        %v2730 = vpop.f32.mrb[0].mxu0
        %v2731 = vadd.f32 %v2531, %v2730
        %v2732 = vpop.f32.mrb[0].mxu0
        %v2733 = vpop.f32.mrb[0].mxu0
        %v2734 = vadd.f32 %v2531, %v2733
        %v2735 = vpop.f32.mrb[0].mxu0
        %2736 = vmatprep.mubr.bf16.mxu0 0
        %2737 = vmatmul.mubr.bf16.gmra.mrb[0].mxu0 %v2569
        %v2738 = vpop.f32.mrb[0].mxu0
        %v2739 = vadd.f32 %v2531, %v2738
        %v2740 = vpop.f32.mrb[0].mxu0
        %v2741 = vpop.f32.mrb[0].mxu0
        %v2742 = vadd.f32 %v2531, %v2741
        %v2743 = vpop.f32.mrb[0].mxu0
        %2744 = vmatprep.mubr.bf16.mxu0 0
        %2745 = vmatmul.mubr.bf16.gmra.mrb[0].mxu0 %v2572
        %v2746 = vpop.f32.mrb[0].mxu0
        %v2747 = vadd.f32 %v2531, %v2746
        %v2748 = vpop.f32.mrb[0].mxu0
        %v2749 = vpop.f32.mrb[0].mxu0
        %v2750 = vadd.f32 %v2531, %v2749
        %v2751 = vpop.f32.mrb[0].mxu0
        %2752 = vmatprep.mubr.bf16.mxu0 0
        %2753 = vmatmul.mubr.bf16.gmra.mrb[0].mxu0 %v2575
        %v2754 = vpop.f32.mrb[0].mxu0
        %v2755 = vadd.f32 %v2531, %v2754
        %v2756 = vpop.f32.mrb[0].mxu0
        %v2757 = vpop.f32.mrb[0].mxu0
        %v2758 = vadd.f32 %v2531, %v2757
        %v2759 = vpop.f32.mrb[0].mxu0
        %2760 = vmatprep.mubr.bf16.mxu0 0
        %2761 = vmatmul.mubr.bf16.gmra.mrb[0].mxu0 %v2578
        %v2762 = vpop.f32.mrb[0].mxu0
        %v2763 = vadd.f32 %v2531, %v2762
        %v2764 = vpop.f32.mrb[0].mxu0
        %v2765 = vpop.f32.mrb[0].mxu0
        %v2766 = vadd.f32 %v2531, %v2765
        %v2767 = vpop.f32.mrb[0].mxu0
        %2768 = vmatprep.mubr.bf16.mxu0 0
        %2769 = vmatmul.mubr.bf16.gmra.mrb[0].mxu0 %v2581
        %v2770 = vpop.f32.mrb[0].mxu0
        %v2771 = vadd.f32 %v2531, %v2770
        %v2772 = vpop.f32.mrb[0].mxu0
        %v2773 = vpop.f32.mrb[0].mxu0
        %v2774 = vadd.f32 %v2531, %v2773
        %v2775 = vpop.f32.mrb[0].mxu0
        %2776 = vmatprep.mubr.bf16.mxu0 0
        %2777 = vmatmul.mubr.bf16.gmra.mrb[0].mxu0 %v2584
        %v2778 = vpop.f32.mrb[0].mxu0
        %v2779 = vadd.f32 %v2531, %v2778
        %v2780 = vpop.f32.mrb[0].mxu0
        %v2781 = vpop.f32.mrb[0].mxu0
        %v2782 = vadd.f32 %v2531, %v2781
        %v2783 = vpop.f32.mrb[0].mxu0
        %2784 = vmatprep.mubr.bf16.mxu0 0
        %2785 = vmatmul.mubr.bf16.gmra.mrb[0].mxu0 %v2587
        %v2786 = vpop.f32.mrb[0].mxu0
        %v2787 = vadd.f32 %v2531, %v2786
        %v2788 = vpop.f32.mrb[0].mxu0
        %v2789 = vpop.f32.mrb[0].mxu0
        %v2790 = vadd.f32 %v2531, %v2789
        %v2791 = vpop.f32.mrb[0].mxu0
        %2792 = vmatprep.mubr.bf16.mxu0 0
        %2793 = vmatmul.mubr.bf16.gmra.mrb[0].mxu0 %v2590
        %v2794 = vpop.f32.mrb[0].mxu0
        %v2795 = vadd.f32 %v2531, %v2794
        %v2796 = vpop.f32.mrb[0].mxu0
        %v2797 = vpop.f32.mrb[0].mxu0
        %v2798 = vadd.f32 %v2531, %v2797
        %v2799 = vpop.f32.mrb[0].mxu0
        %2800 = vmatprep.mubr.bf16.mxu0 0
        %2801 = vmatmul.mubr.bf16.gmra.mrb[0].mxu0 %v2593
        %v2802 = vpop.f32.mrb[0].mxu0
        %v2803 = vadd.f32 %v2531, %v2802
        %v2804 = vpop.f32.mrb[0].mxu0
        %v2805 = vpop.f32.mrb[0].mxu0
        %v2806 = vadd.f32 %v2531, %v2805
        %v2807 = vpop.f32.mrb[0].mxu0
        %2808 = vmatprep.mubr.bf16.mxu0 0
        %2809 = vmatmul.mubr.bf16.gmra.mrb[0].mxu0 %v2596
        %v2810 = vpop.f32.mrb[0].mxu0
        %v2811 = vadd.f32 %v2531, %v2810
        %v2812 = vpop.f32.mrb[0].mxu0
        %v2813 = vpop.f32.mrb[0].mxu0
        %v2814 = vadd.f32 %v2531, %v2813
        %v2815 = vpop.f32.mrb[0].mxu0
        %2816 = vmatprep.mubr.bf16.mxu0 0
        %2817 = vmatmul.mubr.bf16.gmra.mrb[0].mxu0 %v2599
        %v2818 = vpop.f32.mrb[0].mxu0
        %v2819 = vadd.f32 %v2531, %v2818
        %v2820 = vpop.f32.mrb[0].mxu0
        %v2821 = vpop.f32.mrb[0].mxu0
        %v2822 = vadd.f32 %v2531, %v2821
        %v2823 = vpop.f32.mrb[0].mxu0
        %2824 = vmatprep.mubr.bf16.mxu0 0
        %2825 = vmatmul.mubr.bf16.gmra.mrb[0].mxu0 %v2602
        %v2826 = vpop.f32.mrb[0].mxu0
        %v2827 = vadd.f32 %v2531, %v2826
        %v2828 = vpop.f32.mrb[0].mxu0
        %v2829 = vpop.f32.mrb[0].mxu0
        %v2830 = vadd.f32 %v2531, %v2829
        %v2831 = vpop.f32.mrb[0].mxu0
        %2832 = vmatprep.mubr.bf16.mxu0 0
        %2833 = vmatmul.mubr.bf16.gmra.mrb[0].mxu0 %v2605
        %v2834 = vpop.f32.mrb[0].mxu0
        %v2835 = vadd.f32 %v2531, %v2834
        %v2836 = vpop.f32.mrb[0].mxu0
        %v2837 = vpop.f32.mrb[0].mxu0
        %v2838 = vadd.f32 %v2531, %v2837
        %v2839 = vpop.f32.mrb[0].mxu0
        %2840 = vmatprep.mubr.bf16.mxu0 0
        %2841 = vmatmul.mubr.bf16.gmra.mrb[0].mxu0 %v2608
        %v2842 = vpop.f32.mrb[0].mxu0
        %v2843 = vadd.f32 %v2531, %v2842
        %v2844 = vpop.f32.mrb[0].mxu0
        %v2845 = vpop.f32.mrb[0].mxu0
        %v2846 = vadd.f32 %v2531, %v2845
        %v2847 = vpop.f32.mrb[0].mxu0
        %2848 = vmatprep.mubr.bf16.mxu0 0
        %2849 = vmatmul.mubr.bf16.gmra.mrb[0].mxu0 %v2611
        %v2850 = vpop.f32.mrb[0].mxu0
        %v2851 = vadd.f32 %v2531, %v2850
        %v2852 = vpop.f32.mrb[0].mxu0
        %v2853 = vpop.f32.mrb[0].mxu0
        %v2854 = vadd.f32 %v2531, %v2853
        %v2855 = vpop.f32.mrb[0].mxu0
        %2856 = vmatprep.mubr.bf16.mxu0 0
        %2857 = vmatmul.mubr.bf16.gmra.mrb[0].mxu0 %v2614
        %v2858 = vpop.f32.mrb[0].mxu0
        %v2859 = vadd.f32 %v2531, %v2858
        %v2860 = vpop.f32.mrb[0].mxu0
        %v2861 = vpop.f32.mrb[0].mxu0
        %v2862 = vadd.f32 %v2531, %v2861
        %v2863 = vpop.f32.mrb[0].mxu0
        %2864 = vmatprep.mubr.bf16.mxu0 0
        %2865 = vmatmul.mubr.bf16.gmra.mrb[0].mxu0 %v2617
        %v2866 = vpop.f32.mrb[0].mxu0
        %v2867 = vadd.f32 %v2531, %v2866
        %v2868 = vpop.f32.mrb[0].mxu0
        %v2869 = vpop.f32.mrb[0].mxu0
        %v2870 = vadd.f32 %v2531, %v2869
        %v2871 = vpop.f32.mrb[0].mxu0
        %2872 = vmatprep.mubr.bf16.mxu0 0
        %2873 = vmatmul.mubr.bf16.gmra.mrb[0].mxu0 %v2620
        %v2874 = vpop.f32.mrb[0].mxu0
        %v2875 = vadd.f32 %v2531, %v2874
        %v2876 = vpop.f32.mrb[0].mxu0
        %v2877 = vpop.f32.mrb[0].mxu0
        %v2878 = vadd.f32 %v2531, %v2877
        %v2879 = vpop.f32.mrb[0].mxu0
        %2880 = vmatprep.mubr.bf16.mxu0 0
        %2881 = vmatmul.mubr.bf16.gmra.mrb[0].mxu0 %v2623
        %v2882 = vpop.f32.mrb[0].mxu0
        %v2883 = vadd.f32 %v2531, %v2882
        %v2884 = vpop.f32.mrb[0].mxu0
        %v2885 = vpop.f32.mrb[0].mxu0
        %v2886 = vadd.f32 %v2531, %v2885
        %v2887 = vpop.f32.mrb[0].mxu0
        %2888 = vmatprep.mubr.bf16.mxu0 0
        %2889 = vmatmul.mubr.bf16.gmra.mrb[0].mxu0 %v2626
        %v2890 = vpop.f32.mrb[0].mxu0
        %v2891 = vadd.f32 %v2531, %v2890
        %v2892 = vpop.f32.mrb[0].mxu0
        %v2893 = vpop.f32.mrb[0].mxu0
        %v2894 = vadd.f32 %v2531, %v2893
        %v2895 = vpop.f32.mrb[0].mxu0
        %2896 = vmatprep.mubr.bf16.mxu0 0
        %2897 = vmatmul.mubr.bf16.gmra.mrb[0].mxu0 %v2629
        %v2898 = vpop.f32.mrb[0].mxu0
        %v2899 = vadd.f32 %v2531, %v2898
        %v2900 = vpop.f32.mrb[0].mxu0
        %v2901 = vpop.f32.mrb[0].mxu0
        %v2902 = vadd.f32 %v2531, %v2901
        %v2903 = vpop.f32.mrb[0].mxu0
        %2904 = vmatprep.mubr.bf16.mxu0 0
        %2905 = vmatmul.mubr.bf16.gmra.mrb[0].mxu0 %v2632
        %v2906 = vpop.f32.mrb[0].mxu0
        %v2907 = vadd.f32 %v2531, %v2906
        %v2908 = vpop.f32.mrb[0].mxu0
        %v2909 = vpop.f32.mrb[0].mxu0
        %v2910 = vadd.f32 %v2531, %v2909
        %v2911 = vpop.f32.mrb[0].mxu0
        %2912 = vmatprep.mubr.bf16.mxu0 0
        %2913 = vmatmul.mubr.bf16.gmra.mrb[0].mxu0 %v2635
        %v2914 = vpop.f32.mrb[0].mxu0
        %v2915 = vadd.f32 %v2531, %v2914
        %v2916 = vpop.f32.mrb[0].mxu0
        %v2917 = vpop.f32.mrb[0].mxu0
        %v2918 = vadd.f32 %v2531, %v2917
        %v2919 = vpop.f32.mrb[0].mxu0
        %2920 = vmatprep.mubr.bf16.mxu0 0
        %2921 = vmatmul.mubr.bf16.gmra.mrb[0].mxu0 %v2638
        %v2922 = vpop.f32.mrb[0].mxu0
        %v2923 = vadd.f32 %v2531, %v2922
        %v2924 = vpop.f32.mrb[0].mxu0
        %v2925 = vpop.f32.mrb[0].mxu0
        %v2926 = vadd.f32 %v2531, %v2925
        %v2927 = vpop.f32.mrb[0].mxu0
        %2928 = vdwg.mxu0
        %2993 = vset.pattern.permute.xlu0 0
        %2994 = vperm.xlu0 %2993, %v2675
        %v2995 = vpop.permute.xlu0 %2994
        %2996 = vset.pattern.permute.xlu0 0
        %2997 = vperm.xlu0 %2996, %v2678
        %v2998 = vpop.permute.xlu0 %2997
        %2999 = vset.pattern.permute.xlu0 0
        %3000 = vperm.xlu0 %2999, %v2683
        %v3001 = vpop.permute.xlu0 %3000
        %3002 = vset.pattern.permute.xlu0 0
        %3003 = vperm.xlu0 %3002, %v2686
        %v3004 = vpop.permute.xlu0 %3003
        %3005 = vset.pattern.permute.xlu0 0
        %3006 = vperm.xlu0 %3005, %v2691
        %v3007 = vpop.permute.xlu0 %3006
        %3008 = vset.pattern.permute.xlu0 0
        %3009 = vperm.xlu0 %3008, %v2694
        %v3010 = vpop.permute.xlu0 %3009
        %3011 = vset.pattern.permute.xlu0 0
        %3012 = vperm.xlu0 %3011, %v2699
        %v3013 = vpop.permute.xlu0 %3012
        %3014 = vset.pattern.permute.xlu0 0
        %3015 = vperm.xlu0 %3014, %v2702
        %v3016 = vpop.permute.xlu0 %3015
        %3017 = vset.pattern.permute.xlu0 0
        %3018 = vperm.xlu0 %3017, %v2707
        %v3019 = vpop.permute.xlu0 %3018
        %3020 = vset.pattern.permute.xlu0 0
        %3021 = vperm.xlu0 %3020, %v2710
        %v3022 = vpop.permute.xlu0 %3021
        %3023 = vset.pattern.permute.xlu0 0
        %3024 = vperm.xlu0 %3023, %v2715
        %v3025 = vpop.permute.xlu0 %3024
        %3026 = vset.pattern.permute.xlu0 0
        %3027 = vperm.xlu0 %3026, %v2718
        %v3028 = vpop.permute.xlu0 %3027
        %3029 = vset.pattern.permute.xlu0 0
        %3030 = vperm.xlu0 %3029, %v2723
        %v3031 = vpop.permute.xlu0 %3030
        %3032 = vset.pattern.permute.xlu0 0
        %3033 = vperm.xlu0 %3032, %v2726
        %v3034 = vpop.permute.xlu0 %3033
        %3035 = vset.pattern.permute.xlu0 0
        %3036 = vperm.xlu0 %3035, %v2731
        %v3037 = vpop.permute.xlu0 %3036
        %3038 = vset.pattern.permute.xlu0 0
        %3039 = vperm.xlu0 %3038, %v2734
        %v3040 = vpop.permute.xlu0 %3039
        %3041 = vset.pattern.permute.xlu0 0
        %3042 = vperm.xlu0 %3041, %v2739
        %v3043 = vpop.permute.xlu0 %3042
        %3044 = vset.pattern.permute.xlu0 0
        %3045 = vperm.xlu0 %3044, %v2742
        %v3046 = vpop.permute.xlu0 %3045
        %3047 = vset.pattern.permute.xlu0 0
        %3048 = vperm.xlu0 %3047, %v2747
        %v3049 = vpop.permute.xlu0 %3048
        %3050 = vset.pattern.permute.xlu0 0
        %3051 = vperm.xlu0 %3050, %v2750
        %v3052 = vpop.permute.xlu0 %3051
        %3053 = vset.pattern.permute.xlu0 0
        %3054 = vperm.xlu0 %3053, %v2755
        %v3055 = vpop.permute.xlu0 %3054
        %3056 = vset.pattern.permute.xlu0 0
        %3057 = vperm.xlu0 %3056, %v2758
        %v3058 = vpop.permute.xlu0 %3057
        %3059 = vset.pattern.permute.xlu0 0
        %3060 = vperm.xlu0 %3059, %v2763
        %v3061 = vpop.permute.xlu0 %3060
        %3062 = vset.pattern.permute.xlu0 0
        %3063 = vperm.xlu0 %3062, %v2766
        %v3064 = vpop.permute.xlu0 %3063
        %3065 = vset.pattern.permute.xlu0 0
        %3066 = vperm.xlu0 %3065, %v2771
        %v3067 = vpop.permute.xlu0 %3066
        %3068 = vset.pattern.permute.xlu0 0
        %3069 = vperm.xlu0 %3068, %v2774
        %v3070 = vpop.permute.xlu0 %3069
        %3071 = vset.pattern.permute.xlu0 0
        %3072 = vperm.xlu0 %3071, %v2779
        %v3073 = vpop.permute.xlu0 %3072
        %3074 = vset.pattern.permute.xlu0 0
        %3075 = vperm.xlu0 %3074, %v2782
        %v3076 = vpop.permute.xlu0 %3075
        %3077 = vset.pattern.permute.xlu0 0
        %3078 = vperm.xlu0 %3077, %v2787
        %v3079 = vpop.permute.xlu0 %3078
        %3080 = vset.pattern.permute.xlu0 0
        %3081 = vperm.xlu0 %3080, %v2790
        %v3082 = vpop.permute.xlu0 %3081
        %3083 = vset.pattern.permute.xlu0 0
        %3084 = vperm.xlu0 %3083, %v2795
        %v3085 = vpop.permute.xlu0 %3084
        %3086 = vset.pattern.permute.xlu0 0
        %3087 = vperm.xlu0 %3086, %v2798
        %v3088 = vpop.permute.xlu0 %3087
        %3089 = vset.pattern.permute.xlu0 0
        %3090 = vperm.xlu0 %3089, %v2803
        %v3091 = vpop.permute.xlu0 %3090
        %3092 = vset.pattern.permute.xlu0 0
        %3093 = vperm.xlu0 %3092, %v2806
        %v3094 = vpop.permute.xlu0 %3093
        %3095 = vset.pattern.permute.xlu0 0
        %3096 = vperm.xlu0 %3095, %v2811
        %v3097 = vpop.permute.xlu0 %3096
        %3098 = vset.pattern.permute.xlu0 0
        %3099 = vperm.xlu0 %3098, %v2814
        %v3100 = vpop.permute.xlu0 %3099
        %3101 = vset.pattern.permute.xlu0 0
        %3102 = vperm.xlu0 %3101, %v2819
        %v3103 = vpop.permute.xlu0 %3102
        %3104 = vset.pattern.permute.xlu0 0
        %3105 = vperm.xlu0 %3104, %v2822
        %v3106 = vpop.permute.xlu0 %3105
        %3107 = vset.pattern.permute.xlu0 0
        %3108 = vperm.xlu0 %3107, %v2827
        %v3109 = vpop.permute.xlu0 %3108
        %3110 = vset.pattern.permute.xlu0 0
        %3111 = vperm.xlu0 %3110, %v2830
        %v3112 = vpop.permute.xlu0 %3111
        %3113 = vset.pattern.permute.xlu0 0
        %3114 = vperm.xlu0 %3113, %v2835
        %v3115 = vpop.permute.xlu0 %3114
        %3116 = vset.pattern.permute.xlu0 0
        %3117 = vperm.xlu0 %3116, %v2838
        %v3118 = vpop.permute.xlu0 %3117
        %3119 = vset.pattern.permute.xlu0 0
        %3120 = vperm.xlu0 %3119, %v2843
        %v3121 = vpop.permute.xlu0 %3120
        %3122 = vset.pattern.permute.xlu0 0
        %3123 = vperm.xlu0 %3122, %v2846
        %v3124 = vpop.permute.xlu0 %3123
        %3125 = vset.pattern.permute.xlu0 0
        %3126 = vperm.xlu0 %3125, %v2851
        %v3127 = vpop.permute.xlu0 %3126
        %3128 = vset.pattern.permute.xlu0 0
        %3129 = vperm.xlu0 %3128, %v2854
        %v3130 = vpop.permute.xlu0 %3129
        %3131 = vset.pattern.permute.xlu0 0
        %3132 = vperm.xlu0 %3131, %v2859
        %v3133 = vpop.permute.xlu0 %3132
        %3134 = vset.pattern.permute.xlu0 0
        %3135 = vperm.xlu0 %3134, %v2862
        %v3136 = vpop.permute.xlu0 %3135
        %3137 = vset.pattern.permute.xlu0 0
        %3138 = vperm.xlu0 %3137, %v2867
        %v3139 = vpop.permute.xlu0 %3138
        %3140 = vset.pattern.permute.xlu0 0
        %3141 = vperm.xlu0 %3140, %v2870
        %v3142 = vpop.permute.xlu0 %3141
        %3143 = vset.pattern.permute.xlu0 0
        %3144 = vperm.xlu0 %3143, %v2875
        %v3145 = vpop.permute.xlu0 %3144
        %3146 = vset.pattern.permute.xlu0 0
        %3147 = vperm.xlu0 %3146, %v2878
        %v3148 = vpop.permute.xlu0 %3147
        %3149 = vset.pattern.permute.xlu0 0
        %3150 = vperm.xlu0 %3149, %v2883
        %v3151 = vpop.permute.xlu0 %3150
        %3152 = vset.pattern.permute.xlu0 0
        %3153 = vperm.xlu0 %3152, %v2886
        %v3154 = vpop.permute.xlu0 %3153
        %3155 = vset.pattern.permute.xlu0 0
        %3156 = vperm.xlu0 %3155, %v2891
        %v3157 = vpop.permute.xlu0 %3156
        %3158 = vset.pattern.permute.xlu0 0
        %3159 = vperm.xlu0 %3158, %v2894
        %v3160 = vpop.permute.xlu0 %3159
        %3161 = vset.pattern.permute.xlu0 0
        %3162 = vperm.xlu0 %3161, %v2899
        %v3163 = vpop.permute.xlu0 %3162
        %3164 = vset.pattern.permute.xlu0 0
        %3165 = vperm.xlu0 %3164, %v2902
        %v3166 = vpop.permute.xlu0 %3165
        %3167 = vset.pattern.permute.xlu0 0
        %3168 = vperm.xlu0 %3167, %v2907
        %v3169 = vpop.permute.xlu0 %3168
        %3170 = vset.pattern.permute.xlu0 0
        %3171 = vperm.xlu0 %3170, %v2910
        %v3172 = vpop.permute.xlu0 %3171
        %3173 = vset.pattern.permute.xlu0 0
        %3174 = vperm.xlu0 %3173, %v2915
        %v3175 = vpop.permute.xlu0 %3174
        %3176 = vset.pattern.permute.xlu0 0
        %3177 = vperm.xlu0 %3176, %v2918
        %v3178 = vpop.permute.xlu0 %3177
        %3179 = vset.pattern.permute.xlu0 0
        %3180 = vperm.xlu0 %3179, %v2923
        %v3181 = vpop.permute.xlu0 %3180
        %3182 = vset.pattern.permute.xlu0 0
        %3183 = vperm.xlu0 %3182, %v2926
        %v3184 = vpop.permute.xlu0 %3183
        %v3185 = vlaneseq
        %v3186 = vand.u32 %v3185, 127
        %v3187 = vlaneseq
        %v3188 = vshrl.u32 %v3187, 7
        %v3189 = vsub.s32 %v3186, %v3188
        %v3190 = vrot.slane %v2995, %v3189
        %v3191 = vlaneseq
        %v3192 = vshrl.u32 %v3191, 7
        %v3193 = vsub.s32 %v3186, %v3192
        %v3194 = vrot.slane %v2998, %v3193
        %v3195 = vlaneseq
        %v3196 = vshrl.u32 %v3195, 7
        %v3197 = vsub.s32 %v3186, %v3196
        %v3198 = vrot.slane %v3001, %v3197
        %v3199 = vlaneseq
        %v3200 = vshrl.u32 %v3199, 7
        %v3201 = vsub.s32 %v3186, %v3200
        %v3202 = vrot.slane %v3004, %v3201
        %v3203 = vlaneseq
        %v3204 = vshrl.u32 %v3203, 7
        %v3205 = vsub.s32 %v3186, %v3204
        %v3206 = vrot.slane %v3007, %v3205
        %v3207 = vlaneseq
        %v3208 = vshrl.u32 %v3207, 7
        %v3209 = vsub.s32 %v3186, %v3208
        %v3210 = vrot.slane %v3010, %v3209
        %v3211 = vlaneseq
        %v3212 = vshrl.u32 %v3211, 7
        %v3213 = vsub.s32 %v3186, %v3212
        %v3214 = vrot.slane %v3013, %v3213
        %v3215 = vlaneseq
        %v3216 = vshrl.u32 %v3215, 7
        %v3217 = vsub.s32 %v3186, %v3216
        %v3218 = vrot.slane %v3016, %v3217
        %v3219 = vlaneseq
        %v3220 = vshrl.u32 %v3219, 7
        %v3221 = vsub.s32 %v3186, %v3220
        %v3222 = vrot.slane %v3019, %v3221
        %v3223 = vlaneseq
        %v3224 = vshrl.u32 %v3223, 7
        %v3225 = vsub.s32 %v3186, %v3224
        %v3226 = vrot.slane %v3022, %v3225
        %v3227 = vlaneseq
        %v3228 = vshrl.u32 %v3227, 7
        %v3229 = vsub.s32 %v3186, %v3228
        %v3230 = vrot.slane %v3025, %v3229
        %v3231 = vlaneseq
        %v3232 = vshrl.u32 %v3231, 7
        %v3233 = vsub.s32 %v3186, %v3232
        %v3234 = vrot.slane %v3028, %v3233
        %v3235 = vlaneseq
        %v3236 = vshrl.u32 %v3235, 7
        %v3237 = vsub.s32 %v3186, %v3236
        %v3238 = vrot.slane %v3031, %v3237
        %v3239 = vlaneseq
        %v3240 = vshrl.u32 %v3239, 7
        %v3241 = vsub.s32 %v3186, %v3240
        %v3242 = vrot.slane %v3034, %v3241
        %v3243 = vlaneseq
        %v3244 = vshrl.u32 %v3243, 7
        %v3245 = vsub.s32 %v3186, %v3244
        %v3246 = vrot.slane %v3037, %v3245
        %v3247 = vlaneseq
        %v3248 = vshrl.u32 %v3247, 7
        %v3249 = vsub.s32 %v3186, %v3248
        %v3250 = vrot.slane %v3040, %v3249
        %v3251 = vlaneseq
        %v3252 = vshrl.u32 %v3251, 7
        %v3253 = vsub.s32 %v3186, %v3252
        %v3254 = vrot.slane %v3043, %v3253
        %v3255 = vlaneseq
        %v3256 = vshrl.u32 %v3255, 7
        %v3257 = vsub.s32 %v3186, %v3256
        %v3258 = vrot.slane %v3046, %v3257
        %v3259 = vlaneseq
        %v3260 = vshrl.u32 %v3259, 7
        %v3261 = vsub.s32 %v3186, %v3260
        %v3262 = vrot.slane %v3049, %v3261
        %v3263 = vlaneseq
        %v3264 = vshrl.u32 %v3263, 7
        %v3265 = vsub.s32 %v3186, %v3264
        %v3266 = vrot.slane %v3052, %v3265
        %v3267 = vlaneseq
        %v3268 = vshrl.u32 %v3267, 7
        %v3269 = vsub.s32 %v3186, %v3268
        %v3270 = vrot.slane %v3055, %v3269
        %v3271 = vlaneseq
        %v3272 = vshrl.u32 %v3271, 7
        %v3273 = vsub.s32 %v3186, %v3272
        %v3274 = vrot.slane %v3058, %v3273
        %v3275 = vlaneseq
        %v3276 = vshrl.u32 %v3275, 7
        %v3277 = vsub.s32 %v3186, %v3276
        %v3278 = vrot.slane %v3061, %v3277
        %v3279 = vlaneseq
        %v3280 = vshrl.u32 %v3279, 7
        %v3281 = vsub.s32 %v3186, %v3280
        %v3282 = vrot.slane %v3064, %v3281
        %v3283 = vlaneseq
        %v3284 = vshrl.u32 %v3283, 7
        %v3285 = vsub.s32 %v3186, %v3284
        %v3286 = vrot.slane %v3067, %v3285
        %v3287 = vlaneseq
        %v3288 = vshrl.u32 %v3287, 7
        %v3289 = vsub.s32 %v3186, %v3288
        %v3290 = vrot.slane %v3070, %v3289
        %v3291 = vlaneseq
        %v3292 = vshrl.u32 %v3291, 7
        %v3293 = vsub.s32 %v3186, %v3292
        %v3294 = vrot.slane %v3073, %v3293
        %v3295 = vlaneseq
        %v3296 = vshrl.u32 %v3295, 7
        %v3297 = vsub.s32 %v3186, %v3296
        %v3298 = vrot.slane %v3076, %v3297
        %v3299 = vlaneseq
        %v3300 = vshrl.u32 %v3299, 7
        %v3301 = vsub.s32 %v3186, %v3300
        %v3302 = vrot.slane %v3079, %v3301
        %v3303 = vlaneseq
        %v3304 = vshrl.u32 %v3303, 7
        %v3305 = vsub.s32 %v3186, %v3304
        %v3306 = vrot.slane %v3082, %v3305
        %v3307 = vlaneseq
        %v3308 = vshrl.u32 %v3307, 7
        %v3309 = vsub.s32 %v3186, %v3308
        %v3310 = vrot.slane %v3085, %v3309
        %v3311 = vlaneseq
        %v3312 = vshrl.u32 %v3311, 7
        %v3313 = vsub.s32 %v3186, %v3312
        %v3314 = vrot.slane %v3088, %v3313
        %v3315 = vlaneseq
        %v3316 = vshrl.u32 %v3315, 7
        %v3317 = vsub.s32 %v3186, %v3316
        %v3318 = vrot.slane %v3091, %v3317
        %v3319 = vlaneseq
        %v3320 = vshrl.u32 %v3319, 7
        %v3321 = vsub.s32 %v3186, %v3320
        %v3322 = vrot.slane %v3094, %v3321
        %v3323 = vlaneseq
        %v3324 = vshrl.u32 %v3323, 7
        %v3325 = vsub.s32 %v3186, %v3324
        %v3326 = vrot.slane %v3097, %v3325
        %v3327 = vlaneseq
        %v3328 = vshrl.u32 %v3327, 7
        %v3329 = vsub.s32 %v3186, %v3328
        %v3330 = vrot.slane %v3100, %v3329
        %v3331 = vlaneseq
        %v3332 = vshrl.u32 %v3331, 7
        %v3333 = vsub.s32 %v3186, %v3332
        %v3334 = vrot.slane %v3103, %v3333
        %v3335 = vlaneseq
        %v3336 = vshrl.u32 %v3335, 7
        %v3337 = vsub.s32 %v3186, %v3336
        %v3338 = vrot.slane %v3106, %v3337
        %v3339 = vlaneseq
        %v3340 = vshrl.u32 %v3339, 7
        %v3341 = vsub.s32 %v3186, %v3340
        %v3342 = vrot.slane %v3109, %v3341
        %v3343 = vlaneseq
        %v3344 = vshrl.u32 %v3343, 7
        %v3345 = vsub.s32 %v3186, %v3344
        %v3346 = vrot.slane %v3112, %v3345
        %v3347 = vlaneseq
        %v3348 = vshrl.u32 %v3347, 7
        %v3349 = vsub.s32 %v3186, %v3348
        %v3350 = vrot.slane %v3115, %v3349
        %v3351 = vlaneseq
        %v3352 = vshrl.u32 %v3351, 7
        %v3353 = vsub.s32 %v3186, %v3352
        %v3354 = vrot.slane %v3118, %v3353
        %v3355 = vlaneseq
        %v3356 = vshrl.u32 %v3355, 7
        %v3357 = vsub.s32 %v3186, %v3356
        %v3358 = vrot.slane %v3121, %v3357
        %v3359 = vlaneseq
        %v3360 = vshrl.u32 %v3359, 7
        %v3361 = vsub.s32 %v3186, %v3360
        %v3362 = vrot.slane %v3124, %v3361
        %v3363 = vlaneseq
        %v3364 = vshrl.u32 %v3363, 7
        %v3365 = vsub.s32 %v3186, %v3364
        %v3366 = vrot.slane %v3127, %v3365
        %v3367 = vlaneseq
        %v3368 = vshrl.u32 %v3367, 7
        %v3369 = vsub.s32 %v3186, %v3368
        %v3370 = vrot.slane %v3130, %v3369
        %v3371 = vlaneseq
        %v3372 = vshrl.u32 %v3371, 7
        %v3373 = vsub.s32 %v3186, %v3372
        %v3374 = vrot.slane %v3133, %v3373
        %v3375 = vlaneseq
        %v3376 = vshrl.u32 %v3375, 7
        %v3377 = vsub.s32 %v3186, %v3376
        %v3378 = vrot.slane %v3136, %v3377
        %v3379 = vlaneseq
        %v3380 = vshrl.u32 %v3379, 7
        %v3381 = vsub.s32 %v3186, %v3380
        %v3382 = vrot.slane %v3139, %v3381
        %v3383 = vlaneseq
        %v3384 = vshrl.u32 %v3383, 7
        %v3385 = vsub.s32 %v3186, %v3384
        %v3386 = vrot.slane %v3142, %v3385
        %v3387 = vlaneseq
        %v3388 = vshrl.u32 %v3387, 7
        %v3389 = vsub.s32 %v3186, %v3388
        %v3390 = vrot.slane %v3145, %v3389
        %v3391 = vlaneseq
        %v3392 = vshrl.u32 %v3391, 7
        %v3393 = vsub.s32 %v3186, %v3392
        %v3394 = vrot.slane %v3148, %v3393
        %v3395 = vlaneseq
        %v3396 = vshrl.u32 %v3395, 7
        %v3397 = vsub.s32 %v3186, %v3396
        %v3398 = vrot.slane %v3151, %v3397
        %v3399 = vlaneseq
        %v3400 = vshrl.u32 %v3399, 7
        %v3401 = vsub.s32 %v3186, %v3400
        %v3402 = vrot.slane %v3154, %v3401
        %v3403 = vlaneseq
        %v3404 = vshrl.u32 %v3403, 7
        %v3405 = vsub.s32 %v3186, %v3404
        %v3406 = vrot.slane %v3157, %v3405
        %v3407 = vlaneseq
        %v3408 = vshrl.u32 %v3407, 7
        %v3409 = vsub.s32 %v3186, %v3408
        %v3410 = vrot.slane %v3160, %v3409
        %v3411 = vlaneseq
        %v3412 = vshrl.u32 %v3411, 7
        %v3413 = vsub.s32 %v3186, %v3412
        %v3414 = vrot.slane %v3163, %v3413
        %v3415 = vlaneseq
        %v3416 = vshrl.u32 %v3415, 7
        %v3417 = vsub.s32 %v3186, %v3416
        %v3418 = vrot.slane %v3166, %v3417
        %v3419 = vlaneseq
        %v3420 = vshrl.u32 %v3419, 7
        %v3421 = vsub.s32 %v3186, %v3420
        %v3422 = vrot.slane %v3169, %v3421
        %v3423 = vlaneseq
        %v3424 = vshrl.u32 %v3423, 7
        %v3425 = vsub.s32 %v3186, %v3424
        %v3426 = vrot.slane %v3172, %v3425
        %v3427 = vlaneseq
        %v3428 = vshrl.u32 %v3427, 7
        %v3429 = vsub.s32 %v3186, %v3428
        %v3430 = vrot.slane %v3175, %v3429
        %v3431 = vlaneseq
        %v3432 = vshrl.u32 %v3431, 7
        %v3433 = vsub.s32 %v3186, %v3432
        %v3434 = vrot.slane %v3178, %v3433
        %v3435 = vlaneseq
        %v3436 = vshrl.u32 %v3435, 7
        %v3437 = vsub.s32 %v3186, %v3436
        %v3438 = vrot.slane %v3181, %v3437
        %v3439 = vlaneseq
        %v3440 = vshrl.u32 %v3439, 7
        %v3441 = vsub.s32 %v3186, %v3440
        %v3442 = vrot.slane %v3184, %v3441
        %vm3443 = vcmask 1041409
        %v3444 = vsel %vm3443, %v3194, %v3190
        %vm3445 = vcmask 1042434
        %v3446 = vsel %vm3445, %v3198, %v3444
        %vm3447 = vcmask 1043459
        %v3448 = vsel %vm3447, %v3202, %v3446
        %vm3449 = vcmask 1044484
        %v3450 = vsel %vm3449, %v3206, %v3448
        %vm3451 = vcmask 1045509
        %v3452 = vsel %vm3451, %v3210, %v3450
        %vm3453 = vcmask 1046534
        %v3454 = vsel %vm3453, %v3214, %v3452
        %vm3455 = vcmask 1047559
        %v3456 = vsel %vm3455, %v3218, %v3454
        %v3457 = vsel %vm3443, %v3226, %v3222
        %v3458 = vsel %vm3445, %v3230, %v3457
        %v3459 = vsel %vm3447, %v3234, %v3458
        %v3460 = vsel %vm3449, %v3238, %v3459
        %v3461 = vsel %vm3451, %v3242, %v3460
        %v3462 = vsel %vm3453, %v3246, %v3461
        %v3463 = vsel %vm3455, %v3250, %v3462
        %v3464 = vsel %vm3443, %v3258, %v3254
        %v3465 = vsel %vm3445, %v3262, %v3464
        %v3466 = vsel %vm3447, %v3266, %v3465
        %v3467 = vsel %vm3449, %v3270, %v3466
        %v3468 = vsel %vm3451, %v3274, %v3467
        %v3469 = vsel %vm3453, %v3278, %v3468
        %v3470 = vsel %vm3455, %v3282, %v3469
        %v3471 = vsel %vm3443, %v3290, %v3286
        %v3472 = vsel %vm3445, %v3294, %v3471
        %v3473 = vsel %vm3447, %v3298, %v3472
        %v3474 = vsel %vm3449, %v3302, %v3473
        %v3475 = vsel %vm3451, %v3306, %v3474
        %v3476 = vsel %vm3453, %v3310, %v3475
        %v3477 = vsel %vm3455, %v3314, %v3476
        %v3478 = vsel %vm3443, %v3322, %v3318
        %v3479 = vsel %vm3445, %v3326, %v3478
        %v3480 = vsel %vm3447, %v3330, %v3479
        %v3481 = vsel %vm3449, %v3334, %v3480
        %v3482 = vsel %vm3451, %v3338, %v3481
        %v3483 = vsel %vm3453, %v3342, %v3482
        %v3484 = vsel %vm3455, %v3346, %v3483
        %v3485 = vsel %vm3443, %v3354, %v3350
        %v3486 = vsel %vm3445, %v3358, %v3485
        %v3487 = vsel %vm3447, %v3362, %v3486
        %v3488 = vsel %vm3449, %v3366, %v3487
        %v3489 = vsel %vm3451, %v3370, %v3488
        %v3490 = vsel %vm3453, %v3374, %v3489
        %v3491 = vsel %vm3455, %v3378, %v3490
        %v3492 = vsel %vm3443, %v3386, %v3382
        %v3493 = vsel %vm3445, %v3390, %v3492
        %v3494 = vsel %vm3447, %v3394, %v3493
        %v3495 = vsel %vm3449, %v3398, %v3494
        %v3496 = vsel %vm3451, %v3402, %v3495
        %v3497 = vsel %vm3453, %v3406, %v3496
        %v3498 = vsel %vm3455, %v3410, %v3497
        %v3499 = vsel %vm3443, %v3418, %v3414
        %v3500 = vsel %vm3445, %v3422, %v3499
        %v3501 = vsel %vm3447, %v3426, %v3500
        %v3502 = vsel %vm3449, %v3430, %v3501
        %v3503 = vsel %vm3451, %v3434, %v3502
        %v3504 = vsel %vm3453, %v3438, %v3503
        %v3505 = vsel %vm3455, %v3442, %v3504
        %vm3514 = vcmask 64512
        %v3515 = vsel %vm3514, %v3456, -inf
        %3516 = vmax.xlane.f32.xlu0 %v3515
        %v3517 = vpop.xlane.xlu0 %3516
        %v3518 = vsel %vm3514, %v3463, -inf
        %3519 = vmax.xlane.f32.xlu0 %v3518
        %v3520 = vpop.xlane.xlu0 %3519
        %v3521 = vsel %vm3514, %v3470, -inf
        %3522 = vmax.xlane.f32.xlu0 %v3521
        %v3523 = vpop.xlane.xlu0 %3522
        %v3524 = vsel %vm3514, %v3477, -inf
        %3525 = vmax.xlane.f32.xlu0 %v3524
        %v3526 = vpop.xlane.xlu0 %3525
        %v3527 = vsel %vm3514, %v3484, -inf
        %3528 = vmax.xlane.f32.xlu0 %v3527
        %v3529 = vpop.xlane.xlu0 %3528
        %v3530 = vsel %vm3514, %v3491, -inf
        %3531 = vmax.xlane.f32.xlu0 %v3530
        %v3532 = vpop.xlane.xlu0 %3531
        %v3533 = vsel %vm3514, %v3498, -inf
        %3534 = vmax.xlane.f32.xlu0 %v3533
        %v3535 = vpop.xlane.xlu0 %3534
        %v3536 = vsel %vm3514, %v3505, -inf
        %3537 = vmax.xlane.f32.xlu0 %v3536
        %v3538 = vpop.xlane.xlu0 %3537
        %v3547 = vlaneseq
        %v3548 = vshrl.u32 %v3547, 7
        %v3549 = vsub.s32 0, %v3548
        %v3550 = vrot.slane %v3517, %v3549
        %v3551 = vlaneseq
        %v3552 = vshrl.u32 %v3551, 7
        %v3553 = vsub.s32 1, %v3552
        %v3554 = vrot.slane %v3517, %v3553
        %v3555 = vlaneseq
        %v3556 = vshrl.u32 %v3555, 7
        %v3557 = vsub.s32 2, %v3556
        %v3558 = vrot.slane %v3517, %v3557
        %v3559 = vlaneseq
        %v3560 = vshrl.u32 %v3559, 7
        %v3561 = vsub.s32 3, %v3560
        %v3562 = vrot.slane %v3517, %v3561
        %v3563 = vlaneseq
        %v3564 = vshrl.u32 %v3563, 7
        %v3565 = vsub.s32 4, %v3564
        %v3566 = vrot.slane %v3517, %v3565
        %v3567 = vlaneseq
        %v3568 = vshrl.u32 %v3567, 7
        %v3569 = vsub.s32 5, %v3568
        %v3570 = vrot.slane %v3517, %v3569
        %v3571 = vlaneseq
        %v3572 = vshrl.u32 %v3571, 7
        %v3573 = vsub.s32 6, %v3572
        %v3574 = vrot.slane %v3517, %v3573
        %v3575 = vlaneseq
        %v3576 = vshrl.u32 %v3575, 7
        %v3577 = vsub.s32 7, %v3576
        %v3578 = vrot.slane %v3517, %v3577
        %v3579 = vlaneseq
        %v3580 = vshrl.u32 %v3579, 7
        %v3581 = vsub.s32 0, %v3580
        %v3582 = vrot.slane %v3520, %v3581
        %v3583 = vlaneseq
        %v3584 = vshrl.u32 %v3583, 7
        %v3585 = vsub.s32 1, %v3584
        %v3586 = vrot.slane %v3520, %v3585
        %v3587 = vlaneseq
        %v3588 = vshrl.u32 %v3587, 7
        %v3589 = vsub.s32 2, %v3588
        %v3590 = vrot.slane %v3520, %v3589
        %v3591 = vlaneseq
        %v3592 = vshrl.u32 %v3591, 7
        %v3593 = vsub.s32 3, %v3592
        %v3594 = vrot.slane %v3520, %v3593
        %v3595 = vlaneseq
        %v3596 = vshrl.u32 %v3595, 7
        %v3597 = vsub.s32 4, %v3596
        %v3598 = vrot.slane %v3520, %v3597
        %v3599 = vlaneseq
        %v3600 = vshrl.u32 %v3599, 7
        %v3601 = vsub.s32 5, %v3600
        %v3602 = vrot.slane %v3520, %v3601
        %v3603 = vlaneseq
        %v3604 = vshrl.u32 %v3603, 7
        %v3605 = vsub.s32 6, %v3604
        %v3606 = vrot.slane %v3520, %v3605
        %v3607 = vlaneseq
        %v3608 = vshrl.u32 %v3607, 7
        %v3609 = vsub.s32 7, %v3608
        %v3610 = vrot.slane %v3520, %v3609
        %v3611 = vlaneseq
        %v3612 = vshrl.u32 %v3611, 7
        %v3613 = vsub.s32 0, %v3612
        %v3614 = vrot.slane %v3523, %v3613
        %v3615 = vlaneseq
        %v3616 = vshrl.u32 %v3615, 7
        %v3617 = vsub.s32 1, %v3616
        %v3618 = vrot.slane %v3523, %v3617
        %v3619 = vlaneseq
        %v3620 = vshrl.u32 %v3619, 7
        %v3621 = vsub.s32 2, %v3620
        %v3622 = vrot.slane %v3523, %v3621
        %v3623 = vlaneseq
        %v3624 = vshrl.u32 %v3623, 7
        %v3625 = vsub.s32 3, %v3624
        %v3626 = vrot.slane %v3523, %v3625
        %v3627 = vlaneseq
        %v3628 = vshrl.u32 %v3627, 7
        %v3629 = vsub.s32 4, %v3628
        %v3630 = vrot.slane %v3523, %v3629
        %v3631 = vlaneseq
        %v3632 = vshrl.u32 %v3631, 7
        %v3633 = vsub.s32 5, %v3632
        %v3634 = vrot.slane %v3523, %v3633
        %v3635 = vlaneseq
        %v3636 = vshrl.u32 %v3635, 7
        %v3637 = vsub.s32 6, %v3636
        %v3638 = vrot.slane %v3523, %v3637
        %v3639 = vlaneseq
        %v3640 = vshrl.u32 %v3639, 7
        %v3641 = vsub.s32 7, %v3640
        %v3642 = vrot.slane %v3523, %v3641
        %v3643 = vlaneseq
        %v3644 = vshrl.u32 %v3643, 7
        %v3645 = vsub.s32 0, %v3644
        %v3646 = vrot.slane %v3526, %v3645
        %v3647 = vlaneseq
        %v3648 = vshrl.u32 %v3647, 7
        %v3649 = vsub.s32 1, %v3648
        %v3650 = vrot.slane %v3526, %v3649
        %v3651 = vlaneseq
        %v3652 = vshrl.u32 %v3651, 7
        %v3653 = vsub.s32 2, %v3652
        %v3654 = vrot.slane %v3526, %v3653
        %v3655 = vlaneseq
        %v3656 = vshrl.u32 %v3655, 7
        %v3657 = vsub.s32 3, %v3656
        %v3658 = vrot.slane %v3526, %v3657
        %v3659 = vlaneseq
        %v3660 = vshrl.u32 %v3659, 7
        %v3661 = vsub.s32 4, %v3660
        %v3662 = vrot.slane %v3526, %v3661
        %v3663 = vlaneseq
        %v3664 = vshrl.u32 %v3663, 7
        %v3665 = vsub.s32 5, %v3664
        %v3666 = vrot.slane %v3526, %v3665
        %v3667 = vlaneseq
        %v3668 = vshrl.u32 %v3667, 7
        %v3669 = vsub.s32 6, %v3668
        %v3670 = vrot.slane %v3526, %v3669
        %v3671 = vlaneseq
        %v3672 = vshrl.u32 %v3671, 7
        %v3673 = vsub.s32 7, %v3672
        %v3674 = vrot.slane %v3526, %v3673
        %v3675 = vlaneseq
        %v3676 = vshrl.u32 %v3675, 7
        %v3677 = vsub.s32 0, %v3676
        %v3678 = vrot.slane %v3529, %v3677
        %v3679 = vlaneseq
        %v3680 = vshrl.u32 %v3679, 7
        %v3681 = vsub.s32 1, %v3680
        %v3682 = vrot.slane %v3529, %v3681
        %v3683 = vlaneseq
        %v3684 = vshrl.u32 %v3683, 7
        %v3685 = vsub.s32 2, %v3684
        %v3686 = vrot.slane %v3529, %v3685
        %v3687 = vlaneseq
        %v3688 = vshrl.u32 %v3687, 7
        %v3689 = vsub.s32 3, %v3688
        %v3690 = vrot.slane %v3529, %v3689
        %v3691 = vlaneseq
        %v3692 = vshrl.u32 %v3691, 7
        %v3693 = vsub.s32 4, %v3692
        %v3694 = vrot.slane %v3529, %v3693
        %v3695 = vlaneseq
        %v3696 = vshrl.u32 %v3695, 7
        %v3697 = vsub.s32 5, %v3696
        %v3698 = vrot.slane %v3529, %v3697
        %v3699 = vlaneseq
        %v3700 = vshrl.u32 %v3699, 7
        %v3701 = vsub.s32 6, %v3700
        %v3702 = vrot.slane %v3529, %v3701
        %v3703 = vlaneseq
        %v3704 = vshrl.u32 %v3703, 7
        %v3705 = vsub.s32 7, %v3704
        %v3706 = vrot.slane %v3529, %v3705
        %v3707 = vlaneseq
        %v3708 = vshrl.u32 %v3707, 7
        %v3709 = vsub.s32 0, %v3708
        %v3710 = vrot.slane %v3532, %v3709
        %v3711 = vlaneseq
        %v3712 = vshrl.u32 %v3711, 7
        %v3713 = vsub.s32 1, %v3712
        %v3714 = vrot.slane %v3532, %v3713
        %v3715 = vlaneseq
        %v3716 = vshrl.u32 %v3715, 7
        %v3717 = vsub.s32 2, %v3716
        %v3718 = vrot.slane %v3532, %v3717
        %v3719 = vlaneseq
        %v3720 = vshrl.u32 %v3719, 7
        %v3721 = vsub.s32 3, %v3720
        %v3722 = vrot.slane %v3532, %v3721
        %v3723 = vlaneseq
        %v3724 = vshrl.u32 %v3723, 7
        %v3725 = vsub.s32 4, %v3724
        %v3726 = vrot.slane %v3532, %v3725
        %v3727 = vlaneseq
        %v3728 = vshrl.u32 %v3727, 7
        %v3729 = vsub.s32 5, %v3728
        %v3730 = vrot.slane %v3532, %v3729
        %v3731 = vlaneseq
        %v3732 = vshrl.u32 %v3731, 7
        %v3733 = vsub.s32 6, %v3732
        %v3734 = vrot.slane %v3532, %v3733
        %v3735 = vlaneseq
        %v3736 = vshrl.u32 %v3735, 7
        %v3737 = vsub.s32 7, %v3736
        %v3738 = vrot.slane %v3532, %v3737
        %v3739 = vlaneseq
        %v3740 = vshrl.u32 %v3739, 7
        %v3741 = vsub.s32 0, %v3740
        %v3742 = vrot.slane %v3535, %v3741
        %v3743 = vlaneseq
        %v3744 = vshrl.u32 %v3743, 7
        %v3745 = vsub.s32 1, %v3744
        %v3746 = vrot.slane %v3535, %v3745
        %v3747 = vlaneseq
        %v3748 = vshrl.u32 %v3747, 7
        %v3749 = vsub.s32 2, %v3748
        %v3750 = vrot.slane %v3535, %v3749
        %v3751 = vlaneseq
        %v3752 = vshrl.u32 %v3751, 7
        %v3753 = vsub.s32 3, %v3752
        %v3754 = vrot.slane %v3535, %v3753
        %v3755 = vlaneseq
        %v3756 = vshrl.u32 %v3755, 7
        %v3757 = vsub.s32 4, %v3756
        %v3758 = vrot.slane %v3535, %v3757
        %v3759 = vlaneseq
        %v3760 = vshrl.u32 %v3759, 7
        %v3761 = vsub.s32 5, %v3760
        %v3762 = vrot.slane %v3535, %v3761
        %v3763 = vlaneseq
        %v3764 = vshrl.u32 %v3763, 7
        %v3765 = vsub.s32 6, %v3764
        %v3766 = vrot.slane %v3535, %v3765
        %v3767 = vlaneseq
        %v3768 = vshrl.u32 %v3767, 7
        %v3769 = vsub.s32 7, %v3768
        %v3770 = vrot.slane %v3535, %v3769
        %v3771 = vlaneseq
        %v3772 = vshrl.u32 %v3771, 7
        %v3773 = vsub.s32 0, %v3772
        %v3774 = vrot.slane %v3538, %v3773
        %v3775 = vlaneseq
        %v3776 = vshrl.u32 %v3775, 7
        %v3777 = vsub.s32 1, %v3776
        %v3778 = vrot.slane %v3538, %v3777
        %v3779 = vlaneseq
        %v3780 = vshrl.u32 %v3779, 7
        %v3781 = vsub.s32 2, %v3780
        %v3782 = vrot.slane %v3538, %v3781
        %v3783 = vlaneseq
        %v3784 = vshrl.u32 %v3783, 7
        %v3785 = vsub.s32 3, %v3784
        %v3786 = vrot.slane %v3538, %v3785
        %v3787 = vlaneseq
        %v3788 = vshrl.u32 %v3787, 7
        %v3789 = vsub.s32 4, %v3788
        %v3790 = vrot.slane %v3538, %v3789
        %v3791 = vlaneseq
        %v3792 = vshrl.u32 %v3791, 7
        %v3793 = vsub.s32 5, %v3792
        %v3794 = vrot.slane %v3538, %v3793
        %v3795 = vlaneseq
        %v3796 = vshrl.u32 %v3795, 7
        %v3797 = vsub.s32 6, %v3796
        %v3798 = vrot.slane %v3538, %v3797
        %v3799 = vlaneseq
        %v3800 = vshrl.u32 %v3799, 7
        %v3801 = vsub.s32 7, %v3800
        %v3802 = vrot.slane %v3538, %v3801
        %v3867 = vsub.f32 %v2675, %v3550
        %v3868 = vsub.f32 %v2678, %v3554
        %v3869 = vsub.f32 %v2683, %v3558
        %v3870 = vsub.f32 %v2686, %v3562
        %v3871 = vsub.f32 %v2691, %v3566
        %v3872 = vsub.f32 %v2694, %v3570
        %v3873 = vsub.f32 %v2699, %v3574
        %v3874 = vsub.f32 %v2702, %v3578
        %v3875 = vsub.f32 %v2707, %v3582
        %v3876 = vsub.f32 %v2710, %v3586
        %v3877 = vsub.f32 %v2715, %v3590
        %v3878 = vsub.f32 %v2718, %v3594
        %v3879 = vsub.f32 %v2723, %v3598
        %v3880 = vsub.f32 %v2726, %v3602
        %v3881 = vsub.f32 %v2731, %v3606
        %v3882 = vsub.f32 %v2734, %v3610
        %v3883 = vsub.f32 %v2739, %v3614
        %v3884 = vsub.f32 %v2742, %v3618
        %v3885 = vsub.f32 %v2747, %v3622
        %v3886 = vsub.f32 %v2750, %v3626
        %v3887 = vsub.f32 %v2755, %v3630
        %v3888 = vsub.f32 %v2758, %v3634
        %v3889 = vsub.f32 %v2763, %v3638
        %v3890 = vsub.f32 %v2766, %v3642
        %v3891 = vsub.f32 %v2771, %v3646
        %v3892 = vsub.f32 %v2774, %v3650
        %v3893 = vsub.f32 %v2779, %v3654
        %v3894 = vsub.f32 %v2782, %v3658
        %v3895 = vsub.f32 %v2787, %v3662
        %v3896 = vsub.f32 %v2790, %v3666
        %v3897 = vsub.f32 %v2795, %v3670
        %v3898 = vsub.f32 %v2798, %v3674
        %v3899 = vsub.f32 %v2803, %v3678
        %v3900 = vsub.f32 %v2806, %v3682
        %v3901 = vsub.f32 %v2811, %v3686
        %v3902 = vsub.f32 %v2814, %v3690
        %v3903 = vsub.f32 %v2819, %v3694
        %v3904 = vsub.f32 %v2822, %v3698
        %v3905 = vsub.f32 %v2827, %v3702
        %v3906 = vsub.f32 %v2830, %v3706
        %v3907 = vsub.f32 %v2835, %v3710
        %v3908 = vsub.f32 %v2838, %v3714
        %v3909 = vsub.f32 %v2843, %v3718
        %v3910 = vsub.f32 %v2846, %v3722
        %v3911 = vsub.f32 %v2851, %v3726
        %v3912 = vsub.f32 %v2854, %v3730
        %v3913 = vsub.f32 %v2859, %v3734
        %v3914 = vsub.f32 %v2862, %v3738
        %v3915 = vsub.f32 %v2867, %v3742
        %v3916 = vsub.f32 %v2870, %v3746
        %v3917 = vsub.f32 %v2875, %v3750
        %v3918 = vsub.f32 %v2878, %v3754
        %v3919 = vsub.f32 %v2883, %v3758
        %v3920 = vsub.f32 %v2886, %v3762
        %v3921 = vsub.f32 %v2891, %v3766
        %v3922 = vsub.f32 %v2894, %v3770
        %v3923 = vsub.f32 %v2899, %v3774
        %v3924 = vsub.f32 %v2902, %v3778
        %v3925 = vsub.f32 %v2907, %v3782
        %v3926 = vsub.f32 %v2910, %v3786
        %v3927 = vsub.f32 %v2915, %v3790
        %v3928 = vsub.f32 %v2918, %v3794
        %v3929 = vsub.f32 %v2923, %v3798
        %v3930 = vsub.f32 %v2926, %v3802
        %v3931 = vmul.f32 %v3867, 1.442695
        %v3932 = vpow.pop %v3931
        %v3933 = vmul.f32 %v3868, 1.442695
        %v3934 = vpow.pop %v3933
        %v3935 = vmul.f32 %v3869, 1.442695
        %v3936 = vpow.pop %v3935
        %v3937 = vmul.f32 %v3870, 1.442695
        %v3938 = vpow.pop %v3937
        %v3939 = vmul.f32 %v3871, 1.442695
        %v3940 = vpow.pop %v3939
        %v3941 = vmul.f32 %v3872, 1.442695
        %v3942 = vpow.pop %v3941
        %v3943 = vmul.f32 %v3873, 1.442695
        %v3944 = vpow.pop %v3943
        %v3945 = vmul.f32 %v3874, 1.442695
        %v3946 = vpow.pop %v3945
        %v3947 = vmul.f32 %v3875, 1.442695
        %v3948 = vpow.pop %v3947
        %v3949 = vmul.f32 %v3876, 1.442695
        %v3950 = vpow.pop %v3949
        %v3951 = vmul.f32 %v3877, 1.442695
        %v3952 = vpow.pop %v3951
        %v3953 = vmul.f32 %v3878, 1.442695
        %v3954 = vpow.pop %v3953
        %v3955 = vmul.f32 %v3879, 1.442695
        %v3956 = vpow.pop %v3955
        %v3957 = vmul.f32 %v3880, 1.442695
        %v3958 = vpow.pop %v3957
        %v3959 = vmul.f32 %v3881, 1.442695
        %v3960 = vpow.pop %v3959
        %v3961 = vmul.f32 %v3882, 1.442695
        %v3962 = vpow.pop %v3961
        %v3963 = vmul.f32 %v3883, 1.442695
        %v3964 = vpow.pop %v3963
        %v3965 = vmul.f32 %v3884, 1.442695
        %v3966 = vpow.pop %v3965
        %v3967 = vmul.f32 %v3885, 1.442695
        %v3968 = vpow.pop %v3967
        %v3969 = vmul.f32 %v3886, 1.442695
        %v3970 = vpow.pop %v3969
        %v3971 = vmul.f32 %v3887, 1.442695
        %v3972 = vpow.pop %v3971
        %v3973 = vmul.f32 %v3888, 1.442695
        %v3974 = vpow.pop %v3973
        %v3975 = vmul.f32 %v3889, 1.442695
        %v3976 = vpow.pop %v3975
        %v3977 = vmul.f32 %v3890, 1.442695
        %v3978 = vpow.pop %v3977
        %v3979 = vmul.f32 %v3891, 1.442695
        %v3980 = vpow.pop %v3979
        %v3981 = vmul.f32 %v3892, 1.442695
        %v3982 = vpow.pop %v3981
        %v3983 = vmul.f32 %v3893, 1.442695
        %v3984 = vpow.pop %v3983
        %v3985 = vmul.f32 %v3894, 1.442695
        %v3986 = vpow.pop %v3985
        %v3987 = vmul.f32 %v3895, 1.442695
        %v3988 = vpow.pop %v3987
        %v3989 = vmul.f32 %v3896, 1.442695
        %v3990 = vpow.pop %v3989
        %v3991 = vmul.f32 %v3897, 1.442695
        %v3992 = vpow.pop %v3991
        %v3993 = vmul.f32 %v3898, 1.442695
        %v3994 = vpow.pop %v3993
        %v3995 = vmul.f32 %v3899, 1.442695
        %v3996 = vpow.pop %v3995
        %v3997 = vmul.f32 %v3900, 1.442695
        %v3998 = vpow.pop %v3997
        %v3999 = vmul.f32 %v3901, 1.442695
        %v4000 = vpow.pop %v3999
        %v4001 = vmul.f32 %v3902, 1.442695
        %v4002 = vpow.pop %v4001
        %v4003 = vmul.f32 %v3903, 1.442695
        %v4004 = vpow.pop %v4003
        %v4005 = vmul.f32 %v3904, 1.442695
        %v4006 = vpow.pop %v4005
        %v4007 = vmul.f32 %v3905, 1.442695
        %v4008 = vpow.pop %v4007
        %v4009 = vmul.f32 %v3906, 1.442695
        %v4010 = vpow.pop %v4009
        %v4011 = vmul.f32 %v3907, 1.442695
        %v4012 = vpow.pop %v4011
        %v4013 = vmul.f32 %v3908, 1.442695
        %v4014 = vpow.pop %v4013
        %v4015 = vmul.f32 %v3909, 1.442695
        %v4016 = vpow.pop %v4015
        %v4017 = vmul.f32 %v3910, 1.442695
        %v4018 = vpow.pop %v4017
        %v4019 = vmul.f32 %v3911, 1.442695
        %v4020 = vpow.pop %v4019
        %v4021 = vmul.f32 %v3912, 1.442695
        %v4022 = vpow.pop %v4021
        %v4023 = vmul.f32 %v3913, 1.442695
        %v4024 = vpow.pop %v4023
        %v4025 = vmul.f32 %v3914, 1.442695
        %v4026 = vpow.pop %v4025
        %v4027 = vmul.f32 %v3915, 1.442695
        %v4028 = vpow.pop %v4027
        %v4029 = vmul.f32 %v3916, 1.442695
        %v4030 = vpow.pop %v4029
        %v4031 = vmul.f32 %v3917, 1.442695
        %v4032 = vpow.pop %v4031
        %v4033 = vmul.f32 %v3918, 1.442695
        %v4034 = vpow.pop %v4033
        %v4035 = vmul.f32 %v3919, 1.442695
        %v4036 = vpow.pop %v4035
        %v4037 = vmul.f32 %v3920, 1.442695
        %v4038 = vpow.pop %v4037
        %v4039 = vmul.f32 %v3921, 1.442695
        %v4040 = vpow.pop %v4039
        %v4041 = vmul.f32 %v3922, 1.442695
        %v4042 = vpow.pop %v4041
        %v4043 = vmul.f32 %v3923, 1.442695
        %v4044 = vpow.pop %v4043
        %v4045 = vmul.f32 %v3924, 1.442695
        %v4046 = vpow.pop %v4045
        %v4047 = vmul.f32 %v3925, 1.442695
        %v4048 = vpow.pop %v4047
        %v4049 = vmul.f32 %v3926, 1.442695
        %v4050 = vpow.pop %v4049
        %v4051 = vmul.f32 %v3927, 1.442695
        %v4052 = vpow.pop %v4051
        %v4053 = vmul.f32 %v3928, 1.442695
        %v4054 = vpow.pop %v4053
        %v4055 = vmul.f32 %v3929, 1.442695
        %v4056 = vpow.pop %v4055
        %v4057 = vmul.f32 %v3930, 1.442695
        %v4058 = vpow.pop %v4057
        %4123 = vset.pattern.permute.xlu0 0
        %4124 = vperm.xlu0 %4123, %v3932
        %v4125 = vpop.permute.xlu0 %4124
        %4126 = vset.pattern.permute.xlu0 0
        %4127 = vperm.xlu0 %4126, %v3934
        %v4128 = vpop.permute.xlu0 %4127
        %4129 = vset.pattern.permute.xlu0 0
        %4130 = vperm.xlu0 %4129, %v3936
        %v4131 = vpop.permute.xlu0 %4130
        %4132 = vset.pattern.permute.xlu0 0
        %4133 = vperm.xlu0 %4132, %v3938
        %v4134 = vpop.permute.xlu0 %4133
        %4135 = vset.pattern.permute.xlu0 0
        %4136 = vperm.xlu0 %4135, %v3940
        %v4137 = vpop.permute.xlu0 %4136
        %4138 = vset.pattern.permute.xlu0 0
        %4139 = vperm.xlu0 %4138, %v3942
        %v4140 = vpop.permute.xlu0 %4139
        %4141 = vset.pattern.permute.xlu0 0
        %4142 = vperm.xlu0 %4141, %v3944
        %v4143 = vpop.permute.xlu0 %4142
        %4144 = vset.pattern.permute.xlu0 0
        %4145 = vperm.xlu0 %4144, %v3946
        %v4146 = vpop.permute.xlu0 %4145
        %4147 = vset.pattern.permute.xlu0 0
        %4148 = vperm.xlu0 %4147, %v3948
        %v4149 = vpop.permute.xlu0 %4148
        %4150 = vset.pattern.permute.xlu0 0
        %4151 = vperm.xlu0 %4150, %v3950
        %v4152 = vpop.permute.xlu0 %4151
        %4153 = vset.pattern.permute.xlu0 0
        %4154 = vperm.xlu0 %4153, %v3952
        %v4155 = vpop.permute.xlu0 %4154
        %4156 = vset.pattern.permute.xlu0 0
        %4157 = vperm.xlu0 %4156, %v3954
        %v4158 = vpop.permute.xlu0 %4157
        %4159 = vset.pattern.permute.xlu0 0
        %4160 = vperm.xlu0 %4159, %v3956
        %v4161 = vpop.permute.xlu0 %4160
        %4162 = vset.pattern.permute.xlu0 0
        %4163 = vperm.xlu0 %4162, %v3958
        %v4164 = vpop.permute.xlu0 %4163
        %4165 = vset.pattern.permute.xlu0 0
        %4166 = vperm.xlu0 %4165, %v3960
        %v4167 = vpop.permute.xlu0 %4166
        %4168 = vset.pattern.permute.xlu0 0
        %4169 = vperm.xlu0 %4168, %v3962
        %v4170 = vpop.permute.xlu0 %4169
        %4171 = vset.pattern.permute.xlu0 0
        %4172 = vperm.xlu0 %4171, %v3964
        %v4173 = vpop.permute.xlu0 %4172
        %4174 = vset.pattern.permute.xlu0 0
        %4175 = vperm.xlu0 %4174, %v3966
        %v4176 = vpop.permute.xlu0 %4175
        %4177 = vset.pattern.permute.xlu0 0
        %4178 = vperm.xlu0 %4177, %v3968
        %v4179 = vpop.permute.xlu0 %4178
        %4180 = vset.pattern.permute.xlu0 0
        %4181 = vperm.xlu0 %4180, %v3970
        %v4182 = vpop.permute.xlu0 %4181
        %4183 = vset.pattern.permute.xlu0 0
        %4184 = vperm.xlu0 %4183, %v3972
        %v4185 = vpop.permute.xlu0 %4184
        %4186 = vset.pattern.permute.xlu0 0
        %4187 = vperm.xlu0 %4186, %v3974
        %v4188 = vpop.permute.xlu0 %4187
        %4189 = vset.pattern.permute.xlu0 0
        %4190 = vperm.xlu0 %4189, %v3976
        %v4191 = vpop.permute.xlu0 %4190
        %4192 = vset.pattern.permute.xlu0 0
        %4193 = vperm.xlu0 %4192, %v3978
        %v4194 = vpop.permute.xlu0 %4193
        %4195 = vset.pattern.permute.xlu0 0
        %4196 = vperm.xlu0 %4195, %v3980
        %v4197 = vpop.permute.xlu0 %4196
        %4198 = vset.pattern.permute.xlu0 0
        %4199 = vperm.xlu0 %4198, %v3982
        %v4200 = vpop.permute.xlu0 %4199
        %4201 = vset.pattern.permute.xlu0 0
        %4202 = vperm.xlu0 %4201, %v3984
        %v4203 = vpop.permute.xlu0 %4202
        %4204 = vset.pattern.permute.xlu0 0
        %4205 = vperm.xlu0 %4204, %v3986
        %v4206 = vpop.permute.xlu0 %4205
        %4207 = vset.pattern.permute.xlu0 0
        %4208 = vperm.xlu0 %4207, %v3988
        %v4209 = vpop.permute.xlu0 %4208
        %4210 = vset.pattern.permute.xlu0 0
        %4211 = vperm.xlu0 %4210, %v3990
        %v4212 = vpop.permute.xlu0 %4211
        %4213 = vset.pattern.permute.xlu0 0
        %4214 = vperm.xlu0 %4213, %v3992
        %v4215 = vpop.permute.xlu0 %4214
        %4216 = vset.pattern.permute.xlu0 0
        %4217 = vperm.xlu0 %4216, %v3994
        %v4218 = vpop.permute.xlu0 %4217
        %4219 = vset.pattern.permute.xlu0 0
        %4220 = vperm.xlu0 %4219, %v3996
        %v4221 = vpop.permute.xlu0 %4220
        %4222 = vset.pattern.permute.xlu0 0
        %4223 = vperm.xlu0 %4222, %v3998
        %v4224 = vpop.permute.xlu0 %4223
        %4225 = vset.pattern.permute.xlu0 0
        %4226 = vperm.xlu0 %4225, %v4000
        %v4227 = vpop.permute.xlu0 %4226
        %4228 = vset.pattern.permute.xlu0 0
        %4229 = vperm.xlu0 %4228, %v4002
        %v4230 = vpop.permute.xlu0 %4229
        %4231 = vset.pattern.permute.xlu0 0
        %4232 = vperm.xlu0 %4231, %v4004
        %v4233 = vpop.permute.xlu0 %4232
        %4234 = vset.pattern.permute.xlu0 0
        %4235 = vperm.xlu0 %4234, %v4006
        %v4236 = vpop.permute.xlu0 %4235
        %4237 = vset.pattern.permute.xlu0 0
        %4238 = vperm.xlu0 %4237, %v4008
        %v4239 = vpop.permute.xlu0 %4238
        %4240 = vset.pattern.permute.xlu0 0
        %4241 = vperm.xlu0 %4240, %v4010
        %v4242 = vpop.permute.xlu0 %4241
        %4243 = vset.pattern.permute.xlu0 0
        %4244 = vperm.xlu0 %4243, %v4012
        %v4245 = vpop.permute.xlu0 %4244
        %4246 = vset.pattern.permute.xlu0 0
        %4247 = vperm.xlu0 %4246, %v4014
        %v4248 = vpop.permute.xlu0 %4247
        %4249 = vset.pattern.permute.xlu0 0
        %4250 = vperm.xlu0 %4249, %v4016
        %v4251 = vpop.permute.xlu0 %4250
        %4252 = vset.pattern.permute.xlu0 0
        %4253 = vperm.xlu0 %4252, %v4018
        %v4254 = vpop.permute.xlu0 %4253
        %4255 = vset.pattern.permute.xlu0 0
        %4256 = vperm.xlu0 %4255, %v4020
        %v4257 = vpop.permute.xlu0 %4256
        %4258 = vset.pattern.permute.xlu0 0
        %4259 = vperm.xlu0 %4258, %v4022
        %v4260 = vpop.permute.xlu0 %4259
        %4261 = vset.pattern.permute.xlu0 0
        %4262 = vperm.xlu0 %4261, %v4024
        %v4263 = vpop.permute.xlu0 %4262
        %4264 = vset.pattern.permute.xlu0 0
        %4265 = vperm.xlu0 %4264, %v4026
        %v4266 = vpop.permute.xlu0 %4265
        %4267 = vset.pattern.permute.xlu0 0
        %4268 = vperm.xlu0 %4267, %v4028
        %v4269 = vpop.permute.xlu0 %4268
        %4270 = vset.pattern.permute.xlu0 0
        %4271 = vperm.xlu0 %4270, %v4030
        %v4272 = vpop.permute.xlu0 %4271
        %4273 = vset.pattern.permute.xlu0 0
        %4274 = vperm.xlu0 %4273, %v4032
        %v4275 = vpop.permute.xlu0 %4274
        %4276 = vset.pattern.permute.xlu0 0
        %4277 = vperm.xlu0 %4276, %v4034
        %v4278 = vpop.permute.xlu0 %4277
        %4279 = vset.pattern.permute.xlu0 0
        %4280 = vperm.xlu0 %4279, %v4036
        %v4281 = vpop.permute.xlu0 %4280
        %4282 = vset.pattern.permute.xlu0 0
        %4283 = vperm.xlu0 %4282, %v4038
        %v4284 = vpop.permute.xlu0 %4283
        %4285 = vset.pattern.permute.xlu0 0
        %4286 = vperm.xlu0 %4285, %v4040
        %v4287 = vpop.permute.xlu0 %4286
        %4288 = vset.pattern.permute.xlu0 0
        %4289 = vperm.xlu0 %4288, %v4042
        %v4290 = vpop.permute.xlu0 %4289
        %4291 = vset.pattern.permute.xlu0 0
        %4292 = vperm.xlu0 %4291, %v4044
        %v4293 = vpop.permute.xlu0 %4292
        %4294 = vset.pattern.permute.xlu0 0
        %4295 = vperm.xlu0 %4294, %v4046
        %v4296 = vpop.permute.xlu0 %4295
        %4297 = vset.pattern.permute.xlu0 0
        %4298 = vperm.xlu0 %4297, %v4048
        %v4299 = vpop.permute.xlu0 %4298
        %4300 = vset.pattern.permute.xlu0 0
        %4301 = vperm.xlu0 %4300, %v4050
        %v4302 = vpop.permute.xlu0 %4301
        %4303 = vset.pattern.permute.xlu0 0
        %4304 = vperm.xlu0 %4303, %v4052
        %v4305 = vpop.permute.xlu0 %4304
        %4306 = vset.pattern.permute.xlu0 0
        %4307 = vperm.xlu0 %4306, %v4054
        %v4308 = vpop.permute.xlu0 %4307
        %4309 = vset.pattern.permute.xlu0 0
        %4310 = vperm.xlu0 %4309, %v4056
        %v4311 = vpop.permute.xlu0 %4310
        %4312 = vset.pattern.permute.xlu0 0
        %4313 = vperm.xlu0 %4312, %v4058
        %v4314 = vpop.permute.xlu0 %4313
        %v4315 = vlaneseq
        %v4316 = vshrl.u32 %v4315, 7
        %v4317 = vsub.s32 %v3186, %v4316
        %v4318 = vrot.slane %v4125, %v4317
        %v4319 = vlaneseq
        %v4320 = vshrl.u32 %v4319, 7
        %v4321 = vsub.s32 %v3186, %v4320
        %v4322 = vrot.slane %v4128, %v4321
        %v4323 = vlaneseq
        %v4324 = vshrl.u32 %v4323, 7
        %v4325 = vsub.s32 %v3186, %v4324
        %v4326 = vrot.slane %v4131, %v4325
        %v4327 = vlaneseq
        %v4328 = vshrl.u32 %v4327, 7
        %v4329 = vsub.s32 %v3186, %v4328
        %v4330 = vrot.slane %v4134, %v4329
        %v4331 = vlaneseq
        %v4332 = vshrl.u32 %v4331, 7
        %v4333 = vsub.s32 %v3186, %v4332
        %v4334 = vrot.slane %v4137, %v4333
        %v4335 = vlaneseq
        %v4336 = vshrl.u32 %v4335, 7
        %v4337 = vsub.s32 %v3186, %v4336
        %v4338 = vrot.slane %v4140, %v4337
        %v4339 = vlaneseq
        %v4340 = vshrl.u32 %v4339, 7
        %v4341 = vsub.s32 %v3186, %v4340
        %v4342 = vrot.slane %v4143, %v4341
        %v4343 = vlaneseq
        %v4344 = vshrl.u32 %v4343, 7
        %v4345 = vsub.s32 %v3186, %v4344
        %v4346 = vrot.slane %v4146, %v4345
        %v4347 = vlaneseq
        %v4348 = vshrl.u32 %v4347, 7
        %v4349 = vsub.s32 %v3186, %v4348
        %v4350 = vrot.slane %v4149, %v4349
        %v4351 = vlaneseq
        %v4352 = vshrl.u32 %v4351, 7
        %v4353 = vsub.s32 %v3186, %v4352
        %v4354 = vrot.slane %v4152, %v4353
        %v4355 = vlaneseq
        %v4356 = vshrl.u32 %v4355, 7
        %v4357 = vsub.s32 %v3186, %v4356
        %v4358 = vrot.slane %v4155, %v4357
        %v4359 = vlaneseq
        %v4360 = vshrl.u32 %v4359, 7
        %v4361 = vsub.s32 %v3186, %v4360
        %v4362 = vrot.slane %v4158, %v4361
        %v4363 = vlaneseq
        %v4364 = vshrl.u32 %v4363, 7
        %v4365 = vsub.s32 %v3186, %v4364
        %v4366 = vrot.slane %v4161, %v4365
        %v4367 = vlaneseq
        %v4368 = vshrl.u32 %v4367, 7
        %v4369 = vsub.s32 %v3186, %v4368
        %v4370 = vrot.slane %v4164, %v4369
        %v4371 = vlaneseq
        %v4372 = vshrl.u32 %v4371, 7
        %v4373 = vsub.s32 %v3186, %v4372
        %v4374 = vrot.slane %v4167, %v4373
        %v4375 = vlaneseq
        %v4376 = vshrl.u32 %v4375, 7
        %v4377 = vsub.s32 %v3186, %v4376
        %v4378 = vrot.slane %v4170, %v4377
        %v4379 = vlaneseq
        %v4380 = vshrl.u32 %v4379, 7
        %v4381 = vsub.s32 %v3186, %v4380
        %v4382 = vrot.slane %v4173, %v4381
        %v4383 = vlaneseq
        %v4384 = vshrl.u32 %v4383, 7
        %v4385 = vsub.s32 %v3186, %v4384
        %v4386 = vrot.slane %v4176, %v4385
        %v4387 = vlaneseq
        %v4388 = vshrl.u32 %v4387, 7
        %v4389 = vsub.s32 %v3186, %v4388
        %v4390 = vrot.slane %v4179, %v4389
        %v4391 = vlaneseq
        %v4392 = vshrl.u32 %v4391, 7
        %v4393 = vsub.s32 %v3186, %v4392
        %v4394 = vrot.slane %v4182, %v4393
        %v4395 = vlaneseq
        %v4396 = vshrl.u32 %v4395, 7
        %v4397 = vsub.s32 %v3186, %v4396
        %v4398 = vrot.slane %v4185, %v4397
        %v4399 = vlaneseq
        %v4400 = vshrl.u32 %v4399, 7
        %v4401 = vsub.s32 %v3186, %v4400
        %v4402 = vrot.slane %v4188, %v4401
        %v4403 = vlaneseq
        %v4404 = vshrl.u32 %v4403, 7
        %v4405 = vsub.s32 %v3186, %v4404
        %v4406 = vrot.slane %v4191, %v4405
        %v4407 = vlaneseq
        %v4408 = vshrl.u32 %v4407, 7
        %v4409 = vsub.s32 %v3186, %v4408
        %v4410 = vrot.slane %v4194, %v4409
        %v4411 = vlaneseq
        %v4412 = vshrl.u32 %v4411, 7
        %v4413 = vsub.s32 %v3186, %v4412
        %v4414 = vrot.slane %v4197, %v4413
        %v4415 = vlaneseq
        %v4416 = vshrl.u32 %v4415, 7
        %v4417 = vsub.s32 %v3186, %v4416
        %v4418 = vrot.slane %v4200, %v4417
        %v4419 = vlaneseq
        %v4420 = vshrl.u32 %v4419, 7
        %v4421 = vsub.s32 %v3186, %v4420
        %v4422 = vrot.slane %v4203, %v4421
        %v4423 = vlaneseq
        %v4424 = vshrl.u32 %v4423, 7
        %v4425 = vsub.s32 %v3186, %v4424
        %v4426 = vrot.slane %v4206, %v4425
        %v4427 = vlaneseq
        %v4428 = vshrl.u32 %v4427, 7
        %v4429 = vsub.s32 %v3186, %v4428
        %v4430 = vrot.slane %v4209, %v4429
        %v4431 = vlaneseq
        %v4432 = vshrl.u32 %v4431, 7
        %v4433 = vsub.s32 %v3186, %v4432
        %v4434 = vrot.slane %v4212, %v4433
        %v4435 = vlaneseq
        %v4436 = vshrl.u32 %v4435, 7
        %v4437 = vsub.s32 %v3186, %v4436
        %v4438 = vrot.slane %v4215, %v4437
        %v4439 = vlaneseq
        %v4440 = vshrl.u32 %v4439, 7
        %v4441 = vsub.s32 %v3186, %v4440
        %v4442 = vrot.slane %v4218, %v4441
        %v4443 = vlaneseq
        %v4444 = vshrl.u32 %v4443, 7
        %v4445 = vsub.s32 %v3186, %v4444
        %v4446 = vrot.slane %v4221, %v4445
        %v4447 = vlaneseq
        %v4448 = vshrl.u32 %v4447, 7
        %v4449 = vsub.s32 %v3186, %v4448
        %v4450 = vrot.slane %v4224, %v4449
        %v4451 = vlaneseq
        %v4452 = vshrl.u32 %v4451, 7
        %v4453 = vsub.s32 %v3186, %v4452
        %v4454 = vrot.slane %v4227, %v4453
        %v4455 = vlaneseq
        %v4456 = vshrl.u32 %v4455, 7
        %v4457 = vsub.s32 %v3186, %v4456
        %v4458 = vrot.slane %v4230, %v4457
        %v4459 = vlaneseq
        %v4460 = vshrl.u32 %v4459, 7
        %v4461 = vsub.s32 %v3186, %v4460
        %v4462 = vrot.slane %v4233, %v4461
        %v4463 = vlaneseq
        %v4464 = vshrl.u32 %v4463, 7
        %v4465 = vsub.s32 %v3186, %v4464
        %v4466 = vrot.slane %v4236, %v4465
        %v4467 = vlaneseq
        %v4468 = vshrl.u32 %v4467, 7
        %v4469 = vsub.s32 %v3186, %v4468
        %v4470 = vrot.slane %v4239, %v4469
        %v4471 = vlaneseq
        %v4472 = vshrl.u32 %v4471, 7
        %v4473 = vsub.s32 %v3186, %v4472
        %v4474 = vrot.slane %v4242, %v4473
        %v4475 = vlaneseq
        %v4476 = vshrl.u32 %v4475, 7
        %v4477 = vsub.s32 %v3186, %v4476
        %v4478 = vrot.slane %v4245, %v4477
        %v4479 = vlaneseq
        %v4480 = vshrl.u32 %v4479, 7
        %v4481 = vsub.s32 %v3186, %v4480
        %v4482 = vrot.slane %v4248, %v4481
        %v4483 = vlaneseq
        %v4484 = vshrl.u32 %v4483, 7
        %v4485 = vsub.s32 %v3186, %v4484
        %v4486 = vrot.slane %v4251, %v4485
        %v4487 = vlaneseq
        %v4488 = vshrl.u32 %v4487, 7
        %v4489 = vsub.s32 %v3186, %v4488
        %v4490 = vrot.slane %v4254, %v4489
        %v4491 = vlaneseq
        %v4492 = vshrl.u32 %v4491, 7
        %v4493 = vsub.s32 %v3186, %v4492
        %v4494 = vrot.slane %v4257, %v4493
        %v4495 = vlaneseq
        %v4496 = vshrl.u32 %v4495, 7
        %v4497 = vsub.s32 %v3186, %v4496
        %v4498 = vrot.slane %v4260, %v4497
        %v4499 = vlaneseq
        %v4500 = vshrl.u32 %v4499, 7
        %v4501 = vsub.s32 %v3186, %v4500
        %v4502 = vrot.slane %v4263, %v4501
        %v4503 = vlaneseq
        %v4504 = vshrl.u32 %v4503, 7
        %v4505 = vsub.s32 %v3186, %v4504
        %v4506 = vrot.slane %v4266, %v4505
        %v4507 = vlaneseq
        %v4508 = vshrl.u32 %v4507, 7
        %v4509 = vsub.s32 %v3186, %v4508
        %v4510 = vrot.slane %v4269, %v4509
        %v4511 = vlaneseq
        %v4512 = vshrl.u32 %v4511, 7
        %v4513 = vsub.s32 %v3186, %v4512
        %v4514 = vrot.slane %v4272, %v4513
        %v4515 = vlaneseq
        %v4516 = vshrl.u32 %v4515, 7
        %v4517 = vsub.s32 %v3186, %v4516
        %v4518 = vrot.slane %v4275, %v4517
        %v4519 = vlaneseq
        %v4520 = vshrl.u32 %v4519, 7
        %v4521 = vsub.s32 %v3186, %v4520
        %v4522 = vrot.slane %v4278, %v4521
        %v4523 = vlaneseq
        %v4524 = vshrl.u32 %v4523, 7
        %v4525 = vsub.s32 %v3186, %v4524
        %v4526 = vrot.slane %v4281, %v4525
        %v4527 = vlaneseq
        %v4528 = vshrl.u32 %v4527, 7
        %v4529 = vsub.s32 %v3186, %v4528
        %v4530 = vrot.slane %v4284, %v4529
        %v4531 = vlaneseq
        %v4532 = vshrl.u32 %v4531, 7
        %v4533 = vsub.s32 %v3186, %v4532
        %v4534 = vrot.slane %v4287, %v4533
        %v4535 = vlaneseq
        %v4536 = vshrl.u32 %v4535, 7
        %v4537 = vsub.s32 %v3186, %v4536
        %v4538 = vrot.slane %v4290, %v4537
        %v4539 = vlaneseq
        %v4540 = vshrl.u32 %v4539, 7
        %v4541 = vsub.s32 %v3186, %v4540
        %v4542 = vrot.slane %v4293, %v4541
        %v4543 = vlaneseq
        %v4544 = vshrl.u32 %v4543, 7
        %v4545 = vsub.s32 %v3186, %v4544
        %v4546 = vrot.slane %v4296, %v4545
        %v4547 = vlaneseq
        %v4548 = vshrl.u32 %v4547, 7
        %v4549 = vsub.s32 %v3186, %v4548
        %v4550 = vrot.slane %v4299, %v4549
        %v4551 = vlaneseq
        %v4552 = vshrl.u32 %v4551, 7
        %v4553 = vsub.s32 %v3186, %v4552
        %v4554 = vrot.slane %v4302, %v4553
        %v4555 = vlaneseq
        %v4556 = vshrl.u32 %v4555, 7
        %v4557 = vsub.s32 %v3186, %v4556
        %v4558 = vrot.slane %v4305, %v4557
        %v4559 = vlaneseq
        %v4560 = vshrl.u32 %v4559, 7
        %v4561 = vsub.s32 %v3186, %v4560
        %v4562 = vrot.slane %v4308, %v4561
        %v4563 = vlaneseq
        %v4564 = vshrl.u32 %v4563, 7
        %v4565 = vsub.s32 %v3186, %v4564
        %v4566 = vrot.slane %v4311, %v4565
        %v4567 = vlaneseq
        %v4568 = vshrl.u32 %v4567, 7
        %v4569 = vsub.s32 %v3186, %v4568
        %v4570 = vrot.slane %v4314, %v4569
        %v4571 = vsel %vm3443, %v4322, %v4318
        %v4572 = vsel %vm3445, %v4326, %v4571
        %v4573 = vsel %vm3447, %v4330, %v4572
        %v4574 = vsel %vm3449, %v4334, %v4573
        %v4575 = vsel %vm3451, %v4338, %v4574
        %v4576 = vsel %vm3453, %v4342, %v4575
        %v4577 = vsel %vm3455, %v4346, %v4576
        %v4578 = vsel %vm3443, %v4354, %v4350
        %v4579 = vsel %vm3445, %v4358, %v4578
        %v4580 = vsel %vm3447, %v4362, %v4579
        %v4581 = vsel %vm3449, %v4366, %v4580
        %v4582 = vsel %vm3451, %v4370, %v4581
        %v4583 = vsel %vm3453, %v4374, %v4582
        %v4584 = vsel %vm3455, %v4378, %v4583
        %v4585 = vsel %vm3443, %v4386, %v4382
        %v4586 = vsel %vm3445, %v4390, %v4585
        %v4587 = vsel %vm3447, %v4394, %v4586
        %v4588 = vsel %vm3449, %v4398, %v4587
        %v4589 = vsel %vm3451, %v4402, %v4588
        %v4590 = vsel %vm3453, %v4406, %v4589
        %v4591 = vsel %vm3455, %v4410, %v4590
        %v4592 = vsel %vm3443, %v4418, %v4414
        %v4593 = vsel %vm3445, %v4422, %v4592
        %v4594 = vsel %vm3447, %v4426, %v4593
        %v4595 = vsel %vm3449, %v4430, %v4594
        %v4596 = vsel %vm3451, %v4434, %v4595
        %v4597 = vsel %vm3453, %v4438, %v4596
        %v4598 = vsel %vm3455, %v4442, %v4597
        %v4599 = vsel %vm3443, %v4450, %v4446
        %v4600 = vsel %vm3445, %v4454, %v4599
        %v4601 = vsel %vm3447, %v4458, %v4600
        %v4602 = vsel %vm3449, %v4462, %v4601
        %v4603 = vsel %vm3451, %v4466, %v4602
        %v4604 = vsel %vm3453, %v4470, %v4603
        %v4605 = vsel %vm3455, %v4474, %v4604
        %v4606 = vsel %vm3443, %v4482, %v4478
        %v4607 = vsel %vm3445, %v4486, %v4606
        %v4608 = vsel %vm3447, %v4490, %v4607
        %v4609 = vsel %vm3449, %v4494, %v4608
        %v4610 = vsel %vm3451, %v4498, %v4609
        %v4611 = vsel %vm3453, %v4502, %v4610
        %v4612 = vsel %vm3455, %v4506, %v4611
        %v4613 = vsel %vm3443, %v4514, %v4510
        %v4614 = vsel %vm3445, %v4518, %v4613
        %v4615 = vsel %vm3447, %v4522, %v4614
        %v4616 = vsel %vm3449, %v4526, %v4615
        %v4617 = vsel %vm3451, %v4530, %v4616
        %v4618 = vsel %vm3453, %v4534, %v4617
        %v4619 = vsel %vm3455, %v4538, %v4618
        %v4620 = vsel %vm3443, %v4546, %v4542
        %v4621 = vsel %vm3445, %v4550, %v4620
        %v4622 = vsel %vm3447, %v4554, %v4621
        %v4623 = vsel %vm3449, %v4558, %v4622
        %v4624 = vsel %vm3451, %v4562, %v4623
        %v4625 = vsel %vm3453, %v4566, %v4624
        %v4626 = vsel %vm3455, %v4570, %v4625
        %v4635 = vsel %vm3514, %v4577, 0.0
        %4636 = vadd.xlane.f32.xlu0 %v4635
        %v4637 = vpop.xlane.xlu0 %4636
        %v4638 = vsel %vm3514, %v4584, 0.0
        %4639 = vadd.xlane.f32.xlu0 %v4638
        %v4640 = vpop.xlane.xlu0 %4639
        %v4641 = vsel %vm3514, %v4591, 0.0
        %4642 = vadd.xlane.f32.xlu0 %v4641
        %v4643 = vpop.xlane.xlu0 %4642
        %v4644 = vsel %vm3514, %v4598, 0.0
        %4645 = vadd.xlane.f32.xlu0 %v4644
        %v4646 = vpop.xlane.xlu0 %4645
        %v4647 = vsel %vm3514, %v4605, 0.0
        %4648 = vadd.xlane.f32.xlu0 %v4647
        %v4649 = vpop.xlane.xlu0 %4648
        %v4650 = vsel %vm3514, %v4612, 0.0
        %4651 = vadd.xlane.f32.xlu0 %v4650
        %v4652 = vpop.xlane.xlu0 %4651
        %v4653 = vsel %vm3514, %v4619, 0.0
        %4654 = vadd.xlane.f32.xlu0 %v4653
        %v4655 = vpop.xlane.xlu0 %4654
        %v4656 = vsel %vm3514, %v4626, 0.0
        %4657 = vadd.xlane.f32.xlu0 %v4656
        %v4658 = vpop.xlane.xlu0 %4657
        %v4659 = vrcp.pop %v4637
        %v4660 = vrcp.pop %v4640
        %v4661 = vrcp.pop %v4643
        %v4662 = vrcp.pop %v4646
        %v4663 = vrcp.pop %v4649
        %v4664 = vrcp.pop %v4652
        %v4665 = vrcp.pop %v4655
        %v4666 = vrcp.pop %v4658
        %v4675 = vlaneseq
        %v4676 = vshrl.u32 %v4675, 7
        %v4677 = vsub.s32 0, %v4676
        %v4678 = vrot.slane %v4659, %v4677
        %v4679 = vlaneseq
        %v4680 = vshrl.u32 %v4679, 7
        %v4681 = vsub.s32 1, %v4680
        %v4682 = vrot.slane %v4659, %v4681
        %v4683 = vlaneseq
        %v4684 = vshrl.u32 %v4683, 7
        %v4685 = vsub.s32 2, %v4684
        %v4686 = vrot.slane %v4659, %v4685
        %v4687 = vlaneseq
        %v4688 = vshrl.u32 %v4687, 7
        %v4689 = vsub.s32 3, %v4688
        %v4690 = vrot.slane %v4659, %v4689
        %v4691 = vlaneseq
        %v4692 = vshrl.u32 %v4691, 7
        %v4693 = vsub.s32 4, %v4692
        %v4694 = vrot.slane %v4659, %v4693
        %v4695 = vlaneseq
        %v4696 = vshrl.u32 %v4695, 7
        %v4697 = vsub.s32 5, %v4696
        %v4698 = vrot.slane %v4659, %v4697
        %v4699 = vlaneseq
        %v4700 = vshrl.u32 %v4699, 7
        %v4701 = vsub.s32 6, %v4700
        %v4702 = vrot.slane %v4659, %v4701
        %v4703 = vlaneseq
        %v4704 = vshrl.u32 %v4703, 7
        %v4705 = vsub.s32 7, %v4704
        %v4706 = vrot.slane %v4659, %v4705
        %v4707 = vlaneseq
        %v4708 = vshrl.u32 %v4707, 7
        %v4709 = vsub.s32 0, %v4708
        %v4710 = vrot.slane %v4660, %v4709
        %v4711 = vlaneseq
        %v4712 = vshrl.u32 %v4711, 7
        %v4713 = vsub.s32 1, %v4712
        %v4714 = vrot.slane %v4660, %v4713
        %v4715 = vlaneseq
        %v4716 = vshrl.u32 %v4715, 7
        %v4717 = vsub.s32 2, %v4716
        %v4718 = vrot.slane %v4660, %v4717
        %v4719 = vlaneseq
        %v4720 = vshrl.u32 %v4719, 7
        %v4721 = vsub.s32 3, %v4720
        %v4722 = vrot.slane %v4660, %v4721
        %v4723 = vlaneseq
        %v4724 = vshrl.u32 %v4723, 7
        %v4725 = vsub.s32 4, %v4724
        %v4726 = vrot.slane %v4660, %v4725
        %v4727 = vlaneseq
        %v4728 = vshrl.u32 %v4727, 7
        %v4729 = vsub.s32 5, %v4728
        %v4730 = vrot.slane %v4660, %v4729
        %v4731 = vlaneseq
        %v4732 = vshrl.u32 %v4731, 7
        %v4733 = vsub.s32 6, %v4732
        %v4734 = vrot.slane %v4660, %v4733
        %v4735 = vlaneseq
        %v4736 = vshrl.u32 %v4735, 7
        %v4737 = vsub.s32 7, %v4736
        %v4738 = vrot.slane %v4660, %v4737
        %v4739 = vlaneseq
        %v4740 = vshrl.u32 %v4739, 7
        %v4741 = vsub.s32 0, %v4740
        %v4742 = vrot.slane %v4661, %v4741
        %v4743 = vlaneseq
        %v4744 = vshrl.u32 %v4743, 7
        %v4745 = vsub.s32 1, %v4744
        %v4746 = vrot.slane %v4661, %v4745
        %v4747 = vlaneseq
        %v4748 = vshrl.u32 %v4747, 7
        %v4749 = vsub.s32 2, %v4748
        %v4750 = vrot.slane %v4661, %v4749
        %v4751 = vlaneseq
        %v4752 = vshrl.u32 %v4751, 7
        %v4753 = vsub.s32 3, %v4752
        %v4754 = vrot.slane %v4661, %v4753
        %v4755 = vlaneseq
        %v4756 = vshrl.u32 %v4755, 7
        %v4757 = vsub.s32 4, %v4756
        %v4758 = vrot.slane %v4661, %v4757
        %v4759 = vlaneseq
        %v4760 = vshrl.u32 %v4759, 7
        %v4761 = vsub.s32 5, %v4760
        %v4762 = vrot.slane %v4661, %v4761
        %v4763 = vlaneseq
        %v4764 = vshrl.u32 %v4763, 7
        %v4765 = vsub.s32 6, %v4764
        %v4766 = vrot.slane %v4661, %v4765
        %v4767 = vlaneseq
        %v4768 = vshrl.u32 %v4767, 7
        %v4769 = vsub.s32 7, %v4768
        %v4770 = vrot.slane %v4661, %v4769
        %v4771 = vlaneseq
        %v4772 = vshrl.u32 %v4771, 7
        %v4773 = vsub.s32 0, %v4772
        %v4774 = vrot.slane %v4662, %v4773
        %v4775 = vlaneseq
        %v4776 = vshrl.u32 %v4775, 7
        %v4777 = vsub.s32 1, %v4776
        %v4778 = vrot.slane %v4662, %v4777
        %v4779 = vlaneseq
        %v4780 = vshrl.u32 %v4779, 7
        %v4781 = vsub.s32 2, %v4780
        %v4782 = vrot.slane %v4662, %v4781
        %v4783 = vlaneseq
        %v4784 = vshrl.u32 %v4783, 7
        %v4785 = vsub.s32 3, %v4784
        %v4786 = vrot.slane %v4662, %v4785
        %v4787 = vlaneseq
        %v4788 = vshrl.u32 %v4787, 7
        %v4789 = vsub.s32 4, %v4788
        %v4790 = vrot.slane %v4662, %v4789
        %v4791 = vlaneseq
        %v4792 = vshrl.u32 %v4791, 7
        %v4793 = vsub.s32 5, %v4792
        %v4794 = vrot.slane %v4662, %v4793
        %v4795 = vlaneseq
        %v4796 = vshrl.u32 %v4795, 7
        %v4797 = vsub.s32 6, %v4796
        %v4798 = vrot.slane %v4662, %v4797
        %v4799 = vlaneseq
        %v4800 = vshrl.u32 %v4799, 7
        %v4801 = vsub.s32 7, %v4800
        %v4802 = vrot.slane %v4662, %v4801
        %v4803 = vlaneseq
        %v4804 = vshrl.u32 %v4803, 7
        %v4805 = vsub.s32 0, %v4804
        %v4806 = vrot.slane %v4663, %v4805
        %v4807 = vlaneseq
        %v4808 = vshrl.u32 %v4807, 7
        %v4809 = vsub.s32 1, %v4808
        %v4810 = vrot.slane %v4663, %v4809
        %v4811 = vlaneseq
        %v4812 = vshrl.u32 %v4811, 7
        %v4813 = vsub.s32 2, %v4812
        %v4814 = vrot.slane %v4663, %v4813
        %v4815 = vlaneseq
        %v4816 = vshrl.u32 %v4815, 7
        %v4817 = vsub.s32 3, %v4816
        %v4818 = vrot.slane %v4663, %v4817
        %v4819 = vlaneseq
        %v4820 = vshrl.u32 %v4819, 7
        %v4821 = vsub.s32 4, %v4820
        %v4822 = vrot.slane %v4663, %v4821
        %v4823 = vlaneseq
        %v4824 = vshrl.u32 %v4823, 7
        %v4825 = vsub.s32 5, %v4824
        %v4826 = vrot.slane %v4663, %v4825
        %v4827 = vlaneseq
        %v4828 = vshrl.u32 %v4827, 7
        %v4829 = vsub.s32 6, %v4828
        %v4830 = vrot.slane %v4663, %v4829
        %v4831 = vlaneseq
        %v4832 = vshrl.u32 %v4831, 7
        %v4833 = vsub.s32 7, %v4832
        %v4834 = vrot.slane %v4663, %v4833
        %v4835 = vlaneseq
        %v4836 = vshrl.u32 %v4835, 7
        %v4837 = vsub.s32 0, %v4836
        %v4838 = vrot.slane %v4664, %v4837
        %v4839 = vlaneseq
        %v4840 = vshrl.u32 %v4839, 7
        %v4841 = vsub.s32 1, %v4840
        %v4842 = vrot.slane %v4664, %v4841
        %v4843 = vlaneseq
        %v4844 = vshrl.u32 %v4843, 7
        %v4845 = vsub.s32 2, %v4844
        %v4846 = vrot.slane %v4664, %v4845
        %v4847 = vlaneseq
        %v4848 = vshrl.u32 %v4847, 7
        %v4849 = vsub.s32 3, %v4848
        %v4850 = vrot.slane %v4664, %v4849
        %v4851 = vlaneseq
        %v4852 = vshrl.u32 %v4851, 7
        %v4853 = vsub.s32 4, %v4852
        %v4854 = vrot.slane %v4664, %v4853
        %v4855 = vlaneseq
        %v4856 = vshrl.u32 %v4855, 7
        %v4857 = vsub.s32 5, %v4856
        %v4858 = vrot.slane %v4664, %v4857
        %v4859 = vlaneseq
        %v4860 = vshrl.u32 %v4859, 7
        %v4861 = vsub.s32 6, %v4860
        %v4862 = vrot.slane %v4664, %v4861
        %v4863 = vlaneseq
        %v4864 = vshrl.u32 %v4863, 7
        %v4865 = vsub.s32 7, %v4864
        %v4866 = vrot.slane %v4664, %v4865
        %v4867 = vlaneseq
        %v4868 = vshrl.u32 %v4867, 7
        %v4869 = vsub.s32 0, %v4868
        %v4870 = vrot.slane %v4665, %v4869
        %v4871 = vlaneseq
        %v4872 = vshrl.u32 %v4871, 7
        %v4873 = vsub.s32 1, %v4872
        %v4874 = vrot.slane %v4665, %v4873
        %v4875 = vlaneseq
        %v4876 = vshrl.u32 %v4875, 7
        %v4877 = vsub.s32 2, %v4876
        %v4878 = vrot.slane %v4665, %v4877
        %v4879 = vlaneseq
        %v4880 = vshrl.u32 %v4879, 7
        %v4881 = vsub.s32 3, %v4880
        %v4882 = vrot.slane %v4665, %v4881
        %v4883 = vlaneseq
        %v4884 = vshrl.u32 %v4883, 7
        %v4885 = vsub.s32 4, %v4884
        %v4886 = vrot.slane %v4665, %v4885
        %v4887 = vlaneseq
        %v4888 = vshrl.u32 %v4887, 7
        %v4889 = vsub.s32 5, %v4888
        %v4890 = vrot.slane %v4665, %v4889
        %v4891 = vlaneseq
        %v4892 = vshrl.u32 %v4891, 7
        %v4893 = vsub.s32 6, %v4892
        %v4894 = vrot.slane %v4665, %v4893
        %v4895 = vlaneseq
        %v4896 = vshrl.u32 %v4895, 7
        %v4897 = vsub.s32 7, %v4896
        %v4898 = vrot.slane %v4665, %v4897
        %v4899 = vlaneseq
        %v4900 = vshrl.u32 %v4899, 7
        %v4901 = vsub.s32 0, %v4900
        %v4902 = vrot.slane %v4666, %v4901
        %v4903 = vlaneseq
        %v4904 = vshrl.u32 %v4903, 7
        %v4905 = vsub.s32 1, %v4904
        %v4906 = vrot.slane %v4666, %v4905
        %v4907 = vlaneseq
        %v4908 = vshrl.u32 %v4907, 7
        %v4909 = vsub.s32 2, %v4908
        %v4910 = vrot.slane %v4666, %v4909
        %v4911 = vlaneseq
        %v4912 = vshrl.u32 %v4911, 7
        %v4913 = vsub.s32 3, %v4912
        %v4914 = vrot.slane %v4666, %v4913
        %v4915 = vlaneseq
        %v4916 = vshrl.u32 %v4915, 7
        %v4917 = vsub.s32 4, %v4916
        %v4918 = vrot.slane %v4666, %v4917
        %v4919 = vlaneseq
        %v4920 = vshrl.u32 %v4919, 7
        %v4921 = vsub.s32 5, %v4920
        %v4922 = vrot.slane %v4666, %v4921
        %v4923 = vlaneseq
        %v4924 = vshrl.u32 %v4923, 7
        %v4925 = vsub.s32 6, %v4924
        %v4926 = vrot.slane %v4666, %v4925
        %v4927 = vlaneseq
        %v4928 = vshrl.u32 %v4927, 7
        %v4929 = vsub.s32 7, %v4928
        %v4930 = vrot.slane %v4666, %v4929
        %v4995 = vmul.f32 %v3932, %v4678
        %v4996 = vmul.f32 %v3934, %v4682
        %v4997 = vmul.f32 %v3936, %v4686
        %v4998 = vmul.f32 %v3938, %v4690
        %v4999 = vmul.f32 %v3940, %v4694
        %v5000 = vmul.f32 %v3942, %v4698
        %v5001 = vmul.f32 %v3944, %v4702
        %v5002 = vmul.f32 %v3946, %v4706
        %v5003 = vmul.f32 %v3948, %v4710
        %v5004 = vmul.f32 %v3950, %v4714
        %v5005 = vmul.f32 %v3952, %v4718
        %v5006 = vmul.f32 %v3954, %v4722
        %v5007 = vmul.f32 %v3956, %v4726
        %v5008 = vmul.f32 %v3958, %v4730
        %v5009 = vmul.f32 %v3960, %v4734
        %v5010 = vmul.f32 %v3962, %v4738
        %v5011 = vmul.f32 %v3964, %v4742
        %v5012 = vmul.f32 %v3966, %v4746
        %v5013 = vmul.f32 %v3968, %v4750
        %v5014 = vmul.f32 %v3970, %v4754
        %v5015 = vmul.f32 %v3972, %v4758
        %v5016 = vmul.f32 %v3974, %v4762
        %v5017 = vmul.f32 %v3976, %v4766
        %v5018 = vmul.f32 %v3978, %v4770
        %v5019 = vmul.f32 %v3980, %v4774
        %v5020 = vmul.f32 %v3982, %v4778
        %v5021 = vmul.f32 %v3984, %v4782
        %v5022 = vmul.f32 %v3986, %v4786
        %v5023 = vmul.f32 %v3988, %v4790
        %v5024 = vmul.f32 %v3990, %v4794
        %v5025 = vmul.f32 %v3992, %v4798
        %v5026 = vmul.f32 %v3994, %v4802
        %v5027 = vmul.f32 %v3996, %v4806
        %v5028 = vmul.f32 %v3998, %v4810
        %v5029 = vmul.f32 %v4000, %v4814
        %v5030 = vmul.f32 %v4002, %v4818
        %v5031 = vmul.f32 %v4004, %v4822
        %v5032 = vmul.f32 %v4006, %v4826
        %v5033 = vmul.f32 %v4008, %v4830
        %v5034 = vmul.f32 %v4010, %v4834
        %v5035 = vmul.f32 %v4012, %v4838
        %v5036 = vmul.f32 %v4014, %v4842
        %v5037 = vmul.f32 %v4016, %v4846
        %v5038 = vmul.f32 %v4018, %v4850
        %v5039 = vmul.f32 %v4020, %v4854
        %v5040 = vmul.f32 %v4022, %v4858
        %v5041 = vmul.f32 %v4024, %v4862
        %v5042 = vmul.f32 %v4026, %v4866
        %v5043 = vmul.f32 %v4028, %v4870
        %v5044 = vmul.f32 %v4030, %v4874
        %v5045 = vmul.f32 %v4032, %v4878
        %v5046 = vmul.f32 %v4034, %v4882
        %v5047 = vmul.f32 %v4036, %v4886
        %v5048 = vmul.f32 %v4038, %v4890
        %v5049 = vmul.f32 %v4040, %v4894
        %v5050 = vmul.f32 %v4042, %v4898
        %v5051 = vmul.f32 %v4044, %v4902
        %v5052 = vmul.f32 %v4046, %v4906
        %v5053 = vmul.f32 %v4048, %v4910
        %v5054 = vmul.f32 %v4050, %v4914
        %v5055 = vmul.f32 %v4052, %v4918
        %v5056 = vmul.f32 %v4054, %v4922
        %v5057 = vmul.f32 %v4056, %v4926
        %v5058 = vmul.f32 %v4058, %v4930
        %v5059 = vunpack.c.l.bf16 %v1105
        %v5060 = vunpack.c.h.bf16 %v1105
        %v5061 = vunpack.c.l.bf16 %v1109
        %v5062 = vunpack.c.h.bf16 %v1109
        %v5063 = vunpack.c.l.bf16 %v1113
        %v5064 = vunpack.c.h.bf16 %v1113
        %v5065 = vunpack.c.l.bf16 %v1117
        %v5066 = vunpack.c.h.bf16 %v1117
        %v5067 = vunpack.c.l.bf16 %v1121
        %v5068 = vunpack.c.h.bf16 %v1121
        %v5069 = vunpack.c.l.bf16 %v1125
        %v5070 = vunpack.c.h.bf16 %v1125
        %v5071 = vunpack.c.l.bf16 %v1129
        %v5072 = vunpack.c.h.bf16 %v1129
        %v5073 = vunpack.c.l.bf16 %v1133
        %v5074 = vunpack.c.h.bf16 %v1133
        %v5075 = vunpack.c.l.bf16 %v1137
        %v5076 = vunpack.c.h.bf16 %v1137
        %v5077 = vunpack.c.l.bf16 %v1141
        %v5078 = vunpack.c.h.bf16 %v1141
        %v5079 = vunpack.c.l.bf16 %v1145
        %v5080 = vunpack.c.h.bf16 %v1145
        %v5081 = vunpack.c.l.bf16 %v1149
        %v5082 = vunpack.c.h.bf16 %v1149
        %v5083 = vunpack.c.l.bf16 %v1153
        %v5084 = vunpack.c.h.bf16 %v1153
        %v5085 = vunpack.c.l.bf16 %v1157
        %v5086 = vunpack.c.h.bf16 %v1157
        %v5087 = vunpack.c.l.bf16 %v1161
        %v5088 = vunpack.c.h.bf16 %v1161
        %v5089 = vunpack.c.l.bf16 %v1165
        %v5090 = vunpack.c.h.bf16 %v1165
        %v5091 = vunpack.c.l.bf16 %v1169
        %v5092 = vunpack.c.h.bf16 %v1169
        %v5093 = vunpack.c.l.bf16 %v1173
        %v5094 = vunpack.c.h.bf16 %v1173
        %v5095 = vunpack.c.l.bf16 %v1177
        %v5096 = vunpack.c.h.bf16 %v1177
        %v5097 = vunpack.c.l.bf16 %v1181
        %v5098 = vunpack.c.h.bf16 %v1181
        %v5099 = vunpack.c.l.bf16 %v1185
        %v5100 = vunpack.c.h.bf16 %v1185
        %v5101 = vunpack.c.l.bf16 %v1189
        %v5102 = vunpack.c.h.bf16 %v1189
        %v5103 = vunpack.c.l.bf16 %v1193
        %v5104 = vunpack.c.h.bf16 %v1193
        %v5105 = vunpack.c.l.bf16 %v1197
        %v5106 = vunpack.c.h.bf16 %v1197
        %v5107 = vunpack.c.l.bf16 %v1201
        %v5108 = vunpack.c.h.bf16 %v1201
        %v5109 = vunpack.c.l.bf16 %v1205
        %v5110 = vunpack.c.h.bf16 %v1205
        %v5111 = vunpack.c.l.bf16 %v1209
        %v5112 = vunpack.c.h.bf16 %v1209
        %v5113 = vunpack.c.l.bf16 %v1213
        %v5114 = vunpack.c.h.bf16 %v1213
        %v5115 = vunpack.c.l.bf16 %v1217
        %v5116 = vunpack.c.h.bf16 %v1217
        %v5117 = vunpack.c.l.bf16 %v1221
        %v5118 = vunpack.c.h.bf16 %v1221
        %v5119 = vunpack.c.l.bf16 %v1225
        %v5120 = vunpack.c.h.bf16 %v1225
        %v5121 = vunpack.c.l.bf16 %v1229
        %v5122 = vunpack.c.h.bf16 %v1229
        %5124 = vset.pattern.permute.xlu0 0
        %5125 = vperm.xlu0 %5124, %v4995
        %v5126 = vpop.permute.xlu0 %5125
        %5129 = vset.pattern.permute.xlu0 0
        %5130 = vperm.xlu0 %5129, %v4996
        %v5131 = vpop.permute.xlu0 %5130
        %5134 = vset.pattern.permute.xlu0 0
        %5135 = vperm.xlu0 %5134, %v4997
        %v5136 = vpop.permute.xlu0 %5135
        %5139 = vset.pattern.permute.xlu0 0
        %5140 = vperm.xlu0 %5139, %v4998
        %v5141 = vpop.permute.xlu0 %5140
        %5144 = vset.pattern.permute.xlu0 0
        %5145 = vperm.xlu0 %5144, %v4999
        %v5146 = vpop.permute.xlu0 %5145
        %5149 = vset.pattern.permute.xlu0 0
        %5150 = vperm.xlu0 %5149, %v5000
        %v5151 = vpop.permute.xlu0 %5150
        %5154 = vset.pattern.permute.xlu0 0
        %5155 = vperm.xlu0 %5154, %v5001
        %v5156 = vpop.permute.xlu0 %5155
        %5159 = vset.pattern.permute.xlu0 0
        %5160 = vperm.xlu0 %5159, %v5002
        %v5161 = vpop.permute.xlu0 %5160
        %5164 = vset.pattern.permute.xlu0 0
        %5165 = vperm.xlu0 %5164, %v5003
        %v5166 = vpop.permute.xlu0 %5165
        %5169 = vset.pattern.permute.xlu0 0
        %5170 = vperm.xlu0 %5169, %v5004
        %v5171 = vpop.permute.xlu0 %5170
        %5174 = vset.pattern.permute.xlu0 0
        %5175 = vperm.xlu0 %5174, %v5005
        %v5176 = vpop.permute.xlu0 %5175
        %5179 = vset.pattern.permute.xlu0 0
        %5180 = vperm.xlu0 %5179, %v5006
        %v5181 = vpop.permute.xlu0 %5180
        %5184 = vset.pattern.permute.xlu0 0
        %5185 = vperm.xlu0 %5184, %v5007
        %v5186 = vpop.permute.xlu0 %5185
        %5189 = vset.pattern.permute.xlu0 0
        %5190 = vperm.xlu0 %5189, %v5008
        %v5191 = vpop.permute.xlu0 %5190
        %5194 = vset.pattern.permute.xlu0 0
        %5195 = vperm.xlu0 %5194, %v5009
        %v5196 = vpop.permute.xlu0 %5195
        %5199 = vset.pattern.permute.xlu0 0
        %5200 = vperm.xlu0 %5199, %v5010
        %v5201 = vpop.permute.xlu0 %5200
        %5204 = vset.pattern.permute.xlu0 0
        %5205 = vperm.xlu0 %5204, %v5011
        %v5206 = vpop.permute.xlu0 %5205
        %5209 = vset.pattern.permute.xlu0 0
        %5210 = vperm.xlu0 %5209, %v5012
        %v5211 = vpop.permute.xlu0 %5210
        %5214 = vset.pattern.permute.xlu0 0
        %5215 = vperm.xlu0 %5214, %v5013
        %v5216 = vpop.permute.xlu0 %5215
        %5219 = vset.pattern.permute.xlu0 0
        %5220 = vperm.xlu0 %5219, %v5014
        %v5221 = vpop.permute.xlu0 %5220
        %5224 = vset.pattern.permute.xlu0 0
        %5225 = vperm.xlu0 %5224, %v5015
        %v5226 = vpop.permute.xlu0 %5225
        %5229 = vset.pattern.permute.xlu0 0
        %5230 = vperm.xlu0 %5229, %v5016
        %v5231 = vpop.permute.xlu0 %5230
        %5234 = vset.pattern.permute.xlu0 0
        %5235 = vperm.xlu0 %5234, %v5017
        %v5236 = vpop.permute.xlu0 %5235
        %5239 = vset.pattern.permute.xlu0 0
        %5240 = vperm.xlu0 %5239, %v5018
        %v5241 = vpop.permute.xlu0 %5240
        %5244 = vset.pattern.permute.xlu0 0
        %5245 = vperm.xlu0 %5244, %v5019
        %v5246 = vpop.permute.xlu0 %5245
        %5249 = vset.pattern.permute.xlu0 0
        %5250 = vperm.xlu0 %5249, %v5020
        %v5251 = vpop.permute.xlu0 %5250
        %5254 = vset.pattern.permute.xlu0 0
        %5255 = vperm.xlu0 %5254, %v5021
        %v5256 = vpop.permute.xlu0 %5255
        %5259 = vset.pattern.permute.xlu0 0
        %5260 = vperm.xlu0 %5259, %v5022
        %v5261 = vpop.permute.xlu0 %5260
        %5264 = vset.pattern.permute.xlu0 0
        %5265 = vperm.xlu0 %5264, %v5023
        %v5266 = vpop.permute.xlu0 %5265
        %5269 = vset.pattern.permute.xlu0 0
        %5270 = vperm.xlu0 %5269, %v5024
        %v5271 = vpop.permute.xlu0 %5270
        %5274 = vset.pattern.permute.xlu0 0
        %5275 = vperm.xlu0 %5274, %v5025
        %v5276 = vpop.permute.xlu0 %5275
        %5279 = vset.pattern.permute.xlu0 0
        %5280 = vperm.xlu0 %5279, %v5026
        %v5281 = vpop.permute.xlu0 %5280
        %5284 = vset.pattern.permute.xlu0 0
        %5285 = vperm.xlu0 %5284, %v5027
        %v5286 = vpop.permute.xlu0 %5285
        %5289 = vset.pattern.permute.xlu0 0
        %5290 = vperm.xlu0 %5289, %v5028
        %v5291 = vpop.permute.xlu0 %5290
        %5294 = vset.pattern.permute.xlu0 0
        %5295 = vperm.xlu0 %5294, %v5029
        %v5296 = vpop.permute.xlu0 %5295
        %5299 = vset.pattern.permute.xlu0 0
        %5300 = vperm.xlu0 %5299, %v5030
        %v5301 = vpop.permute.xlu0 %5300
        %5304 = vset.pattern.permute.xlu0 0
        %5305 = vperm.xlu0 %5304, %v5031
        %v5306 = vpop.permute.xlu0 %5305
        %5309 = vset.pattern.permute.xlu0 0
        %5310 = vperm.xlu0 %5309, %v5032
        %v5311 = vpop.permute.xlu0 %5310
        %5314 = vset.pattern.permute.xlu0 0
        %5315 = vperm.xlu0 %5314, %v5033
        %v5316 = vpop.permute.xlu0 %5315
        %5319 = vset.pattern.permute.xlu0 0
        %5320 = vperm.xlu0 %5319, %v5034
        %v5321 = vpop.permute.xlu0 %5320
        %5324 = vset.pattern.permute.xlu0 0
        %5325 = vperm.xlu0 %5324, %v5035
        %v5326 = vpop.permute.xlu0 %5325
        %5329 = vset.pattern.permute.xlu0 0
        %5330 = vperm.xlu0 %5329, %v5036
        %v5331 = vpop.permute.xlu0 %5330
        %5334 = vset.pattern.permute.xlu0 0
        %5335 = vperm.xlu0 %5334, %v5037
        %v5336 = vpop.permute.xlu0 %5335
        %5339 = vset.pattern.permute.xlu0 0
        %5340 = vperm.xlu0 %5339, %v5038
        %v5341 = vpop.permute.xlu0 %5340
        %5344 = vset.pattern.permute.xlu0 0
        %5345 = vperm.xlu0 %5344, %v5039
        %v5346 = vpop.permute.xlu0 %5345
        %5349 = vset.pattern.permute.xlu0 0
        %5350 = vperm.xlu0 %5349, %v5040
        %v5351 = vpop.permute.xlu0 %5350
        %5354 = vset.pattern.permute.xlu0 0
        %5355 = vperm.xlu0 %5354, %v5041
        %v5356 = vpop.permute.xlu0 %5355
        %5359 = vset.pattern.permute.xlu0 0
        %5360 = vperm.xlu0 %5359, %v5042
        %v5361 = vpop.permute.xlu0 %5360
        %5364 = vset.pattern.permute.xlu0 0
        %5365 = vperm.xlu0 %5364, %v5043
        %v5366 = vpop.permute.xlu0 %5365
        %5369 = vset.pattern.permute.xlu0 0
        %5370 = vperm.xlu0 %5369, %v5044
        %v5371 = vpop.permute.xlu0 %5370
        %5374 = vset.pattern.permute.xlu0 0
        %5375 = vperm.xlu0 %5374, %v5045
        %v5376 = vpop.permute.xlu0 %5375
        %5379 = vset.pattern.permute.xlu0 0
        %5380 = vperm.xlu0 %5379, %v5046
        %v5381 = vpop.permute.xlu0 %5380
        %5384 = vset.pattern.permute.xlu0 0
        %5385 = vperm.xlu0 %5384, %v5047
        %v5386 = vpop.permute.xlu0 %5385
        %5389 = vset.pattern.permute.xlu0 0
        %5390 = vperm.xlu0 %5389, %v5048
        %v5391 = vpop.permute.xlu0 %5390
        %5394 = vset.pattern.permute.xlu0 0
        %5395 = vperm.xlu0 %5394, %v5049
        %v5396 = vpop.permute.xlu0 %5395
        %5399 = vset.pattern.permute.xlu0 0
        %5400 = vperm.xlu0 %5399, %v5050
        %v5401 = vpop.permute.xlu0 %5400
        %5404 = vset.pattern.permute.xlu0 0
        %5405 = vperm.xlu0 %5404, %v5051
        %v5406 = vpop.permute.xlu0 %5405
        %5409 = vset.pattern.permute.xlu0 0
        %5410 = vperm.xlu0 %5409, %v5052
        %v5411 = vpop.permute.xlu0 %5410
        %5414 = vset.pattern.permute.xlu0 0
        %5415 = vperm.xlu0 %5414, %v5053
        %v5416 = vpop.permute.xlu0 %5415
        %5419 = vset.pattern.permute.xlu0 0
        %5420 = vperm.xlu0 %5419, %v5054
        %v5421 = vpop.permute.xlu0 %5420
        %5424 = vset.pattern.permute.xlu0 0
        %5425 = vperm.xlu0 %5424, %v5055
        %v5426 = vpop.permute.xlu0 %5425
        %5429 = vset.pattern.permute.xlu0 0
        %5430 = vperm.xlu0 %5429, %v5056
        %v5431 = vpop.permute.xlu0 %5430
        %5434 = vset.pattern.permute.xlu0 0
        %5435 = vperm.xlu0 %5434, %v5057
        %v5436 = vpop.permute.xlu0 %5435
        %5439 = vset.pattern.permute.xlu0 0
        %5440 = vperm.xlu0 %5439, %v5058
        %v5441 = vpop.permute.xlu0 %5440
        %v5443 = vmul.f32 %v5059, %v5126
        %v5444 = vmul.f32 %v5060, %v5131
        %v5445 = vmul.f32 %v5061, %v5136
        %v5446 = vmul.f32 %v5062, %v5141
        %v5447 = vmul.f32 %v5063, %v5146
        %v5448 = vmul.f32 %v5064, %v5151
        %v5449 = vmul.f32 %v5065, %v5156
        %v5450 = vmul.f32 %v5066, %v5161
        %v5451 = vmul.f32 %v5067, %v5166
        %v5452 = vmul.f32 %v5068, %v5171
        %v5453 = vmul.f32 %v5069, %v5176
        %v5454 = vmul.f32 %v5070, %v5181
        %v5455 = vmul.f32 %v5071, %v5186
        %v5456 = vmul.f32 %v5072, %v5191
        %v5457 = vmul.f32 %v5073, %v5196
        %v5458 = vmul.f32 %v5074, %v5201
        %v5459 = vmul.f32 %v5075, %v5206
        %v5460 = vmul.f32 %v5076, %v5211
        %v5461 = vmul.f32 %v5077, %v5216
        %v5462 = vmul.f32 %v5078, %v5221
        %v5463 = vmul.f32 %v5079, %v5226
        %v5464 = vmul.f32 %v5080, %v5231
        %v5465 = vmul.f32 %v5081, %v5236
        %v5466 = vmul.f32 %v5082, %v5241
        %v5467 = vmul.f32 %v5083, %v5246
        %v5468 = vmul.f32 %v5084, %v5251
        %v5469 = vmul.f32 %v5085, %v5256
        %v5470 = vmul.f32 %v5086, %v5261
        %v5471 = vmul.f32 %v5087, %v5266
        %v5472 = vmul.f32 %v5088, %v5271
        %v5473 = vmul.f32 %v5089, %v5276
        %v5474 = vmul.f32 %v5090, %v5281
        %v5475 = vmul.f32 %v5091, %v5286
        %v5476 = vmul.f32 %v5092, %v5291
        %v5477 = vmul.f32 %v5093, %v5296
        %v5478 = vmul.f32 %v5094, %v5301
        %v5479 = vmul.f32 %v5095, %v5306
        %v5480 = vmul.f32 %v5096, %v5311
        %v5481 = vmul.f32 %v5097, %v5316
        %v5482 = vmul.f32 %v5098, %v5321
        %v5483 = vmul.f32 %v5099, %v5326
        %v5484 = vmul.f32 %v5100, %v5331
        %v5485 = vmul.f32 %v5101, %v5336
        %v5486 = vmul.f32 %v5102, %v5341
        %v5487 = vmul.f32 %v5103, %v5346
        %v5488 = vmul.f32 %v5104, %v5351
        %v5489 = vmul.f32 %v5105, %v5356
        %v5490 = vmul.f32 %v5106, %v5361
        %v5491 = vmul.f32 %v5107, %v5366
        %v5492 = vmul.f32 %v5108, %v5371
        %v5493 = vmul.f32 %v5109, %v5376
        %v5494 = vmul.f32 %v5110, %v5381
        %v5495 = vmul.f32 %v5111, %v5386
        %v5496 = vmul.f32 %v5112, %v5391
        %v5497 = vmul.f32 %v5113, %v5396
        %v5498 = vmul.f32 %v5114, %v5401
        %v5499 = vmul.f32 %v5115, %v5406
        %v5500 = vmul.f32 %v5116, %v5411
        %v5501 = vmul.f32 %v5117, %v5416
        %v5502 = vmul.f32 %v5118, %v5421
        %v5503 = vmul.f32 %v5119, %v5426
        %v5504 = vmul.f32 %v5120, %v5431
        %v5505 = vmul.f32 %v5121, %v5436
        %v5506 = vmul.f32 %v5122, %v5441
        %v5507 = vpack.c.bf16 %v5444, %v5443
        %v5508 = vpack.c.bf16 %v5446, %v5445
        %v5509 = vpack.c.bf16 %v5448, %v5447
        %v5510 = vpack.c.bf16 %v5450, %v5449
        %v5511 = vpack.c.bf16 %v5452, %v5451
        %v5512 = vpack.c.bf16 %v5454, %v5453
        %v5513 = vpack.c.bf16 %v5456, %v5455
        %v5514 = vpack.c.bf16 %v5458, %v5457
        %v5515 = vpack.c.bf16 %v5460, %v5459
        %v5516 = vpack.c.bf16 %v5462, %v5461
        %v5517 = vpack.c.bf16 %v5464, %v5463
        %v5518 = vpack.c.bf16 %v5466, %v5465
        %v5519 = vpack.c.bf16 %v5468, %v5467
        %v5520 = vpack.c.bf16 %v5470, %v5469
        %v5521 = vpack.c.bf16 %v5472, %v5471
        %v5522 = vpack.c.bf16 %v5474, %v5473
        %v5523 = vpack.c.bf16 %v5476, %v5475
        %v5524 = vpack.c.bf16 %v5478, %v5477
        %v5525 = vpack.c.bf16 %v5480, %v5479
        %v5526 = vpack.c.bf16 %v5482, %v5481
        %v5527 = vpack.c.bf16 %v5484, %v5483
        %v5528 = vpack.c.bf16 %v5486, %v5485
        %v5529 = vpack.c.bf16 %v5488, %v5487
        %v5530 = vpack.c.bf16 %v5490, %v5489
        %v5531 = vpack.c.bf16 %v5492, %v5491
        %v5532 = vpack.c.bf16 %v5494, %v5493
        %v5533 = vpack.c.bf16 %v5496, %v5495
        %v5534 = vpack.c.bf16 %v5498, %v5497
        %v5535 = vpack.c.bf16 %v5500, %v5499
        %v5536 = vpack.c.bf16 %v5502, %v5501
        %v5537 = vpack.c.bf16 %v5504, %v5503
        %v5538 = vpack.c.bf16 %v5506, %v5505
        %v5539 = vld [vmem:[%s3] sm:$0xff]
        %v5540 = vld [vmem:[%s3 + $0x8] sm:$0xff]
        %v5541 = vld [vmem:[%s3 + $0x10] sm:$0xff]
        %v5542 = vld [vmem:[%s3 + $0x18] sm:$0xff]
        %v5543 = vld [vmem:[%s3 + $0x20] sm:$0xff]
        %v5544 = vld [vmem:[%s3 + $0x28] sm:$0xff]
        %v5545 = vld [vmem:[%s3 + $0x30] sm:$0xff]
        %v5546 = vld [vmem:[%s3 + $0x38] sm:$0xff]
        %v5547 = vld [vmem:[%s3 + $0x40] sm:$0xff]
        %v5548 = vld [vmem:[%s3 + $0x48] sm:$0xff]
        %v5549 = vld [vmem:[%s3 + $0x50] sm:$0xff]
        %v5550 = vld [vmem:[%s3 + $0x58] sm:$0xff]
        %v5551 = vld [vmem:[%s3 + $0x60] sm:$0xff]
        %v5552 = vld [vmem:[%s3 + $0x68] sm:$0xff]
        %v5553 = vld [vmem:[%s3 + $0x70] sm:$0xff]
        %v5554 = vld [vmem:[%s3 + $0x78] sm:$0xff]
        %v5571 = vunpack.c.l.b16 %v5539
        %v5572 = vunpack.c.h.b16 %v5539
        %v5573 = vunpack.c.l.b16 %v5540
        %v5574 = vunpack.c.h.b16 %v5540
        %v5575 = vunpack.c.l.b16 %v5541
        %v5576 = vunpack.c.h.b16 %v5541
        %v5577 = vunpack.c.l.b16 %v5542
        %v5578 = vunpack.c.h.b16 %v5542
        %v5579 = vunpack.c.l.b16 %v5543
        %v5580 = vunpack.c.h.b16 %v5543
        %v5581 = vunpack.c.l.b16 %v5544
        %v5582 = vunpack.c.h.b16 %v5544
        %v5583 = vunpack.c.l.b16 %v5545
        %v5584 = vunpack.c.h.b16 %v5545
        %v5585 = vunpack.c.l.b16 %v5546
        %v5586 = vunpack.c.h.b16 %v5546
        %v5587 = vunpack.c.l.b16 %v5547
        %v5588 = vunpack.c.h.b16 %v5547
        %v5589 = vunpack.c.l.b16 %v5548
        %v5590 = vunpack.c.h.b16 %v5548
        %v5591 = vunpack.c.l.b16 %v5549
        %v5592 = vunpack.c.h.b16 %v5549
        %v5593 = vunpack.c.l.b16 %v5550
        %v5594 = vunpack.c.h.b16 %v5550
        %v5595 = vunpack.c.l.b16 %v5551
        %v5596 = vunpack.c.h.b16 %v5551
        %v5597 = vunpack.c.l.b16 %v5552
        %v5598 = vunpack.c.h.b16 %v5552
        %v5599 = vunpack.c.l.b16 %v5553
        %v5600 = vunpack.c.h.b16 %v5553
        %v5601 = vunpack.c.l.b16 %v5554
        %v5602 = vunpack.c.h.b16 %v5554
        %v5603 = vpack.c.b16 %v5575, %v5571
        %v5604 = vpack.c.b16 %v5576, %v5572
        %v5605 = vpack.c.b16 %v5577, %v5573
        %v5606 = vpack.c.b16 %v5578, %v5574
        %v5607 = vpack.c.b16 %v5583, %v5579
        %v5608 = vpack.c.b16 %v5584, %v5580
        %v5609 = vpack.c.b16 %v5585, %v5581
        %v5610 = vpack.c.b16 %v5586, %v5582
        %v5611 = vpack.c.b16 %v5591, %v5587
        %v5612 = vpack.c.b16 %v5592, %v5588
        %v5613 = vpack.c.b16 %v5593, %v5589
        %v5614 = vpack.c.b16 %v5594, %v5590
        %v5615 = vpack.c.b16 %v5599, %v5595
        %v5616 = vpack.c.b16 %v5600, %v5596
        %v5617 = vpack.c.b16 %v5601, %v5597
        %v5618 = vpack.c.b16 %v5602, %v5598
        %5635 = vmatprep.subr.bf16.mxu0 0
        %5636 = vmatpush1.bf16.msra.mxu0 %v5507
        %5637 = vmatprep.subr.bf16.mxu0 0
        %5638 = vmatpush1.bf16.msra.mxu0 %v5508
        %5639 = vmatprep.subr.bf16.mxu0 0
        %5640 = vmatpush1.bf16.msra.mxu0 %v5509
        %5641 = vmatprep.subr.bf16.mxu0 0
        %5642 = vmatpush1.bf16.msra.mxu0 %v5510
        %5643 = vmatprep.subr.bf16.mxu0 0
        %5644 = vmatpush1.bf16.msra.mxu0 %v5511
        %5645 = vmatprep.subr.bf16.mxu0 0
        %5646 = vmatpush1.bf16.msra.mxu0 %v5512
        %5647 = vmatprep.subr.bf16.mxu0 0
        %5648 = vmatpush1.bf16.msra.mxu0 %v5513
        %5649 = vmatprep.subr.bf16.mxu0 0
        %5650 = vmatpush1.bf16.msra.mxu0 %v5514
        %5651 = vmatprep.subr.bf16.mxu0 0
        %5652 = vmatpush1.bf16.msra.mxu0 %v5515
        %5653 = vmatprep.subr.bf16.mxu0 0
        %5654 = vmatpush1.bf16.msra.mxu0 %v5516
        %5655 = vmatprep.subr.bf16.mxu0 0
        %5656 = vmatpush1.bf16.msra.mxu0 %v5517
        %5657 = vmatprep.subr.bf16.mxu0 0
        %5658 = vmatpush1.bf16.msra.mxu0 %v5518
        %5659 = vmatprep.subr.bf16.mxu0 0
        %5660 = vmatpush1.bf16.msra.mxu0 %v5519
        %5661 = vmatprep.subr.bf16.mxu0 0
        %5662 = vmatpush1.bf16.msra.mxu0 %v5520
        %5663 = vmatprep.subr.bf16.mxu0 0
        %5664 = vmatpush1.bf16.msra.mxu0 %v5521
        %5665 = vmatprep.subr.bf16.mxu0 0
        %5666 = vmatpush1.bf16.msra.mxu0 %v5522
        %5667 = vmatprep.mubr.bf16.mxu0 %v5604
        %5668 = vmatmul.mubr.bf16.gmra.mrb[0].mxu0 %v5603
        %v5669 = vpop.f32.mrb[0].mxu0
        %v5670 = vadd.f32 0.0, %v5669
        %v5671 = vpop.f32.mrb[0].mxu0
        %v5672 = vpop.f32.mrb[0].mxu0
        %v5673 = vadd.f32 0.0, %v5672
        %v5674 = vpop.f32.mrb[0].mxu0
        %5675 = vmatprep.mubr.bf16.mxu0 %v5608
        %5676 = vmatmul.mubr.bf16.gmra.mrb[0].mxu0 %v5607
        %v5677 = vpop.f32.mrb[0].mxu0
        %v5678 = vadd.f32 0.0, %v5677
        %v5679 = vpop.f32.mrb[0].mxu0
        %v5680 = vpop.f32.mrb[0].mxu0
        %v5681 = vadd.f32 0.0, %v5680
        %v5682 = vpop.f32.mrb[0].mxu0
        %5683 = vmatprep.mubr.bf16.mxu0 %v5612
        %5684 = vmatmul.mubr.bf16.gmra.mrb[0].mxu0 %v5611
        %v5685 = vpop.f32.mrb[0].mxu0
        %v5686 = vadd.f32 0.0, %v5685
        %v5687 = vpop.f32.mrb[0].mxu0
        %v5688 = vpop.f32.mrb[0].mxu0
        %v5689 = vadd.f32 0.0, %v5688
        %v5690 = vpop.f32.mrb[0].mxu0
        %5691 = vmatprep.mubr.bf16.mxu0 %v5616
        %5692 = vmatmul.mubr.bf16.gmra.mrb[0].mxu0 %v5615
        %v5693 = vpop.f32.mrb[0].mxu0
        %v5694 = vadd.f32 0.0, %v5693
        %v5695 = vpop.f32.mrb[0].mxu0
        %v5696 = vpop.f32.mrb[0].mxu0
        %v5697 = vadd.f32 0.0, %v5696
        %v5698 = vpop.f32.mrb[0].mxu0
        %5699 = vdwg.mxu0
        %5700 = vmatprep.subr.bf16.mxu0 0
        %5701 = vmatpush1.bf16.msra.mxu0 %v5523
        %5702 = vmatprep.subr.bf16.mxu0 0
        %5703 = vmatpush1.bf16.msra.mxu0 %v5524
        %5704 = vmatprep.subr.bf16.mxu0 0
        %5705 = vmatpush1.bf16.msra.mxu0 %v5525
        %5706 = vmatprep.subr.bf16.mxu0 0
        %5707 = vmatpush1.bf16.msra.mxu0 %v5526
        %5708 = vmatprep.subr.bf16.mxu0 0
        %5709 = vmatpush1.bf16.msra.mxu0 %v5527
        %5710 = vmatprep.subr.bf16.mxu0 0
        %5711 = vmatpush1.bf16.msra.mxu0 %v5528
        %5712 = vmatprep.subr.bf16.mxu0 0
        %5713 = vmatpush1.bf16.msra.mxu0 %v5529
        %5714 = vmatprep.subr.bf16.mxu0 0
        %5715 = vmatpush1.bf16.msra.mxu0 %v5530
        %5716 = vmatprep.subr.bf16.mxu0 0
        %5717 = vmatpush1.bf16.msra.mxu0 %v5531
        %5718 = vmatprep.subr.bf16.mxu0 0
        %5719 = vmatpush1.bf16.msra.mxu0 %v5532
        %5720 = vmatprep.subr.bf16.mxu0 0
        %5721 = vmatpush1.bf16.msra.mxu0 %v5533
        %5722 = vmatprep.subr.bf16.mxu0 0
        %5723 = vmatpush1.bf16.msra.mxu0 %v5534
        %5724 = vmatprep.subr.bf16.mxu0 0
        %5725 = vmatpush1.bf16.msra.mxu0 %v5535
        %5726 = vmatprep.subr.bf16.mxu0 0
        %5727 = vmatpush1.bf16.msra.mxu0 %v5536
        %5728 = vmatprep.subr.bf16.mxu0 0
        %5729 = vmatpush1.bf16.msra.mxu0 %v5537
        %5730 = vmatprep.subr.bf16.mxu0 0
        %5731 = vmatpush1.bf16.msra.mxu0 %v5538
        %5732 = vmatprep.mubr.bf16.mxu0 %v5606
        %5733 = vmatmul.mubr.bf16.gmra.mrb[0].mxu0 %v5605
        %v5734 = vpop.f32.mrb[0].mxu0
        %v5735 = vadd.f32 %v5670, %v5734
        %v5736 = vpop.f32.mrb[0].mxu0
        %v5737 = vpop.f32.mrb[0].mxu0
        %v5738 = vadd.f32 %v5673, %v5737
        %v5739 = vpop.f32.mrb[0].mxu0
        %5740 = vmatprep.mubr.bf16.mxu0 %v5610
        %5741 = vmatmul.mubr.bf16.gmra.mrb[0].mxu0 %v5609
        %v5742 = vpop.f32.mrb[0].mxu0
        %v5743 = vadd.f32 %v5678, %v5742
        %v5744 = vpop.f32.mrb[0].mxu0
        %v5745 = vpop.f32.mrb[0].mxu0
        %v5746 = vadd.f32 %v5681, %v5745
        %v5747 = vpop.f32.mrb[0].mxu0
        %5748 = vmatprep.mubr.bf16.mxu0 %v5614
        %5749 = vmatmul.mubr.bf16.gmra.mrb[0].mxu0 %v5613
        %v5750 = vpop.f32.mrb[0].mxu0
        %v5751 = vadd.f32 %v5686, %v5750
        %v5752 = vpop.f32.mrb[0].mxu0
        %v5753 = vpop.f32.mrb[0].mxu0
        %v5754 = vadd.f32 %v5689, %v5753
        %v5755 = vpop.f32.mrb[0].mxu0
        %5756 = vmatprep.mubr.bf16.mxu0 %v5618
        %5757 = vmatmul.mubr.bf16.gmra.mrb[0].mxu0 %v5617
        %v5758 = vpop.f32.mrb[0].mxu0
        %v5759 = vadd.f32 %v5694, %v5758
        %v5760 = vpop.f32.mrb[0].mxu0
        %v5761 = vpop.f32.mrb[0].mxu0
        %v5762 = vadd.f32 %v5697, %v5761
        %v5763 = vpop.f32.mrb[0].mxu0
        %5764 = vdwg.mxu0
        %v5765 = vld [vmem:[%s10] sm:$0xf]
        %v5766 = vld [vmem:[%s10 + $0x4] sm:$0xf]
        %v5767 = vld [vmem:[%s10 + $0x8] sm:$0xf]
        %v5768 = vld [vmem:[%s10 + $0xc] sm:$0xf]
        %v5769 = vld [vmem:[%s10 + $0x10] sm:$0xf]
        %v5770 = vld [vmem:[%s10 + $0x14] sm:$0xf]
        %v5771 = vld [vmem:[%s10 + $0x18] sm:$0xf]
        %v5772 = vld [vmem:[%s10 + $0x1c] sm:$0xf]
        %v5773 = vpack.c.bf16 %v5738, %v5735
        %v5774 = vpack.c.bf16 %v5746, %v5743
        %v5775 = vpack.c.bf16 %v5754, %v5751
        %v5776 = vpack.c.bf16 %v5762, %v5759
        %v5777 = vld [vmem:[%s11] sm:$0xf]
        %v5778 = vld [vmem:[%s11 + $0x4] sm:$0xf]
        %v5779 = vld [vmem:[%s11 + $0x8] sm:$0xf]
        %v5780 = vld [vmem:[%s11 + $0xc] sm:$0xf]
        %v5781 = vld [vmem:[%s11 + $0x10] sm:$0xf]
        %v5782 = vld [vmem:[%s11 + $0x14] sm:$0xf]
        %v5783 = vld [vmem:[%s11 + $0x18] sm:$0xf]
        %v5784 = vld [vmem:[%s11 + $0x1c] sm:$0xf]
        %v5793 = vunpack.c.l.b16 %v5777
        %v5794 = vunpack.c.l.b16 %v5778
        %v5795 = vunpack.c.l.b16 %v5779
        %v5796 = vunpack.c.l.b16 %v5780
        %v5797 = vunpack.c.l.b16 %v5781
        %v5798 = vunpack.c.l.b16 %v5782
        %v5799 = vunpack.c.l.b16 %v5783
        %v5800 = vunpack.c.l.b16 %v5784
        %v5801 = vpack.c.b16 %v5794, %v5793
        %v5802 = vpack.c.b16 %v5796, %v5795
        %v5803 = vpack.c.b16 %v5798, %v5797
        %v5804 = vpack.c.b16 %v5800, %v5799
        %v5810 = vsel %vm1291, %v5773, 0
        %v5813 = vsel %vm1291, %v5774, 0
        %v5816 = vsel %vm1291, %v5775, 0
        %v5819 = vsel %vm1291, %v5776, 0
        %5821 = vmatprep.subr.bf16.mxu0 0
        %5822 = vmatpush1.bf16.msra.mxu0 %v5801
        %5823 = vmatprep.subr.bf16.mxu0 0
        %5824 = vmatpush1.bf16.msra.mxu0 %v5802
        %5825 = vmatprep.subr.bf16.mxu0 0
        %5826 = vmatpush1.bf16.msra.mxu0 %v5803
        %5827 = vmatprep.subr.bf16.mxu0 0
        %5828 = vmatpush1.bf16.msra.mxu0 %v5804
        %5829 = vmatprep.subr.bf16.mxu0 0
        %5830 = vmatpush1.bf16.msra.mxu0 0
        %5831 = vmatprep.subr.bf16.mxu0 0
        %5832 = vmatpush1.bf16.msra.mxu0 0
        %5833 = vmatprep.subr.bf16.mxu0 0
        %5834 = vmatpush1.bf16.msra.mxu0 0
        %5835 = vmatprep.subr.bf16.mxu0 0
        %5836 = vmatpush1.bf16.msra.mxu0 0
        %5837 = vmatprep.subr.bf16.mxu0 0
        %5838 = vmatpush1.bf16.msra.mxu0 0
        %5839 = vmatprep.subr.bf16.mxu0 0
        %5840 = vmatpush1.bf16.msra.mxu0 0
        %5841 = vmatprep.subr.bf16.mxu0 0
        %5842 = vmatpush1.bf16.msra.mxu0 0
        %5843 = vmatprep.subr.bf16.mxu0 0
        %5844 = vmatpush1.bf16.msra.mxu0 0
        %5845 = vmatprep.subr.bf16.mxu0 0
        %5846 = vmatpush1.bf16.msra.mxu0 0
        %5847 = vmatprep.subr.bf16.mxu0 0
        %5848 = vmatpush1.bf16.msra.mxu0 0
        %5849 = vmatprep.subr.bf16.mxu0 0
        %5850 = vmatpush1.bf16.msra.mxu0 0
        %5851 = vmatprep.subr.bf16.mxu0 0
        %5852 = vmatpush1.bf16.msra.mxu0 0
        %5853 = vmatprep.mubr.bf16.mxu0 0
        %5854 = vmatmul.mubr.bf16.gmra.mrb[0].mxu0 %v5810
        %v5855 = vpop.f32.mrb[0].mxu0
        %v5856 = vadd.f32 0.0, %v5855
        %v5857 = vpop.f32.mrb[0].mxu0
        %v5858 = vpop.f32.mrb[0].mxu0
        %v5859 = vadd.f32 0.0, %v5858
        %v5860 = vpop.f32.mrb[0].mxu0
        %5861 = vmatprep.mubr.bf16.mxu0 0
        %5862 = vmatmul.mubr.bf16.gmra.mrb[0].mxu0 %v5813
        %v5863 = vpop.f32.mrb[0].mxu0
        %v5864 = vadd.f32 0.0, %v5863
        %v5865 = vpop.f32.mrb[0].mxu0
        %v5866 = vpop.f32.mrb[0].mxu0
        %v5867 = vadd.f32 0.0, %v5866
        %v5868 = vpop.f32.mrb[0].mxu0
        %5869 = vmatprep.mubr.bf16.mxu0 0
        %5870 = vmatmul.mubr.bf16.gmra.mrb[0].mxu0 %v5816
        %v5871 = vpop.f32.mrb[0].mxu0
        %v5872 = vadd.f32 0.0, %v5871
        %v5873 = vpop.f32.mrb[0].mxu0
        %v5874 = vpop.f32.mrb[0].mxu0
        %v5875 = vadd.f32 0.0, %v5874
        %v5876 = vpop.f32.mrb[0].mxu0
        %5877 = vmatprep.mubr.bf16.mxu0 0
        %5878 = vmatmul.mubr.bf16.gmra.mrb[0].mxu0 %v5819
        %v5879 = vpop.f32.mrb[0].mxu0
        %v5880 = vadd.f32 0.0, %v5879
        %v5881 = vpop.f32.mrb[0].mxu0
        %v5882 = vpop.f32.mrb[0].mxu0
        %v5883 = vadd.f32 0.0, %v5882
        %v5884 = vpop.f32.mrb[0].mxu0
        %5885 = vdwg.mxu0
        %v5894 = vunpack.c.l.b16 %v5765
        %v5895 = vunpack.c.l.b16 %v5766
        %v5896 = vunpack.c.l.b16 %v5767
        %v5897 = vunpack.c.l.b16 %v5768
        %v5898 = vunpack.c.l.b16 %v5769
        %v5899 = vunpack.c.l.b16 %v5770
        %v5900 = vunpack.c.l.b16 %v5771
        %v5901 = vunpack.c.l.b16 %v5772
        %v5902 = vpack.c.b16 %v5895, %v5894
        %v5903 = vpack.c.b16 %v5897, %v5896
        %v5904 = vpack.c.b16 %v5899, %v5898
        %v5905 = vpack.c.b16 %v5901, %v5900
        %5910 = vmatprep.subr.bf16.mxu0 0
        %5911 = vmatpush1.bf16.msra.mxu0 %v5902
        %5912 = vmatprep.subr.bf16.mxu0 0
        %5913 = vmatpush1.bf16.msra.mxu0 %v5903
        %5914 = vmatprep.subr.bf16.mxu0 0
        %5915 = vmatpush1.bf16.msra.mxu0 %v5904
        %5916 = vmatprep.subr.bf16.mxu0 0
        %5917 = vmatpush1.bf16.msra.mxu0 %v5905
        %5918 = vmatprep.subr.bf16.mxu0 0
        %5919 = vmatpush1.bf16.msra.mxu0 0
        %5920 = vmatprep.subr.bf16.mxu0 0
        %5921 = vmatpush1.bf16.msra.mxu0 0
        %5922 = vmatprep.subr.bf16.mxu0 0
        %5923 = vmatpush1.bf16.msra.mxu0 0
        %5924 = vmatprep.subr.bf16.mxu0 0
        %5925 = vmatpush1.bf16.msra.mxu0 0
        %5926 = vmatprep.subr.bf16.mxu0 0
        %5927 = vmatpush1.bf16.msra.mxu0 0
        %5928 = vmatprep.subr.bf16.mxu0 0
        %5929 = vmatpush1.bf16.msra.mxu0 0
        %5930 = vmatprep.subr.bf16.mxu0 0
        %5931 = vmatpush1.bf16.msra.mxu0 0
        %5932 = vmatprep.subr.bf16.mxu0 0
        %5933 = vmatpush1.bf16.msra.mxu0 0
        %5934 = vmatprep.subr.bf16.mxu0 0
        %5935 = vmatpush1.bf16.msra.mxu0 0
        %5936 = vmatprep.subr.bf16.mxu0 0
        %5937 = vmatpush1.bf16.msra.mxu0 0
        %5938 = vmatprep.subr.bf16.mxu0 0
        %5939 = vmatpush1.bf16.msra.mxu0 0
        %5940 = vmatprep.subr.bf16.mxu0 0
        %5941 = vmatpush1.bf16.msra.mxu0 0
        %5942 = vmatprep.mubr.bf16.mxu0 0
        %5943 = vmatmul.mubr.bf16.gmra.mrb[0].mxu0 %v1293
        %v5944 = vpop.f32.mrb[0].mxu0
        %v5945 = vadd.f32 %v5856, %v5944
        %v5946 = vpop.f32.mrb[0].mxu0
        %v5947 = vpop.f32.mrb[0].mxu0
        %v5948 = vadd.f32 %v5859, %v5947
        %v5949 = vpop.f32.mrb[0].mxu0
        %5950 = vmatprep.mubr.bf16.mxu0 0
        %5951 = vmatmul.mubr.bf16.gmra.mrb[0].mxu0 %v1296
        %v5952 = vpop.f32.mrb[0].mxu0
        %v5953 = vadd.f32 %v5864, %v5952
        %v5954 = vpop.f32.mrb[0].mxu0
        %v5955 = vpop.f32.mrb[0].mxu0
        %v5956 = vadd.f32 %v5867, %v5955
        %v5957 = vpop.f32.mrb[0].mxu0
        %5958 = vmatprep.mubr.bf16.mxu0 0
        %5959 = vmatmul.mubr.bf16.gmra.mrb[0].mxu0 %v1299
        %v5960 = vpop.f32.mrb[0].mxu0
        %v5961 = vadd.f32 %v5872, %v5960
        %v5962 = vpop.f32.mrb[0].mxu0
        %v5963 = vpop.f32.mrb[0].mxu0
        %v5964 = vadd.f32 %v5875, %v5963
        %v5965 = vpop.f32.mrb[0].mxu0
        %5966 = vmatprep.mubr.bf16.mxu0 0
        %5967 = vmatmul.mubr.bf16.gmra.mrb[0].mxu0 %v1302
        %v5968 = vpop.f32.mrb[0].mxu0
        %v5969 = vadd.f32 %v5880, %v5968
        %v5970 = vpop.f32.mrb[0].mxu0
        %v5971 = vpop.f32.mrb[0].mxu0
        %v5972 = vadd.f32 %v5883, %v5971
        %v5973 = vpop.f32.mrb[0].mxu0
        %5974 = vdwg.mxu0
        %v5975 = vld [vmem:[%s12] sm:$0x1]
        %v5977 = vlaneseq
        %v5978 = vshrl.u32 %v5977, 7
        %v5979 = vsub.s32 0, %v5978
        %v5980 = vrot.slane %v5975, %v5979
        %v5982 = vadd.f32 %v5945, %v5980
        %v5983 = vadd.f32 %v5948, %v5980
        %v5984 = vadd.f32 %v5953, %v5980
        %v5985 = vadd.f32 %v5956, %v5980
        %v5986 = vadd.f32 %v5961, %v5980
        %v5987 = vadd.f32 %v5964, %v5980
        %v5988 = vadd.f32 %v5969, %v5980
        %v5989 = vadd.f32 %v5972, %v5980
        %v5990 = vld [vmem:[%s13] sm:$0xf]
        %v5991 = vld [vmem:[%s13 + $0x4] sm:$0xf]
        %v5992 = vld [vmem:[%s13 + $0x8] sm:$0xf]
        %v5993 = vld [vmem:[%s13 + $0xc] sm:$0xf]
        %v5994 = vld [vmem:[%s13 + $0x10] sm:$0xf]
        %v5995 = vld [vmem:[%s13 + $0x14] sm:$0xf]
        %v5996 = vld [vmem:[%s13 + $0x18] sm:$0xf]
        %v5997 = vld [vmem:[%s13 + $0x1c] sm:$0xf]
        %v5998 = vld [vmem:[%s14] sm:$0x1]
        %v6000 = vlaneseq
        %v6001 = vshrl.u32 %v6000, 7
        %v6002 = vsub.s32 0, %v6001
        %v6003 = vrot.slane %v5998, %v6002
        %v6013 = vunpack.c.l.b16 %v5990
        %v6014 = vunpack.c.l.b16 %v5991
        %v6015 = vunpack.c.l.b16 %v5992
        %v6016 = vunpack.c.l.b16 %v5993
        %v6017 = vunpack.c.l.b16 %v5994
        %v6018 = vunpack.c.l.b16 %v5995
        %v6019 = vunpack.c.l.b16 %v5996
        %v6020 = vunpack.c.l.b16 %v5997
        %v6021 = vpack.c.b16 %v6014, %v6013
        %v6022 = vpack.c.b16 %v6016, %v6015
        %v6023 = vpack.c.b16 %v6018, %v6017
        %v6024 = vpack.c.b16 %v6020, %v6019
        %6029 = vmatprep.subr.bf16.mxu0 0
        %6030 = vmatpush1.bf16.msra.mxu0 %v6021
        %6031 = vmatprep.subr.bf16.mxu0 0
        %6032 = vmatpush1.bf16.msra.mxu0 %v6022
        %6033 = vmatprep.subr.bf16.mxu0 0
        %6034 = vmatpush1.bf16.msra.mxu0 %v6023
        %6035 = vmatprep.subr.bf16.mxu0 0
        %6036 = vmatpush1.bf16.msra.mxu0 %v6024
        %6037 = vmatprep.subr.bf16.mxu0 0
        %6038 = vmatpush1.bf16.msra.mxu0 0
        %6039 = vmatprep.subr.bf16.mxu0 0
        %6040 = vmatpush1.bf16.msra.mxu0 0
        %6041 = vmatprep.subr.bf16.mxu0 0
        %6042 = vmatpush1.bf16.msra.mxu0 0
        %6043 = vmatprep.subr.bf16.mxu0 0
        %6044 = vmatpush1.bf16.msra.mxu0 0
        %6045 = vmatprep.subr.bf16.mxu0 0
        %6046 = vmatpush1.bf16.msra.mxu0 0
        %6047 = vmatprep.subr.bf16.mxu0 0
        %6048 = vmatpush1.bf16.msra.mxu0 0
        %6049 = vmatprep.subr.bf16.mxu0 0
        %6050 = vmatpush1.bf16.msra.mxu0 0
        %6051 = vmatprep.subr.bf16.mxu0 0
        %6052 = vmatpush1.bf16.msra.mxu0 0
        %6053 = vmatprep.subr.bf16.mxu0 0
        %6054 = vmatpush1.bf16.msra.mxu0 0
        %6055 = vmatprep.subr.bf16.mxu0 0
        %6056 = vmatpush1.bf16.msra.mxu0 0
        %6057 = vmatprep.subr.bf16.mxu0 0
        %6058 = vmatpush1.bf16.msra.mxu0 0
        %6059 = vmatprep.subr.bf16.mxu0 0
        %6060 = vmatpush1.bf16.msra.mxu0 0
        %6061 = vmatprep.mubr.bf16.mxu0 0
        %6062 = vmatmul.mubr.bf16.gmra.mrb[0].mxu0 %v1293
        %v6063 = vpop.f32.mrb[0].mxu0
        %v6064 = vadd.f32 %v6003, %v6063
        %v6065 = vpop.f32.mrb[0].mxu0
        %v6066 = vpop.f32.mrb[0].mxu0
        %v6067 = vadd.f32 %v6003, %v6066
        %v6068 = vpop.f32.mrb[0].mxu0
        %6069 = vmatprep.mubr.bf16.mxu0 0
        %6070 = vmatmul.mubr.bf16.gmra.mrb[0].mxu0 %v1296
        %v6071 = vpop.f32.mrb[0].mxu0
        %v6072 = vadd.f32 %v6003, %v6071
        %v6073 = vpop.f32.mrb[0].mxu0
        %v6074 = vpop.f32.mrb[0].mxu0
        %v6075 = vadd.f32 %v6003, %v6074
        %v6076 = vpop.f32.mrb[0].mxu0
        %6077 = vmatprep.mubr.bf16.mxu0 0
        %6078 = vmatmul.mubr.bf16.gmra.mrb[0].mxu0 %v1299
        %v6079 = vpop.f32.mrb[0].mxu0
        %v6080 = vadd.f32 %v6003, %v6079
        %v6081 = vpop.f32.mrb[0].mxu0
        %v6082 = vpop.f32.mrb[0].mxu0
        %v6083 = vadd.f32 %v6003, %v6082
        %v6084 = vpop.f32.mrb[0].mxu0
        %6085 = vmatprep.mubr.bf16.mxu0 0
        %6086 = vmatmul.mubr.bf16.gmra.mrb[0].mxu0 %v1302
        %v6087 = vpop.f32.mrb[0].mxu0
        %v6088 = vadd.f32 %v6003, %v6087
        %v6089 = vpop.f32.mrb[0].mxu0
        %v6090 = vpop.f32.mrb[0].mxu0
        %v6091 = vadd.f32 %v6003, %v6090
        %v6092 = vpop.f32.mrb[0].mxu0
        %6093 = vdwg.mxu0
        %6102 = vrot.lane.b32.xlu0 %v6064, 32
        %v6103 = vpop.permute.xlu0 %6102
        %6104 = vrot.lane.b32.xlu0 %v6067, 32
        %v6105 = vpop.permute.xlu0 %6104
        %6106 = vrot.lane.b32.xlu0 %v6072, 32
        %v6107 = vpop.permute.xlu0 %6106
        %6108 = vrot.lane.b32.xlu0 %v6075, 32
        %v6109 = vpop.permute.xlu0 %6108
        %6110 = vrot.lane.b32.xlu0 %v6080, 32
        %v6111 = vpop.permute.xlu0 %6110
        %6112 = vrot.lane.b32.xlu0 %v6083, 32
        %v6113 = vpop.permute.xlu0 %6112
        %6114 = vrot.lane.b32.xlu0 %v6088, 32
        %v6115 = vpop.permute.xlu0 %6114
        %6116 = vrot.lane.b32.xlu0 %v6091, 32
        %v6117 = vpop.permute.xlu0 %6116
        %v6126 = vsel %vm1102, %v5982, %v6103
        %v6127 = vsel %vm1102, %v5983, %v6105
        %v6128 = vsel %vm1102, %v5984, %v6107
        %v6129 = vsel %vm1102, %v5985, %v6109
        %v6130 = vsel %vm1102, %v5986, %v6111
        %v6131 = vsel %vm1102, %v5987, %v6113
        %v6132 = vsel %vm1102, %v5988, %v6115
        %v6133 = vsel %vm1102, %v5989, %v6117
        %6134 = vst.msk [vmem:[%s579] sm:$0xff] %vm1291, %v6126
        %6135 = vst.msk [vmem:[%s579 + $0x8] sm:$0xff] %vm1291, %v6127
        %6136 = vst.msk [vmem:[%s579 + $0x10] sm:$0xff] %vm1291, %v6128
        %6137 = vst.msk [vmem:[%s579 + $0x18] sm:$0xff] %vm1291, %v6129
        %6138 = vst.msk [vmem:[%s579 + $0x20] sm:$0xff] %vm1291, %v6130
        %6139 = vst.msk [vmem:[%s579 + $0x28] sm:$0xff] %vm1291, %v6131
        %6140 = vst.msk [vmem:[%s579 + $0x30] sm:$0xff] %vm1291, %v6132
        %6141 = vst.msk [vmem:[%s579 + $0x38] sm:$0xff] %vm1291, %v6133
        %v6142 = vsel %vm1102, %v5982, 0.0
        %v6143 = vsel %vm1102, %v5983, 0.0
        %v6144 = vadd.f32 %v6142, %v6143
        %v6145 = vsel %vm1102, %v5984, 0.0
        %v6146 = vadd.f32 %v6144, %v6145
        %v6147 = vsel %vm1102, %v5985, 0.0
        %v6148 = vadd.f32 %v6146, %v6147
        %v6149 = vsel %vm1102, %v5986, 0.0
        %v6150 = vadd.f32 %v6148, %v6149
        %v6151 = vsel %vm1102, %v5987, 0.0
        %v6152 = vadd.f32 %v6150, %v6151
        %v6153 = vsel %vm1102, %v5988, 0.0
        %v6154 = vadd.f32 %v6152, %v6153
        %v6155 = vsel %vm1102, %v5989, 0.0
        %v6156 = vadd.f32 %v6154, %v6155
        %v6157 = vrot.slane %v6156, 4
        %v6158 = vadd.f32 %v6156, %v6157
        %v6159 = vrot.slane %v6158, 2
        %v6160 = vadd.f32 %v6158, %v6159
        %v6161 = vrot.slane %v6160, 1
        %v6162 = vadd.f32 %v6160, %v6161
        %v6163 = vmul.f32 %v5982, %v5982
        %v6164 = vmul.f32 %v5983, %v5983
        %v6165 = vmul.f32 %v5984, %v5984
        %v6166 = vmul.f32 %v5985, %v5985
        %v6167 = vmul.f32 %v5986, %v5986
        %v6168 = vmul.f32 %v5987, %v5987
        %v6169 = vmul.f32 %v5988, %v5988
        %v6170 = vmul.f32 %v5989, %v5989
        %v6171 = vsel %vm1102, %v6163, 0.0
        %v6172 = vsel %vm1102, %v6164, 0.0
        %v6173 = vadd.f32 %v6171, %v6172
        %v6174 = vsel %vm1102, %v6165, 0.0
        %v6175 = vadd.f32 %v6173, %v6174
        %v6176 = vsel %vm1102, %v6166, 0.0
        %v6177 = vadd.f32 %v6175, %v6176
        %v6178 = vsel %vm1102, %v6167, 0.0
        %v6179 = vadd.f32 %v6177, %v6178
        %v6180 = vsel %vm1102, %v6168, 0.0
        %v6181 = vadd.f32 %v6179, %v6180
        %v6182 = vsel %vm1102, %v6169, 0.0
        %v6183 = vadd.f32 %v6181, %v6182
        %v6184 = vsel %vm1102, %v6170, 0.0
        %v6185 = vadd.f32 %v6183, %v6184
        %v6186 = vrot.slane %v6185, 4
        %v6187 = vadd.f32 %v6185, %v6186
        %v6188 = vrot.slane %v6187, 2
        %v6189 = vadd.f32 %v6187, %v6188
        %v6190 = vrot.slane %v6189, 1
        %v6191 = vadd.f32 %v6189, %v6190
        %v6192 = vsel %vm1102, %v6064, 0.0
        %v6193 = vsel %vm1102, %v6067, 0.0
        %v6194 = vadd.f32 %v6192, %v6193
        %v6195 = vsel %vm1102, %v6072, 0.0
        %v6196 = vadd.f32 %v6194, %v6195
        %v6197 = vsel %vm1102, %v6075, 0.0
        %v6198 = vadd.f32 %v6196, %v6197
        %v6199 = vsel %vm1102, %v6080, 0.0
        %v6200 = vadd.f32 %v6198, %v6199
        %v6201 = vsel %vm1102, %v6083, 0.0
        %v6202 = vadd.f32 %v6200, %v6201
        %v6203 = vsel %vm1102, %v6088, 0.0
        %v6204 = vadd.f32 %v6202, %v6203
        %v6205 = vsel %vm1102, %v6091, 0.0
        %v6206 = vadd.f32 %v6204, %v6205
        %v6207 = vrot.slane %v6206, 4
        %v6208 = vadd.f32 %v6206, %v6207
        %v6209 = vrot.slane %v6208, 2
        %v6210 = vadd.f32 %v6208, %v6209
        %v6211 = vrot.slane %v6210, 1
        %v6212 = vadd.f32 %v6210, %v6211
        %v6213 = vmul.f32 %v6064, %v6064
        %v6214 = vmul.f32 %v6067, %v6067
        %v6215 = vmul.f32 %v6072, %v6072
        %v6216 = vmul.f32 %v6075, %v6075
        %v6217 = vmul.f32 %v6080, %v6080
        %v6218 = vmul.f32 %v6083, %v6083
        %v6219 = vmul.f32 %v6088, %v6088
        %v6220 = vmul.f32 %v6091, %v6091
        %v6221 = vsel %vm1102, %v6213, 0.0
        %v6222 = vsel %vm1102, %v6214, 0.0
        %v6223 = vadd.f32 %v6221, %v6222
        %v6224 = vsel %vm1102, %v6215, 0.0
        %v6225 = vadd.f32 %v6223, %v6224
        %v6226 = vsel %vm1102, %v6216, 0.0
        %v6227 = vadd.f32 %v6225, %v6226
        %v6228 = vsel %vm1102, %v6217, 0.0
        %v6229 = vadd.f32 %v6227, %v6228
        %v6230 = vsel %vm1102, %v6218, 0.0
        %v6231 = vadd.f32 %v6229, %v6230
        %v6232 = vsel %vm1102, %v6219, 0.0
        %v6233 = vadd.f32 %v6231, %v6232
        %v6234 = vsel %vm1102, %v6220, 0.0
        %v6235 = vadd.f32 %v6233, %v6234
        %v6236 = vrot.slane %v6235, 4
        %v6237 = vadd.f32 %v6235, %v6236
        %v6238 = vrot.slane %v6237, 2
        %v6239 = vadd.f32 %v6237, %v6238
        %v6240 = vrot.slane %v6239, 1
        %v6241 = vadd.f32 %v6239, %v6240
        %vm6242 = vcmask 1040384
        %v6243 = vsel %vm6242, %v6162, %v6191
        %vm6244 = vcmask 1041408
        %v6245 = vsel %vm6244, %v6243, %v6212
        %vm6246 = vcmask 1042432
        %v6247 = vsel %vm6246, %v6245, %v6241
        %vm6248 = vcmask 1043456
        %v6249 = vsel %vm6248, %v6247, 0.0
        %vm6250 = vcmask 1044480
        %v6251 = vsel %vm6250, %v6249, 0.0
        %vm6252 = vcmask 1045504
        %v6253 = vsel %vm6252, %v6251, 0.0
        %vm6254 = vcmask 1046528
        %v6255 = vsel %vm6254, %v6253, 0.0
        %6256 = vst.msk [vmem:[%s556] sm:$0xff] %vm1102, %v6255
        %s6257 = smul.u32 8, %s32
        %p6258 = scmp.lt.s32.totalorder %s6257, 63
        %s6259 = scalar_select %p6258, %s6257, 63
        %s6260 = smul.addr %s6259, 8
        %s6261 = scalar_lea.vmem %s15, %s6260
        %s6262 = sand.u32 %s396, 1
        %s6263 = scalar_lea.sflag [#allocation4], %s6262
        %s6264 = sand.u32 %s396, 1
        %s6265 = smul.addr %s6264, 8
        %s6266 = scalar_lea.vmem [#allocation3], %s6265
        // Predicated region
        $region81: #{tpu_custom_call.1} parent=79 // pred_check
          %p6267 = pneg %p380
        $region82: #{tpu_custom_call.1} parent=79 // pred_check_branch
          %6269 = sbr.rel (%p6267) target = $region84
        $region83: #{tpu_custom_call.1} parent=79 // pred_region
          %s6270 = smul.u32 8, %s32
        $region84: #{tpu_custom_call.1} parent=79 // pred_fallthru
          _
        // Predicated region
        $region85: #{tpu_custom_call.1} parent=79 // pred_check
          %p6271 = pneg %p406
        $region86: #{tpu_custom_call.1} parent=79 // pred_check_branch
          %6273 = sbr.rel (%p6271) target = $region88
        $region87: #{tpu_custom_call.1} parent=79 // pred_region
          %s6275 = ssub.s32 128, 128
          %6276 = vsyncadd %s6263, %s6275
          %s6277 = smul.addr %s32, 128
          %s6278 = scalar_lea.hbm %s16, %s6277
          %s6280 = sshll.u32 %s6266, 4
          %s6281 = int_to_ptr.vmem [resolvable:$true] %s6280
          %6283 = dma.vmem_to_hbm [thread:$0]  %s6281, 128, %s6278, %s6263
        $region88: #{tpu_custom_call.1} parent=79 // pred_fallthru
          _
      $region80: #{tpu_custom_call.1} parent=5 // pred_fallthru
        _
      %p6284 = scmp.le.s32.totalorder 2, %s27
      // Predicated region
      $region89: #{tpu_custom_call.1} parent=5 // pred_check
        %p6285 = pneg %p6284
      $region90: #{tpu_custom_call.1} parent=5 // pred_check_branch
        %6287 = sbr.rel (%p6285) target = $region92
      $region91: #{tpu_custom_call.1} parent=5 // pred_region
        %s6288 = ssub.s32 %s27, 2
        // Predicated region
        $region93: #{tpu_custom_call.1} parent=91 // pred_check
          %p6289 = pneg %p386
        $region94: #{tpu_custom_call.1} parent=91 // pred_check_branch
          %6291 = sbr.rel (%p6289) target = $region96
        $region95: #{tpu_custom_call.1} parent=91 // pred_region
          %s6292 = smul.u32 8, %s33
          %p6293 = scmp.lt.s32.totalorder %s6292, 63
          %s6294 = scalar_select %p6293, %s6292, 63
          %s6295 = smul.addr %s6294, 8
          %s6296 = scalar_lea.vmem %s15, %s6295
        $region96: #{tpu_custom_call.1} parent=91 // pred_fallthru
          _
        // Predicated region
        $region97: #{tpu_custom_call.1} parent=91 // pred_check
          %p6297 = pneg %p412
        $region98: #{tpu_custom_call.1} parent=91 // pred_check_branch
          %6299 = sbr.rel (%p6297) target = $region100
        $region99: #{tpu_custom_call.1} parent=91 // pred_region
          %s6300 = sand.u32 %s397, 1
          %s6301 = scalar_lea.sflag [#allocation4], %s6300
          %s6302 = sand.u32 %s397, 1
          %s6303 = smul.addr %s6302, 8
          %s6304 = scalar_lea.vmem [#allocation3], %s6303
          %6305 = dma.done %s6301, 128
        $region100: #{tpu_custom_call.1} parent=91 // pred_fallthru
          _
      $region92: #{tpu_custom_call.1} parent=5 // pred_fallthru
        _
    $region6: #{tpu_custom_call.1} parent=1 // loop_footer
      %s31 = sadd.s32 1, %s27
    $region7: #{tpu_custom_call.1} parent=1 // loop_footer_branch
      %26 = sbr.rel target = $region3
    $region8: #{tpu_custom_call.1} parent=1 // loop_exit
      _
    %6306 = vsyncpa [#allocation4], 1
    %s6307 = scalar_lea.sflag [#allocation4], 1
    %6308 = vsyncpa %s6307, 1

</llo_original>
